<compile_context>
chip_gen: v7x
topology: tpu7x:2x2x1
jax: 0.10.0
libtpu: 0.0.40
codegen_flags: <defaults>
</compile_context>

<pallas_src>
import jax
import jax.numpy as jnp
from jax.experimental import pallas as pl
from jax.experimental.pallas import tpu as pltpu

# ---- small, structure-preserving hyper-parameters (orig: T=20, B=50, L~200, NH=5640) ----
T = 4            # time steps
B = 2            # batch
CIN = 15         # conv1 in channels
C1 = 60          # conv1 out channels
C2 = 120         # conv2 out channels
K = 5            # conv kernel size
L = 40           # input length
L1 = L - K + 1   # 36  (conv1 valid output length)
P1 = L1 // 2     # 18  (after max_pool1d(2))
L2 = P1 - K + 1  # 14  (conv2 valid output length)
P2 = L2 // 2     # 7   (after max_pool1d(2))
NH = C2 * P2     # 840 (flattened, analogue of num_hidden=5640)
NOUT = 50        # num_output
CPAD = 128       # channel dims padded to a full lane width (lane-aligned slices everywhere)
NPAD = 128       # output padded to a full lane width for unmasked stores
BETA = 0.7
THR = 1.0

R1 = B * P1        # 36: spk1 slab rows, row = b*P1 + pooled_pos
R2 = R1 - (K - 1)  # 32: conv2 output slab rows, row = b*P1 + l (valid where l < L2)
RP = R2 - 1        # 31: pooled conv2 slab rows (valid pooled value sits at row b*P1 + 2p)


def snn_kernel(xcol_ref, w1_ref, b1_ref, w2_ref, b2_ref, wfc_ref, bfc_ref,
               spk_ref, mem_ref):
    f32, bf16 = jnp.float32, jnp.bfloat16

    def lif(cur, mem_prev):
        rst = (mem_prev > THR).astype(f32)
        mem_new = BETA * mem_prev + cur - rst * THR
        spk = (mem_new > THR).astype(f32)
        return spk, mem_new

    w1 = w1_ref[...]
    w2 = w2_ref[...]
    wfc = wfc_ref[...]
    b1 = b1_ref[...]
    b2 = b2_ref[...]
    bfc = bfc_ref[...]

    # membrane state carried as values across the (small, fully static) time loop;
    # padded channel columns stay exactly 0 forever (zero weights, zero bias).
    mem1 = jnp.zeros((R1, CPAD), f32)
    mem2 = jnp.zeros((RP, CPAD), f32)
    mem3 = jnp.zeros((B, NPAD), f32)

    for t in range(T):
        # ---------------- conv1 + maxpool(2) + LIF1 ----------------
        # xcol rows are ordered (pool-parity, batch, pooled-pos) -> pooling = max of halves.
        acc1 = jnp.dot(xcol_ref[t], w1, preferred_element_type=f32) + b1    # (2*R1, 128)
        cur1 = jnp.maximum(acc1[:R1, :], acc1[R1:, :])                      # (R1, 128)
        spk1, mem1 = lif(cur1, mem1)                                        # rows = b*P1 + pos

        # ---------------- conv2 + maxpool(2) + LIF2 ----------------
        # im2col by lane-concatenating K shifted slices of the spike slab (lane-aligned,
        # no scratch writes), then ONE fused matmul against the k-stacked weight.
        col2 = jnp.concatenate([spk1[k:k + R2, :] for k in range(K)], axis=1)   # (R2, K*128)
        acc2 = jnp.dot(col2.astype(bf16), w2, preferred_element_type=f32) + b2  # (R2, 128)
        # maxpool(2): pairwise max of adjacent rows; the valid pooled value for (b, p) sits at
        # row b*P1 + 2p, other rows hold harmless filler that is never read downstream.
        cur2 = jnp.maximum(acc2[:RP, :], acc2[1:, :])                           # (RP, 128)
        spk2, mem2 = lif(cur2, mem2)

        # ---------------- fc1 + LIF3 ----------------
        # gather the pooled spike rows into a lane-dense (B, P2*128) slab (static row slices +
        # lane-aligned concatenation only) -> ONE matmul against the p-stacked fc weight.
        blocks = []
        for p in range(P2):
            rows = jnp.concatenate(
                [spk2[b * P1 + 2 * p: b * P1 + 2 * p + 1, :] for b in range(B)], axis=0)
            blocks.append(rows)                                             # (B, 128)
        fc_in = jnp.concatenate(blocks, axis=1).astype(bf16)                # (B, P2*128)
        cur3 = jnp.dot(fc_in, wfc, preferred_element_type=f32) + bfc        # (B, 128)
        spk3, mem3 = lif(cur3, mem3)

        # lane-dense full-slab output stores (padded cols are exact zeros)
        spk_ref[t, :, :] = spk3
        mem_ref[t, :, :] = mem3


@jax.jit
def snn_forward(x_ncl, w1, b1, w2, b2, wfc, bfc):
    """x_ncl: (T, B, CIN, L); weights/biases in PyTorch layout.  Returns (spk3_rec, mem3_rec)."""
    f32, bf16 = jnp.float32, jnp.bfloat16

    # ---- layout plumbing (no compute): weight transposes, lane padding, bf16 casts ----
    # conv1: [k*CIN + cin, c1] = w1[c1, cin, k], columns padded to 128
    w1f = w1.transpose(2, 1, 0).reshape(K * CIN, C1)
    w1f = jnp.pad(w1f, ((0, 0), (0, CPAD - C1))).astype(bf16)               # (75, 128)
    # conv2: [k*128 + c1, c2] = w2[c2, c1, k], both channel dims padded to 128
    w2f = w2.transpose(2, 1, 0)                                             # (K, C1, C2)
    w2f = jnp.pad(w2f, ((0, 0), (0, CPAD - C1), (0, CPAD - C2)))
    w2f = w2f.reshape(K * CPAD, CPAD).astype(bf16)                          # (640, 128)
    # fc: PyTorch flattens (C2, P2) c-major (n = c*P2 + p); kernel blocks along p:
    # [p*128 + c, o] = wfc[o, c*P2 + p]
    wfcf = wfc.reshape(NOUT, C2, P2).transpose(2, 1, 0)                     # (P2, C2, NOUT)
    wfcf = jnp.pad(wfcf, ((0, 0), (0, CPAD - C2), (0, NPAD - NOUT)))
    wfcf = wfcf.reshape(P2 * CPAD, NPAD).astype(bf16)                       # (896, 128)

    b1p = jnp.pad(b1.reshape(1, C1), ((0, 0), (0, CPAD - C1))).astype(f32)
    b2p = jnp.pad(b2.reshape(1, C2), ((0, 0), (0, CPAD - C2))).astype(f32)
    bfcp = jnp.pad(bfc.reshape(1, NOUT), ((0, 0), (0, NPAD - NOUT))).astype(f32)

    # im2col for conv1.  Row order = (pool parity h, batch b, pooled position p),
    # conv start l = 2p + h, so max_pool1d(2) inside the kernel is max(top half, bottom half).
    x_nlc = jnp.transpose(x_ncl, (0, 1, 3, 2))                              # (T, B, L, CIN)
    l_start = jnp.concatenate([2 * jnp.arange(P1), 2 * jnp.arange(P1) + 1])
    win = l_start[:, None] + jnp.arange(K)[None, :]                         # (2*P1, K)
    xw = x_nlc[:, :, win, :]                                                # (T, B, 2*P1, K, CIN)
    xcol = xw.reshape(T, B, 2, P1, K, CIN).transpose(0, 2, 1, 3, 4, 5)
    xcol = xcol.reshape(T, 2 * B * P1, K * CIN).astype(bf16)                # (T, 72, 75)

    vmem = pl.BlockSpec(memory_space=pltpu.MemorySpace.VMEM)   # whole-array, VMEM resident
    spk_pad, mem_pad = pl.pallas_call(
        snn_kernel,
        out_shape=(jax.ShapeDtypeStruct((T, B, NPAD), jnp.float32),
                   jax.ShapeDtypeStruct((T, B, NPAD), jnp.float32)),
        in_specs=[vmem] * 7,
        out_specs=(vmem, vmem),
    )(xcol, w1f, b1p, w2f, b2p, wfcf, bfcp)
    return spk_pad[:, :, :NOUT], mem_pad[:, :, :NOUT]


# ---------------- plain-JAX reference (PyTorch NCL layout / semantics) ----------------
def reference_forward(x_ncl, w1, b1, w2, b2, wfc, bfc):
    f32 = jnp.float32

    def conv1d(x, w, bias):  # x (B, Cin, Lin), w (Cout, Cin, K) -> (B, Cout, Lin-K+1)
        lo = x.shape[-1] - K + 1
        acc = jnp.zeros((x.shape[0], w.shape[0], lo), f32)
        for k in range(K):
            acc = acc + jnp.einsum('bcl,oc->bol', x[:, :, k:k + lo], w[:, :, k],
                                   precision='highest')
        return acc + bias[None, :, None]

    def lif(cur, mem_prev):
        rst = (mem_prev > THR).astype(f32)
        mem_new = BETA * mem_prev + cur - rst * THR
        return (mem_new > THR).astype(f32), mem_new

    m1 = jnp.zeros((B, C1, P1), f32)
    m2 = jnp.zeros((B, C2, P2), f32)
    m3 = jnp.zeros((B, NOUT), f32)
    spk_rec, mem_rec = [], []
    for t in range(T):
        c1 = conv1d(x_ncl[t], w1, b1)
        c1 = c1.reshape(B, C1, P1, 2).max(axis=-1)          # max_pool1d(2)
        s1, m1 = lif(c1, m1)
        c2 = conv1d(s1, w2, b2)
        c2 = c2.reshape(B, C2, P2, 2).max(axis=-1)
        s2, m2 = lif(c2, m2)
        c3 = jnp.einsum('bn,on->bo', s2.reshape(B, NH), wfc,
                        precision='highest') + bfc
        s3, m3 = lif(c3, m3)
        spk_rec.append(s3)
        mem_rec.append(m3)
    return jnp.stack(spk_rec), jnp.stack(mem_rec)


if __name__ == "__main__":
    key = jax.random.PRNGKey(0)
    ks = jax.random.split(key, 7)
    # PyTorch-layout parameters / inputs (deterministic, synthetic)
    x_ncl = jax.random.normal(ks[0], (T, B, CIN, L), jnp.float32)
    w1 = jax.random.normal(ks[1], (C1, CIN, K), jnp.float32) / (CIN * K) ** 0.5
    b1 = jax.random.normal(ks[2], (C1,), jnp.float32) * 0.1
    w2 = jax.random.normal(ks[3], (C2, C1, K), jnp.float32) / (C1 * K) ** 0.5
    b2 = jax.random.normal(ks[4], (C2,), jnp.float32) * 0.1
    wfc = jax.random.normal(ks[5], (NOUT, NH), jnp.float32) / NH ** 0.5
    bfc = jax.random.normal(ks[6], (NOUT,), jnp.float32) * 0.1

    # Round all matmul operands to bf16-representable values once and feed the SAME values to
    # both the kernel and the f32 reference, so kernel/ref only differ by accumulation order
    # (~1e-6) rather than bf16 rounding (keeps the 0/1 spike comparison stable).
    rd = lambda a: a.astype(jnp.bfloat16).astype(jnp.float32)
    x_ncl, w1, w2, wfc = rd(x_ncl), rd(w1), rd(w2), rd(wfc)

    spk3, mem3 = snn_forward(x_ncl, w1, b1, w2, b2, wfc, bfc)
    jax.block_until_ready((spk3, mem3))

    ref_spk, ref_mem = reference_forward(x_ncl, w1, b1, w2, b2, wfc, bfc)
    assert spk3.shape == (T, B, NOUT) and mem3.shape == (T, B, NOUT)
    assert bool(jnp.allclose(mem3, ref_mem, atol=2e-3, rtol=2e-3)), "mem3 mismatch"
    # spikes may only disagree where the reference membrane sits within tolerance of threshold
    near_thr = jnp.abs(ref_mem - THR) < 5e-3
    assert bool(jnp.all((spk3 == ref_spk) | near_thr)), "spk3 mismatch"
    print("KERNEL_OK")
</pallas_src>

<mosaic_0001>
module attributes {stable_mosaic.version = 11 : i64} {
  func.func @snn_kernel(%arg0: memref<4x72x75xbf16, #tpu.memory_space<vmem>>, %arg1: memref<75x128xbf16, #tpu.memory_space<vmem>>, %arg2: memref<1x128xf32, #tpu.memory_space<vmem>>, %arg3: memref<640x128xbf16, #tpu.memory_space<vmem>>, %arg4: memref<1x128xf32, #tpu.memory_space<vmem>>, %arg5: memref<896x128xbf16, #tpu.memory_space<vmem>>, %arg6: memref<1x128xf32, #tpu.memory_space<vmem>>, %arg7: memref<4x2x128xf32, #tpu.memory_space<vmem>>, %arg8: memref<4x2x128xf32, #tpu.memory_space<vmem>>) attributes {dimension_semantics = [], scalar_prefetch = 0 : i64, scratch_operands = 0 : i64, tpu.core_type = #tpu.core_type<tc>} {
    %c0 = arith.constant 0 : index
    %c0_0 = arith.constant 0 : index
    %0 = vector.load %arg1[%c0, %c0_0] : memref<75x128xbf16, #tpu.memory_space<vmem>>, vector<75x128xbf16>
    %c0_1 = arith.constant 0 : index
    %c0_2 = arith.constant 0 : index
    %1 = vector.load %arg3[%c0_1, %c0_2] : memref<640x128xbf16, #tpu.memory_space<vmem>>, vector<640x128xbf16>
    %c0_3 = arith.constant 0 : index
    %c0_4 = arith.constant 0 : index
    %2 = vector.load %arg5[%c0_3, %c0_4] : memref<896x128xbf16, #tpu.memory_space<vmem>>, vector<896x128xbf16>
    %c0_5 = arith.constant 0 : index
    %c0_6 = arith.constant 0 : index
    %3 = vector.load %arg2[%c0_5, %c0_6] : memref<1x128xf32, #tpu.memory_space<vmem>>, vector<1x128xf32>
    %c0_7 = arith.constant 0 : index
    %c0_8 = arith.constant 0 : index
    %4 = vector.load %arg4[%c0_7, %c0_8] : memref<1x128xf32, #tpu.memory_space<vmem>>, vector<1x128xf32>
    %c0_9 = arith.constant 0 : index
    %c0_10 = arith.constant 0 : index
    %5 = vector.load %arg6[%c0_9, %c0_10] : memref<1x128xf32, #tpu.memory_space<vmem>>, vector<1x128xf32>
    %cst = arith.constant 0.000000e+00 : f32
    %6 = vector.broadcast %cst : f32 to vector<36x128xf32>
    %cst_11 = arith.constant 0.000000e+00 : f32
    %7 = vector.broadcast %cst_11 : f32 to vector<31x128xf32>
    %cst_12 = arith.constant 0.000000e+00 : f32
    %8 = vector.broadcast %cst_12 : f32 to vector<2x128xf32>
    %c0_13 = arith.constant 0 : index
    %c0_14 = arith.constant 0 : index
    %c0_15 = arith.constant 0 : index
    %9 = vector.load %arg0[%c0_13, %c0_14, %c0_15] : memref<4x72x75xbf16, #tpu.memory_space<vmem>>, vector<1x72x75xbf16>
    %10 = vector.shape_cast %9 : vector<1x72x75xbf16> to vector<72x75xbf16>
    %cst_16 = arith.constant dense<0.000000e+00> : vector<72x128xf32>
    %11 = tpu.matmul %10, %0, %cst_16 {dimension_numbers = #tpu.dot_dimension_numbers<[1], [0], [0], [1], [0, 0, 1, 1], [], []>} : vector<72x75xbf16>, vector<75x128xbf16>, vector<72x128xf32> -> vector<72x128xf32>
    %12 = vector.broadcast %3 : vector<1x128xf32> to vector<72x128xf32>
    %13 = arith.addf %11, %12 : vector<72x128xf32>
    %14 = vector.extract_strided_slice %13 {offsets = [0, 0], sizes = [36, 128], strides = [1, 1]} : vector<72x128xf32> to vector<36x128xf32>
    %15 = vector.extract_strided_slice %13 {offsets = [36, 0], sizes = [36, 128], strides = [1, 1]} : vector<72x128xf32> to vector<36x128xf32>
    %16 = arith.maximumf %14, %15 : vector<36x128xf32>
    %cst_17 = arith.constant 1.000000e+00 : f32
    %17 = vector.broadcast %cst_17 : f32 to vector<36x128xf32>
    %18 = arith.cmpf ogt, %6, %17 : vector<36x128xf32>
    %19 = arith.extui %18 : vector<36x128xi1> to vector<36x128xi32>
    %20 = arith.sitofp %19 : vector<36x128xi32> to vector<36x128xf32>
    %cst_18 = arith.constant 0.699999988 : f32
    %21 = vector.broadcast %cst_18 : f32 to vector<36x128xf32>
    %22 = arith.mulf %21, %6 : vector<36x128xf32>
    %23 = arith.addf %22, %16 : vector<36x128xf32>
    %cst_19 = arith.constant 1.000000e+00 : f32
    %24 = vector.broadcast %cst_19 : f32 to vector<36x128xf32>
    %25 = arith.mulf %20, %24 : vector<36x128xf32>
    %26 = arith.subf %23, %25 : vector<36x128xf32>
    %cst_20 = arith.constant 1.000000e+00 : f32
    %27 = vector.broadcast %cst_20 : f32 to vector<36x128xf32>
    %28 = arith.cmpf ogt, %26, %27 : vector<36x128xf32>
    %29 = arith.extui %28 : vector<36x128xi1> to vector<36x128xi32>
    %30 = arith.sitofp %29 : vector<36x128xi32> to vector<36x128xf32>
    %31 = vector.extract_strided_slice %30 {offsets = [0, 0], sizes = [32, 128], strides = [1, 1]} : vector<36x128xf32> to vector<32x128xf32>
    %32 = vector.extract_strided_slice %30 {offsets = [1, 0], sizes = [32, 128], strides = [1, 1]} : vector<36x128xf32> to vector<32x128xf32>
    %33 = vector.extract_strided_slice %30 {offsets = [2, 0], sizes = [32, 128], strides = [1, 1]} : vector<36x128xf32> to vector<32x128xf32>
    %34 = vector.extract_strided_slice %30 {offsets = [3, 0], sizes = [32, 128], strides = [1, 1]} : vector<36x128xf32> to vector<32x128xf32>
    %35 = vector.extract_strided_slice %30 {offsets = [4, 0], sizes = [32, 128], strides = [1, 1]} : vector<36x128xf32> to vector<32x128xf32>
    %36 = tpu.concatenate %31, %32, %33, %34, %35 in 1 : vector<32x128xf32>, vector<32x128xf32>, vector<32x128xf32>, vector<32x128xf32>, vector<32x128xf32> -> vector<32x640xf32>
    %37 = arith.truncf %36 : vector<32x640xf32> to vector<32x640xbf16>
    %cst_21 = arith.constant dense<0.000000e+00> : vector<32x128xf32>
    %38 = tpu.matmul %37, %1, %cst_21 {dimension_numbers = #tpu.dot_dimension_numbers<[1], [0], [0], [1], [0, 0, 1, 1], [], []>} : vector<32x640xbf16>, vector<640x128xbf16>, vector<32x128xf32> -> vector<32x128xf32>
    %39 = vector.broadcast %4 : vector<1x128xf32> to vector<32x128xf32>
    %40 = arith.addf %38, %39 : vector<32x128xf32>
    %41 = vector.extract_strided_slice %40 {offsets = [0, 0], sizes = [31, 128], strides = [1, 1]} : vector<32x128xf32> to vector<31x128xf32>
    %42 = vector.extract_strided_slice %40 {offsets = [1, 0], sizes = [31, 128], strides = [1, 1]} : vector<32x128xf32> to vector<31x128xf32>
    %43 = arith.maximumf %41, %42 : vector<31x128xf32>
    %cst_22 = arith.constant 1.000000e+00 : f32
    %44 = vector.broadcast %cst_22 : f32 to vector<31x128xf32>
    %45 = arith.cmpf ogt, %7, %44 : vector<31x128xf32>
    %46 = arith.extui %45 : vector<31x128xi1> to vector<31x128xi32>
    %47 = arith.sitofp %46 : vector<31x128xi32> to vector<31x128xf32>
    %cst_23 = arith.constant 0.699999988 : f32
    %48 = vector.broadcast %cst_23 : f32 to vector<31x128xf32>
    %49 = arith.mulf %48, %7 : vector<31x128xf32>
    %50 = arith.addf %49, %43 : vector<31x128xf32>
    %cst_24 = arith.constant 1.000000e+00 : f32
    %51 = vector.broadcast %cst_24 : f32 to vector<31x128xf32>
    %52 = arith.mulf %47, %51 : vector<31x128xf32>
    %53 = arith.subf %50, %52 : vector<31x128xf32>
    %cst_25 = arith.constant 1.000000e+00 : f32
    %54 = vector.broadcast %cst_25 : f32 to vector<31x128xf32>
    %55 = arith.cmpf ogt, %53, %54 : vector<31x128xf32>
    %56 = arith.extui %55 : vector<31x128xi1> to vector<31x128xi32>
    %57 = arith.sitofp %56 : vector<31x128xi32> to vector<31x128xf32>
    %58 = vector.extract_strided_slice %57 {offsets = [0, 0], sizes = [1, 128], strides = [1, 1]} : vector<31x128xf32> to vector<1x128xf32>
    %59 = vector.extract_strided_slice %57 {offsets = [18, 0], sizes = [1, 128], strides = [1, 1]} : vector<31x128xf32> to vector<1x128xf32>
    %60 = tpu.concatenate %58, %59 in 0 : vector<1x128xf32>, vector<1x128xf32> -> vector<2x128xf32>
    %61 = vector.extract_strided_slice %57 {offsets = [2, 0], sizes = [1, 128], strides = [1, 1]} : vector<31x128xf32> to vector<1x128xf32>
    %62 = vector.extract_strided_slice %57 {offsets = [20, 0], sizes = [1, 128], strides = [1, 1]} : vector<31x128xf32> to vector<1x128xf32>
    %63 = tpu.concatenate %61, %62 in 0 : vector<1x128xf32>, vector<1x128xf32> -> vector<2x128xf32>
    %64 = vector.extract_strided_slice %57 {offsets = [4, 0], sizes = [1, 128], strides = [1, 1]} : vector<31x128xf32> to vector<1x128xf32>
    %65 = vector.extract_strided_slice %57 {offsets = [22, 0], sizes = [1, 128], strides = [1, 1]} : vector<31x128xf32> to vector<1x128xf32>
    %66 = tpu.concatenate %64, %65 in 0 : vector<1x128xf32>, vector<1x128xf32> -> vector<2x128xf32>
    %67 = vector.extract_strided_slice %57 {offsets = [6, 0], sizes = [1, 128], strides = [1, 1]} : vector<31x128xf32> to vector<1x128xf32>
    %68 = vector.extract_strided_slice %57 {offsets = [24, 0], sizes = [1, 128], strides = [1, 1]} : vector<31x128xf32> to vector<1x128xf32>
    %69 = tpu.concatenate %67, %68 in 0 : vector<1x128xf32>, vector<1x128xf32> -> vector<2x128xf32>
    %70 = vector.extract_strided_slice %57 {offsets = [8, 0], sizes = [1, 128], strides = [1, 1]} : vector<31x128xf32> to vector<1x128xf32>
    %71 = vector.extract_strided_slice %57 {offsets = [26, 0], sizes = [1, 128], strides = [1, 1]} : vector<31x128xf32> to vector<1x128xf32>
    %72 = tpu.concatenate %70, %71 in 0 : vector<1x128xf32>, vector<1x128xf32> -> vector<2x128xf32>
    %73 = vector.extract_strided_slice %57 {offsets = [10, 0], sizes = [1, 128], strides = [1, 1]} : vector<31x128xf32> to vector<1x128xf32>
    %74 = vector.extract_strided_slice %57 {offsets = [28, 0], sizes = [1, 128], strides = [1, 1]} : vector<31x128xf32> to vector<1x128xf32>
    %75 = tpu.concatenate %73, %74 in 0 : vector<1x128xf32>, vector<1x128xf32> -> vector<2x128xf32>
    %76 = vector.extract_strided_slice %57 {offsets = [12, 0], sizes = [1, 128], strides = [1, 1]} : vector<31x128xf32> to vector<1x128xf32>
    %77 = vector.extract_strided_slice %57 {offsets = [30, 0], sizes = [1, 128], strides = [1, 1]} : vector<31x128xf32> to vector<1x128xf32>
    %78 = tpu.concatenate %76, %77 in 0 : vector<1x128xf32>, vector<1x128xf32> -> vector<2x128xf32>
    %79 = tpu.concatenate %60, %63, %66, %69, %72, %75, %78 in 1 : vector<2x128xf32>, vector<2x128xf32>, vector<2x128xf32>, vector<2x128xf32>, vector<2x128xf32>, vector<2x128xf32>, vector<2x128xf32> -> vector<2x896xf32>
    %80 = arith.truncf %79 : vector<2x896xf32> to vector<2x896xbf16>
    %cst_26 = arith.constant dense<0.000000e+00> : vector<2x128xf32>
    %81 = tpu.matmul %80, %2, %cst_26 {dimension_numbers = #tpu.dot_dimension_numbers<[1], [0], [0], [1], [0, 0, 1, 1], [], []>} : vector<2x896xbf16>, vector<896x128xbf16>, vector<2x128xf32> -> vector<2x128xf32>
    %82 = vector.broadcast %5 : vector<1x128xf32> to vector<2x128xf32>
    %83 = arith.addf %81, %82 : vector<2x128xf32>
    %cst_27 = arith.constant 1.000000e+00 : f32
    %84 = vector.broadcast %cst_27 : f32 to vector<2x128xf32>
    %85 = arith.cmpf ogt, %8, %84 : vector<2x128xf32>
    %86 = arith.extui %85 : vector<2x128xi1> to vector<2x128xi32>
    %87 = arith.sitofp %86 : vector<2x128xi32> to vector<2x128xf32>
    %cst_28 = arith.constant 0.699999988 : f32
    %88 = vector.broadcast %cst_28 : f32 to vector<2x128xf32>
    %89 = arith.mulf %88, %8 : vector<2x128xf32>
    %90 = arith.addf %89, %83 : vector<2x128xf32>
    %cst_29 = arith.constant 1.000000e+00 : f32
    %91 = vector.broadcast %cst_29 : f32 to vector<2x128xf32>
    %92 = arith.mulf %87, %91 : vector<2x128xf32>
    %93 = arith.subf %90, %92 : vector<2x128xf32>
    %cst_30 = arith.constant 1.000000e+00 : f32
    %94 = vector.broadcast %cst_30 : f32 to vector<2x128xf32>
    %95 = arith.cmpf ogt, %93, %94 : vector<2x128xf32>
    %96 = arith.extui %95 : vector<2x128xi1> to vector<2x128xi32>
    %97 = arith.sitofp %96 : vector<2x128xi32> to vector<2x128xf32>
    %c0_31 = arith.constant 0 : index
    %c0_32 = arith.constant 0 : index
    %c0_33 = arith.constant 0 : index
    %98 = vector.load %arg7[%c0_31, %c0_32, %c0_33] : memref<4x2x128xf32, #tpu.memory_space<vmem>>, vector<1x2x128xf32>
    %99 = vector.shape_cast %98 : vector<1x2x128xf32> to vector<2x128xf32>
    %100 = vector.shape_cast %97 : vector<2x128xf32> to vector<1x2x128xf32>
    tpu.vector_store %arg7[%c0_31, %c0_32, %c0_33], %100 {strides = array<i32>} : memref<4x2x128xf32, #tpu.memory_space<vmem>>, vector<1x2x128xf32>,
    %c0_34 = arith.constant 0 : index
    %c0_35 = arith.constant 0 : index
    %c0_36 = arith.constant 0 : index
    %101 = vector.load %arg8[%c0_34, %c0_35, %c0_36] : memref<4x2x128xf32, #tpu.memory_space<vmem>>, vector<1x2x128xf32>
    %102 = vector.shape_cast %101 : vector<1x2x128xf32> to vector<2x128xf32>
    %103 = vector.shape_cast %93 : vector<2x128xf32> to vector<1x2x128xf32>
    tpu.vector_store %arg8[%c0_34, %c0_35, %c0_36], %103 {strides = array<i32>} : memref<4x2x128xf32, #tpu.memory_space<vmem>>, vector<1x2x128xf32>,
    %c1 = arith.constant 1 : index
    %c0_37 = arith.constant 0 : index
    %c0_38 = arith.constant 0 : index
    %104 = vector.load %arg0[%c1, %c0_37, %c0_38] : memref<4x72x75xbf16, #tpu.memory_space<vmem>>, vector<1x72x75xbf16>
    %105 = vector.shape_cast %104 : vector<1x72x75xbf16> to vector<72x75xbf16>
    %cst_39 = arith.constant dense<0.000000e+00> : vector<72x128xf32>
    %106 = tpu.matmul %105, %0, %cst_39 {dimension_numbers = #tpu.dot_dimension_numbers<[1], [0], [0], [1], [0, 0, 1, 1], [], []>} : vector<72x75xbf16>, vector<75x128xbf16>, vector<72x128xf32> -> vector<72x128xf32>
    %107 = vector.broadcast %3 : vector<1x128xf32> to vector<72x128xf32>
    %108 = arith.addf %106, %107 : vector<72x128xf32>
    %109 = vector.extract_strided_slice %108 {offsets = [0, 0], sizes = [36, 128], strides = [1, 1]} : vector<72x128xf32> to vector<36x128xf32>
    %110 = vector.extract_strided_slice %108 {offsets = [36, 0], sizes = [36, 128], strides = [1, 1]} : vector<72x128xf32> to vector<36x128xf32>
    %111 = arith.maximumf %109, %110 : vector<36x128xf32>
    %cst_40 = arith.constant 1.000000e+00 : f32
    %112 = vector.broadcast %cst_40 : f32 to vector<36x128xf32>
    %113 = arith.cmpf ogt, %26, %112 : vector<36x128xf32>
    %114 = arith.extui %113 : vector<36x128xi1> to vector<36x128xi32>
    %115 = arith.sitofp %114 : vector<36x128xi32> to vector<36x128xf32>
    %cst_41 = arith.constant 0.699999988 : f32
    %116 = vector.broadcast %cst_41 : f32 to vector<36x128xf32>
    %117 = arith.mulf %116, %26 : vector<36x128xf32>
    %118 = arith.addf %117, %111 : vector<36x128xf32>
    %cst_42 = arith.constant 1.000000e+00 : f32
    %119 = vector.broadcast %cst_42 : f32 to vector<36x128xf32>
    %120 = arith.mulf %115, %119 : vector<36x128xf32>
    %121 = arith.subf %118, %120 : vector<36x128xf32>
    %cst_43 = arith.constant 1.000000e+00 : f32
    %122 = vector.broadcast %cst_43 : f32 to vector<36x128xf32>
    %123 = arith.cmpf ogt, %121, %122 : vector<36x128xf32>
    %124 = arith.extui %123 : vector<36x128xi1> to vector<36x128xi32>
    %125 = arith.sitofp %124 : vector<36x128xi32> to vector<36x128xf32>
    %126 = vector.extract_strided_slice %125 {offsets = [0, 0], sizes = [32, 128], strides = [1, 1]} : vector<36x128xf32> to vector<32x128xf32>
    %127 = vector.extract_strided_slice %125 {offsets = [1, 0], sizes = [32, 128], strides = [1, 1]} : vector<36x128xf32> to vector<32x128xf32>
    %128 = vector.extract_strided_slice %125 {offsets = [2, 0], sizes = [32, 128], strides = [1, 1]} : vector<36x128xf32> to vector<32x128xf32>
    %129 = vector.extract_strided_slice %125 {offsets = [3, 0], sizes = [32, 128], strides = [1, 1]} : vector<36x128xf32> to vector<32x128xf32>
    %130 = vector.extract_strided_slice %125 {offsets = [4, 0], sizes = [32, 128], strides = [1, 1]} : vector<36x128xf32> to vector<32x128xf32>
    %131 = tpu.concatenate %126, %127, %128, %129, %130 in 1 : vector<32x128xf32>, vector<32x128xf32>, vector<32x128xf32>, vector<32x128xf32>, vector<32x128xf32> -> vector<32x640xf32>
    %132 = arith.truncf %131 : vector<32x640xf32> to vector<32x640xbf16>
    %cst_44 = arith.constant dense<0.000000e+00> : vector<32x128xf32>
    %133 = tpu.matmul %132, %1, %cst_44 {dimension_numbers = #tpu.dot_dimension_numbers<[1], [0], [0], [1], [0, 0, 1, 1], [], []>} : vector<32x640xbf16>, vector<640x128xbf16>, vector<32x128xf32> -> vector<32x128xf32>
    %134 = vector.broadcast %4 : vector<1x128xf32> to vector<32x128xf32>
    %135 = arith.addf %133, %134 : vector<32x128xf32>
    %136 = vector.extract_strided_slice %135 {offsets = [0, 0], sizes = [31, 128], strides = [1, 1]} : vector<32x128xf32> to vector<31x128xf32>
    %137 = vector.extract_strided_slice %135 {offsets = [1, 0], sizes = [31, 128], strides = [1, 1]} : vector<32x128xf32> to vector<31x128xf32>
    %138 = arith.maximumf %136, %137 : vector<31x128xf32>
    %cst_45 = arith.constant 1.000000e+00 : f32
    %139 = vector.broadcast %cst_45 : f32 to vector<31x128xf32>
    %140 = arith.cmpf ogt, %53, %139 : vector<31x128xf32>
    %141 = arith.extui %140 : vector<31x128xi1> to vector<31x128xi32>
    %142 = arith.sitofp %141 : vector<31x128xi32> to vector<31x128xf32>
    %cst_46 = arith.constant 0.699999988 : f32
    %143 = vector.broadcast %cst_46 : f32 to vector<31x128xf32>
    %144 = arith.mulf %143, %53 : vector<31x128xf32>
    %145 = arith.addf %144, %138 : vector<31x128xf32>
    %cst_47 = arith.constant 1.000000e+00 : f32
    %146 = vector.broadcast %cst_47 : f32 to vector<31x128xf32>
    %147 = arith.mulf %142, %146 : vector<31x128xf32>
    %148 = arith.subf %145, %147 : vector<31x128xf32>
    %cst_48 = arith.constant 1.000000e+00 : f32
    %149 = vector.broadcast %cst_48 : f32 to vector<31x128xf32>
    %150 = arith.cmpf ogt, %148, %149 : vector<31x128xf32>
    %151 = arith.extui %150 : vector<31x128xi1> to vector<31x128xi32>
    %152 = arith.sitofp %151 : vector<31x128xi32> to vector<31x128xf32>
    %153 = vector.extract_strided_slice %152 {offsets = [0, 0], sizes = [1, 128], strides = [1, 1]} : vector<31x128xf32> to vector<1x128xf32>
    %154 = vector.extract_strided_slice %152 {offsets = [18, 0], sizes = [1, 128], strides = [1, 1]} : vector<31x128xf32> to vector<1x128xf32>
    %155 = tpu.concatenate %153, %154 in 0 : vector<1x128xf32>, vector<1x128xf32> -> vector<2x128xf32>
    %156 = vector.extract_strided_slice %152 {offsets = [2, 0], sizes = [1, 128], strides = [1, 1]} : vector<31x128xf32> to vector<1x128xf32>
    %157 = vector.extract_strided_slice %152 {offsets = [20, 0], sizes = [1, 128], strides = [1, 1]} : vector<31x128xf32> to vector<1x128xf32>
    %158 = tpu.concatenate %156, %157 in 0 : vector<1x128xf32>, vector<1x128xf32> -> vector<2x128xf32>
    %159 = vector.extract_strided_slice %152 {offsets = [4, 0], sizes = [1, 128], strides = [1, 1]} : vector<31x128xf32> to vector<1x128xf32>
    %160 = vector.extract_strided_slice %152 {offsets = [22, 0], sizes = [1, 128], strides = [1, 1]} : vector<31x128xf32> to vector<1x128xf32>
    %161 = tpu.concatenate %159, %160 in 0 : vector<1x128xf32>, vector<1x128xf32> -> vector<2x128xf32>
    %162 = vector.extract_strided_slice %152 {offsets = [6, 0], sizes = [1, 128], strides = [1, 1]} : vector<31x128xf32> to vector<1x128xf32>
    %163 = vector.extract_strided_slice %152 {offsets = [24, 0], sizes = [1, 128], strides = [1, 1]} : vector<31x128xf32> to vector<1x128xf32>
    %164 = tpu.concatenate %162, %163 in 0 : vector<1x128xf32>, vector<1x128xf32> -> vector<2x128xf32>
    %165 = vector.extract_strided_slice %152 {offsets = [8, 0], sizes = [1, 128], strides = [1, 1]} : vector<31x128xf32> to vector<1x128xf32>
    %166 = vector.extract_strided_slice %152 {offsets = [26, 0], sizes = [1, 128], strides = [1, 1]} : vector<31x128xf32> to vector<1x128xf32>
    %167 = tpu.concatenate %165, %166 in 0 : vector<1x128xf32>, vector<1x128xf32> -> vector<2x128xf32>
    %168 = vector.extract_strided_slice %152 {offsets = [10, 0], sizes = [1, 128], strides = [1, 1]} : vector<31x128xf32> to vector<1x128xf32>
    %169 = vector.extract_strided_slice %152 {offsets = [28, 0], sizes = [1, 128], strides = [1, 1]} : vector<31x128xf32> to vector<1x128xf32>
    %170 = tpu.concatenate %168, %169 in 0 : vector<1x128xf32>, vector<1x128xf32> -> vector<2x128xf32>
    %171 = vector.extract_strided_slice %152 {offsets = [12, 0], sizes = [1, 128], strides = [1, 1]} : vector<31x128xf32> to vector<1x128xf32>
    %172 = vector.extract_strided_slice %152 {offsets = [30, 0], sizes = [1, 128], strides = [1, 1]} : vector<31x128xf32> to vector<1x128xf32>
    %173 = tpu.concatenate %171, %172 in 0 : vector<1x128xf32>, vector<1x128xf32> -> vector<2x128xf32>
    %174 = tpu.concatenate %155, %158, %161, %164, %167, %170, %173 in 1 : vector<2x128xf32>, vector<2x128xf32>, vector<2x128xf32>, vector<2x128xf32>, vector<2x128xf32>, vector<2x128xf32>, vector<2x128xf32> -> vector<2x896xf32>
    %175 = arith.truncf %174 : vector<2x896xf32> to vector<2x896xbf16>
    %cst_49 = arith.constant dense<0.000000e+00> : vector<2x128xf32>
    %176 = tpu.matmul %175, %2, %cst_49 {dimension_numbers = #tpu.dot_dimension_numbers<[1], [0], [0], [1], [0, 0, 1, 1], [], []>} : vector<2x896xbf16>, vector<896x128xbf16>, vector<2x128xf32> -> vector<2x128xf32>
    %177 = vector.broadcast %5 : vector<1x128xf32> to vector<2x128xf32>
    %178 = arith.addf %176, %177 : vector<2x128xf32>
    %cst_50 = arith.constant 1.000000e+00 : f32
    %179 = vector.broadcast %cst_50 : f32 to vector<2x128xf32>
    %180 = arith.cmpf ogt, %93, %179 : vector<2x128xf32>
    %181 = arith.extui %180 : vector<2x128xi1> to vector<2x128xi32>
    %182 = arith.sitofp %181 : vector<2x128xi32> to vector<2x128xf32>
    %cst_51 = arith.constant 0.699999988 : f32
    %183 = vector.broadcast %cst_51 : f32 to vector<2x128xf32>
    %184 = arith.mulf %183, %93 : vector<2x128xf32>
    %185 = arith.addf %184, %178 : vector<2x128xf32>
    %cst_52 = arith.constant 1.000000e+00 : f32
    %186 = vector.broadcast %cst_52 : f32 to vector<2x128xf32>
    %187 = arith.mulf %182, %186 : vector<2x128xf32>
    %188 = arith.subf %185, %187 : vector<2x128xf32>
    %cst_53 = arith.constant 1.000000e+00 : f32
    %189 = vector.broadcast %cst_53 : f32 to vector<2x128xf32>
    %190 = arith.cmpf ogt, %188, %189 : vector<2x128xf32>
    %191 = arith.extui %190 : vector<2x128xi1> to vector<2x128xi32>
    %192 = arith.sitofp %191 : vector<2x128xi32> to vector<2x128xf32>
    %c1_54 = arith.constant 1 : index
    %c0_55 = arith.constant 0 : index
    %c0_56 = arith.constant 0 : index
    %193 = vector.load %arg7[%c1_54, %c0_55, %c0_56] : memref<4x2x128xf32, #tpu.memory_space<vmem>>, vector<1x2x128xf32>
    %194 = vector.shape_cast %193 : vector<1x2x128xf32> to vector<2x128xf32>
    %195 = vector.shape_cast %192 : vector<2x128xf32> to vector<1x2x128xf32>
    tpu.vector_store %arg7[%c1_54, %c0_55, %c0_56], %195 {strides = array<i32>} : memref<4x2x128xf32, #tpu.memory_space<vmem>>, vector<1x2x128xf32>,
    %c1_57 = arith.constant 1 : index
    %c0_58 = arith.constant 0 : index
    %c0_59 = arith.constant 0 : index
    %196 = vector.load %arg8[%c1_57, %c0_58, %c0_59] : memref<4x2x128xf32, #tpu.memory_space<vmem>>, vector<1x2x128xf32>
    %197 = vector.shape_cast %196 : vector<1x2x128xf32> to vector<2x128xf32>
    %198 = vector.shape_cast %188 : vector<2x128xf32> to vector<1x2x128xf32>
    tpu.vector_store %arg8[%c1_57, %c0_58, %c0_59], %198 {strides = array<i32>} : memref<4x2x128xf32, #tpu.memory_space<vmem>>, vector<1x2x128xf32>,
    %c2 = arith.constant 2 : index
    %c0_60 = arith.constant 0 : index
    %c0_61 = arith.constant 0 : index
    %199 = vector.load %arg0[%c2, %c0_60, %c0_61] : memref<4x72x75xbf16, #tpu.memory_space<vmem>>, vector<1x72x75xbf16>
    %200 = vector.shape_cast %199 : vector<1x72x75xbf16> to vector<72x75xbf16>
    %cst_62 = arith.constant dense<0.000000e+00> : vector<72x128xf32>
    %201 = tpu.matmul %200, %0, %cst_62 {dimension_numbers = #tpu.dot_dimension_numbers<[1], [0], [0], [1], [0, 0, 1, 1], [], []>} : vector<72x75xbf16>, vector<75x128xbf16>, vector<72x128xf32> -> vector<72x128xf32>
    %202 = vector.broadcast %3 : vector<1x128xf32> to vector<72x128xf32>
    %203 = arith.addf %201, %202 : vector<72x128xf32>
    %204 = vector.extract_strided_slice %203 {offsets = [0, 0], sizes = [36, 128], strides = [1, 1]} : vector<72x128xf32> to vector<36x128xf32>
    %205 = vector.extract_strided_slice %203 {offsets = [36, 0], sizes = [36, 128], strides = [1, 1]} : vector<72x128xf32> to vector<36x128xf32>
    %206 = arith.maximumf %204, %205 : vector<36x128xf32>
    %cst_63 = arith.constant 1.000000e+00 : f32
    %207 = vector.broadcast %cst_63 : f32 to vector<36x128xf32>
    %208 = arith.cmpf ogt, %121, %207 : vector<36x128xf32>
    %209 = arith.extui %208 : vector<36x128xi1> to vector<36x128xi32>
    %210 = arith.sitofp %209 : vector<36x128xi32> to vector<36x128xf32>
    %cst_64 = arith.constant 0.699999988 : f32
    %211 = vector.broadcast %cst_64 : f32 to vector<36x128xf32>
    %212 = arith.mulf %211, %121 : vector<36x128xf32>
    %213 = arith.addf %212, %206 : vector<36x128xf32>
    %cst_65 = arith.constant 1.000000e+00 : f32
    %214 = vector.broadcast %cst_65 : f32 to vector<36x128xf32>
    %215 = arith.mulf %210, %214 : vector<36x128xf32>
    %216 = arith.subf %213, %215 : vector<36x128xf32>
    %cst_66 = arith.constant 1.000000e+00 : f32
    %217 = vector.broadcast %cst_66 : f32 to vector<36x128xf32>
    %218 = arith.cmpf ogt, %216, %217 : vector<36x128xf32>
    %219 = arith.extui %218 : vector<36x128xi1> to vector<36x128xi32>
    %220 = arith.sitofp %219 : vector<36x128xi32> to vector<36x128xf32>
    %221 = vector.extract_strided_slice %220 {offsets = [0, 0], sizes = [32, 128], strides = [1, 1]} : vector<36x128xf32> to vector<32x128xf32>
    %222 = vector.extract_strided_slice %220 {offsets = [1, 0], sizes = [32, 128], strides = [1, 1]} : vector<36x128xf32> to vector<32x128xf32>
    %223 = vector.extract_strided_slice %220 {offsets = [2, 0], sizes = [32, 128], strides = [1, 1]} : vector<36x128xf32> to vector<32x128xf32>
    %224 = vector.extract_strided_slice %220 {offsets = [3, 0], sizes = [32, 128], strides = [1, 1]} : vector<36x128xf32> to vector<32x128xf32>
    %225 = vector.extract_strided_slice %220 {offsets = [4, 0], sizes = [32, 128], strides = [1, 1]} : vector<36x128xf32> to vector<32x128xf32>
    %226 = tpu.concatenate %221, %222, %223, %224, %225 in 1 : vector<32x128xf32>, vector<32x128xf32>, vector<32x128xf32>, vector<32x128xf32>, vector<32x128xf32> -> vector<32x640xf32>
    %227 = arith.truncf %226 : vector<32x640xf32> to vector<32x640xbf16>
    %cst_67 = arith.constant dense<0.000000e+00> : vector<32x128xf32>
    %228 = tpu.matmul %227, %1, %cst_67 {dimension_numbers = #tpu.dot_dimension_numbers<[1], [0], [0], [1], [0, 0, 1, 1], [], []>} : vector<32x640xbf16>, vector<640x128xbf16>, vector<32x128xf32> -> vector<32x128xf32>
    %229 = vector.broadcast %4 : vector<1x128xf32> to vector<32x128xf32>
    %230 = arith.addf %228, %229 : vector<32x128xf32>
    %231 = vector.extract_strided_slice %230 {offsets = [0, 0], sizes = [31, 128], strides = [1, 1]} : vector<32x128xf32> to vector<31x128xf32>
    %232 = vector.extract_strided_slice %230 {offsets = [1, 0], sizes = [31, 128], strides = [1, 1]} : vector<32x128xf32> to vector<31x128xf32>
    %233 = arith.maximumf %231, %232 : vector<31x128xf32>
    %cst_68 = arith.constant 1.000000e+00 : f32
    %234 = vector.broadcast %cst_68 : f32 to vector<31x128xf32>
    %235 = arith.cmpf ogt, %148, %234 : vector<31x128xf32>
    %236 = arith.extui %235 : vector<31x128xi1> to vector<31x128xi32>
    %237 = arith.sitofp %236 : vector<31x128xi32> to vector<31x128xf32>
    %cst_69 = arith.constant 0.699999988 : f32
    %238 = vector.broadcast %cst_69 : f32 to vector<31x128xf32>
    %239 = arith.mulf %238, %148 : vector<31x128xf32>
    %240 = arith.addf %239, %233 : vector<31x128xf32>
    %cst_70 = arith.constant 1.000000e+00 : f32
    %241 = vector.broadcast %cst_70 : f32 to vector<31x128xf32>
    %242 = arith.mulf %237, %241 : vector<31x128xf32>
    %243 = arith.subf %240, %242 : vector<31x128xf32>
    %cst_71 = arith.constant 1.000000e+00 : f32
    %244 = vector.broadcast %cst_71 : f32 to vector<31x128xf32>
    %245 = arith.cmpf ogt, %243, %244 : vector<31x128xf32>
    %246 = arith.extui %245 : vector<31x128xi1> to vector<31x128xi32>
    %247 = arith.sitofp %246 : vector<31x128xi32> to vector<31x128xf32>
    %248 = vector.extract_strided_slice %247 {offsets = [0, 0], sizes = [1, 128], strides = [1, 1]} : vector<31x128xf32> to vector<1x128xf32>
    %249 = vector.extract_strided_slice %247 {offsets = [18, 0], sizes = [1, 128], strides = [1, 1]} : vector<31x128xf32> to vector<1x128xf32>
    %250 = tpu.concatenate %248, %249 in 0 : vector<1x128xf32>, vector<1x128xf32> -> vector<2x128xf32>
    %251 = vector.extract_strided_slice %247 {offsets = [2, 0], sizes = [1, 128], strides = [1, 1]} : vector<31x128xf32> to vector<1x128xf32>
    %252 = vector.extract_strided_slice %247 {offsets = [20, 0], sizes = [1, 128], strides = [1, 1]} : vector<31x128xf32> to vector<1x128xf32>
    %253 = tpu.concatenate %251, %252 in 0 : vector<1x128xf32>, vector<1x128xf32> -> vector<2x128xf32>
    %254 = vector.extract_strided_slice %247 {offsets = [4, 0], sizes = [1, 128], strides = [1, 1]} : vector<31x128xf32> to vector<1x128xf32>
    %255 = vector.extract_strided_slice %247 {offsets = [22, 0], sizes = [1, 128], strides = [1, 1]} : vector<31x128xf32> to vector<1x128xf32>
    %256 = tpu.concatenate %254, %255 in 0 : vector<1x128xf32>, vector<1x128xf32> -> vector<2x128xf32>
    %257 = vector.extract_strided_slice %247 {offsets = [6, 0], sizes = [1, 128], strides = [1, 1]} : vector<31x128xf32> to vector<1x128xf32>
    %258 = vector.extract_strided_slice %247 {offsets = [24, 0], sizes = [1, 128], strides = [1, 1]} : vector<31x128xf32> to vector<1x128xf32>
    %259 = tpu.concatenate %257, %258 in 0 : vector<1x128xf32>, vector<1x128xf32> -> vector<2x128xf32>
    %260 = vector.extract_strided_slice %247 {offsets = [8, 0], sizes = [1, 128], strides = [1, 1]} : vector<31x128xf32> to vector<1x128xf32>
    %261 = vector.extract_strided_slice %247 {offsets = [26, 0], sizes = [1, 128], strides = [1, 1]} : vector<31x128xf32> to vector<1x128xf32>
    %262 = tpu.concatenate %260, %261 in 0 : vector<1x128xf32>, vector<1x128xf32> -> vector<2x128xf32>
    %263 = vector.extract_strided_slice %247 {offsets = [10, 0], sizes = [1, 128], strides = [1, 1]} : vector<31x128xf32> to vector<1x128xf32>
    %264 = vector.extract_strided_slice %247 {offsets = [28, 0], sizes = [1, 128], strides = [1, 1]} : vector<31x128xf32> to vector<1x128xf32>
    %265 = tpu.concatenate %263, %264 in 0 : vector<1x128xf32>, vector<1x128xf32> -> vector<2x128xf32>
    %266 = vector.extract_strided_slice %247 {offsets = [12, 0], sizes = [1, 128], strides = [1, 1]} : vector<31x128xf32> to vector<1x128xf32>
    %267 = vector.extract_strided_slice %247 {offsets = [30, 0], sizes = [1, 128], strides = [1, 1]} : vector<31x128xf32> to vector<1x128xf32>
    %268 = tpu.concatenate %266, %267 in 0 : vector<1x128xf32>, vector<1x128xf32> -> vector<2x128xf32>
    %269 = tpu.concatenate %250, %253, %256, %259, %262, %265, %268 in 1 : vector<2x128xf32>, vector<2x128xf32>, vector<2x128xf32>, vector<2x128xf32>, vector<2x128xf32>, vector<2x128xf32>, vector<2x128xf32> -> vector<2x896xf32>
    %270 = arith.truncf %269 : vector<2x896xf32> to vector<2x896xbf16>
    %cst_72 = arith.constant dense<0.000000e+00> : vector<2x128xf32>
    %271 = tpu.matmul %270, %2, %cst_72 {dimension_numbers = #tpu.dot_dimension_numbers<[1], [0], [0], [1], [0, 0, 1, 1], [], []>} : vector<2x896xbf16>, vector<896x128xbf16>, vector<2x128xf32> -> vector<2x128xf32>
    %272 = vector.broadcast %5 : vector<1x128xf32> to vector<2x128xf32>
    %273 = arith.addf %271, %272 : vector<2x128xf32>
    %cst_73 = arith.constant 1.000000e+00 : f32
    %274 = vector.broadcast %cst_73 : f32 to vector<2x128xf32>
    %275 = arith.cmpf ogt, %188, %274 : vector<2x128xf32>
    %276 = arith.extui %275 : vector<2x128xi1> to vector<2x128xi32>
    %277 = arith.sitofp %276 : vector<2x128xi32> to vector<2x128xf32>
    %cst_74 = arith.constant 0.699999988 : f32
    %278 = vector.broadcast %cst_74 : f32 to vector<2x128xf32>
    %279 = arith.mulf %278, %188 : vector<2x128xf32>
    %280 = arith.addf %279, %273 : vector<2x128xf32>
    %cst_75 = arith.constant 1.000000e+00 : f32
    %281 = vector.broadcast %cst_75 : f32 to vector<2x128xf32>
    %282 = arith.mulf %277, %281 : vector<2x128xf32>
    %283 = arith.subf %280, %282 : vector<2x128xf32>
    %cst_76 = arith.constant 1.000000e+00 : f32
    %284 = vector.broadcast %cst_76 : f32 to vector<2x128xf32>
    %285 = arith.cmpf ogt, %283, %284 : vector<2x128xf32>
    %286 = arith.extui %285 : vector<2x128xi1> to vector<2x128xi32>
    %287 = arith.sitofp %286 : vector<2x128xi32> to vector<2x128xf32>
    %c2_77 = arith.constant 2 : index
    %c0_78 = arith.constant 0 : index
    %c0_79 = arith.constant 0 : index
    %288 = vector.load %arg7[%c2_77, %c0_78, %c0_79] : memref<4x2x128xf32, #tpu.memory_space<vmem>>, vector<1x2x128xf32>
    %289 = vector.shape_cast %288 : vector<1x2x128xf32> to vector<2x128xf32>
    %290 = vector.shape_cast %287 : vector<2x128xf32> to vector<1x2x128xf32>
    tpu.vector_store %arg7[%c2_77, %c0_78, %c0_79], %290 {strides = array<i32>} : memref<4x2x128xf32, #tpu.memory_space<vmem>>, vector<1x2x128xf32>,
    %c2_80 = arith.constant 2 : index
    %c0_81 = arith.constant 0 : index
    %c0_82 = arith.constant 0 : index
    %291 = vector.load %arg8[%c2_80, %c0_81, %c0_82] : memref<4x2x128xf32, #tpu.memory_space<vmem>>, vector<1x2x128xf32>
    %292 = vector.shape_cast %291 : vector<1x2x128xf32> to vector<2x128xf32>
    %293 = vector.shape_cast %283 : vector<2x128xf32> to vector<1x2x128xf32>
    tpu.vector_store %arg8[%c2_80, %c0_81, %c0_82], %293 {strides = array<i32>} : memref<4x2x128xf32, #tpu.memory_space<vmem>>, vector<1x2x128xf32>,
    %c3 = arith.constant 3 : index
    %c0_83 = arith.constant 0 : index
    %c0_84 = arith.constant 0 : index
    %294 = vector.load %arg0[%c3, %c0_83, %c0_84] : memref<4x72x75xbf16, #tpu.memory_space<vmem>>, vector<1x72x75xbf16>
    %295 = vector.shape_cast %294 : vector<1x72x75xbf16> to vector<72x75xbf16>
    %cst_85 = arith.constant dense<0.000000e+00> : vector<72x128xf32>
    %296 = tpu.matmul %295, %0, %cst_85 {dimension_numbers = #tpu.dot_dimension_numbers<[1], [0], [0], [1], [0, 0, 1, 1], [], []>} : vector<72x75xbf16>, vector<75x128xbf16>, vector<72x128xf32> -> vector<72x128xf32>
    %297 = vector.broadcast %3 : vector<1x128xf32> to vector<72x128xf32>
    %298 = arith.addf %296, %297 : vector<72x128xf32>
    %299 = vector.extract_strided_slice %298 {offsets = [0, 0], sizes = [36, 128], strides = [1, 1]} : vector<72x128xf32> to vector<36x128xf32>
    %300 = vector.extract_strided_slice %298 {offsets = [36, 0], sizes = [36, 128], strides = [1, 1]} : vector<72x128xf32> to vector<36x128xf32>
    %301 = arith.maximumf %299, %300 : vector<36x128xf32>
    %cst_86 = arith.constant 1.000000e+00 : f32
    %302 = vector.broadcast %cst_86 : f32 to vector<36x128xf32>
    %303 = arith.cmpf ogt, %216, %302 : vector<36x128xf32>
    %304 = arith.extui %303 : vector<36x128xi1> to vector<36x128xi32>
    %305 = arith.sitofp %304 : vector<36x128xi32> to vector<36x128xf32>
    %cst_87 = arith.constant 0.699999988 : f32
    %306 = vector.broadcast %cst_87 : f32 to vector<36x128xf32>
    %307 = arith.mulf %306, %216 : vector<36x128xf32>
    %308 = arith.addf %307, %301 : vector<36x128xf32>
    %cst_88 = arith.constant 1.000000e+00 : f32
    %309 = vector.broadcast %cst_88 : f32 to vector<36x128xf32>
    %310 = arith.mulf %305, %309 : vector<36x128xf32>
    %311 = arith.subf %308, %310 : vector<36x128xf32>
    %cst_89 = arith.constant 1.000000e+00 : f32
    %312 = vector.broadcast %cst_89 : f32 to vector<36x128xf32>
    %313 = arith.cmpf ogt, %311, %312 : vector<36x128xf32>
    %314 = arith.extui %313 : vector<36x128xi1> to vector<36x128xi32>
    %315 = arith.sitofp %314 : vector<36x128xi32> to vector<36x128xf32>
    %316 = vector.extract_strided_slice %315 {offsets = [0, 0], sizes = [32, 128], strides = [1, 1]} : vector<36x128xf32> to vector<32x128xf32>
    %317 = vector.extract_strided_slice %315 {offsets = [1, 0], sizes = [32, 128], strides = [1, 1]} : vector<36x128xf32> to vector<32x128xf32>
    %318 = vector.extract_strided_slice %315 {offsets = [2, 0], sizes = [32, 128], strides = [1, 1]} : vector<36x128xf32> to vector<32x128xf32>
    %319 = vector.extract_strided_slice %315 {offsets = [3, 0], sizes = [32, 128], strides = [1, 1]} : vector<36x128xf32> to vector<32x128xf32>
    %320 = vector.extract_strided_slice %315 {offsets = [4, 0], sizes = [32, 128], strides = [1, 1]} : vector<36x128xf32> to vector<32x128xf32>
    %321 = tpu.concatenate %316, %317, %318, %319, %320 in 1 : vector<32x128xf32>, vector<32x128xf32>, vector<32x128xf32>, vector<32x128xf32>, vector<32x128xf32> -> vector<32x640xf32>
    %322 = arith.truncf %321 : vector<32x640xf32> to vector<32x640xbf16>
    %cst_90 = arith.constant dense<0.000000e+00> : vector<32x128xf32>
    %323 = tpu.matmul %322, %1, %cst_90 {dimension_numbers = #tpu.dot_dimension_numbers<[1], [0], [0], [1], [0, 0, 1, 1], [], []>} : vector<32x640xbf16>, vector<640x128xbf16>, vector<32x128xf32> -> vector<32x128xf32>
    %324 = vector.broadcast %4 : vector<1x128xf32> to vector<32x128xf32>
    %325 = arith.addf %323, %324 : vector<32x128xf32>
    %326 = vector.extract_strided_slice %325 {offsets = [0, 0], sizes = [31, 128], strides = [1, 1]} : vector<32x128xf32> to vector<31x128xf32>
    %327 = vector.extract_strided_slice %325 {offsets = [1, 0], sizes = [31, 128], strides = [1, 1]} : vector<32x128xf32> to vector<31x128xf32>
    %328 = arith.maximumf %326, %327 : vector<31x128xf32>
    %cst_91 = arith.constant 1.000000e+00 : f32
    %329 = vector.broadcast %cst_91 : f32 to vector<31x128xf32>
    %330 = arith.cmpf ogt, %243, %329 : vector<31x128xf32>
    %331 = arith.extui %330 : vector<31x128xi1> to vector<31x128xi32>
    %332 = arith.sitofp %331 : vector<31x128xi32> to vector<31x128xf32>
    %cst_92 = arith.constant 0.699999988 : f32
    %333 = vector.broadcast %cst_92 : f32 to vector<31x128xf32>
    %334 = arith.mulf %333, %243 : vector<31x128xf32>
    %335 = arith.addf %334, %328 : vector<31x128xf32>
    %cst_93 = arith.constant 1.000000e+00 : f32
    %336 = vector.broadcast %cst_93 : f32 to vector<31x128xf32>
    %337 = arith.mulf %332, %336 : vector<31x128xf32>
    %338 = arith.subf %335, %337 : vector<31x128xf32>
    %cst_94 = arith.constant 1.000000e+00 : f32
    %339 = vector.broadcast %cst_94 : f32 to vector<31x128xf32>
    %340 = arith.cmpf ogt, %338, %339 : vector<31x128xf32>
    %341 = arith.extui %340 : vector<31x128xi1> to vector<31x128xi32>
    %342 = arith.sitofp %341 : vector<31x128xi32> to vector<31x128xf32>
    %343 = vector.extract_strided_slice %342 {offsets = [0, 0], sizes = [1, 128], strides = [1, 1]} : vector<31x128xf32> to vector<1x128xf32>
    %344 = vector.extract_strided_slice %342 {offsets = [18, 0], sizes = [1, 128], strides = [1, 1]} : vector<31x128xf32> to vector<1x128xf32>
    %345 = tpu.concatenate %343, %344 in 0 : vector<1x128xf32>, vector<1x128xf32> -> vector<2x128xf32>
    %346 = vector.extract_strided_slice %342 {offsets = [2, 0], sizes = [1, 128], strides = [1, 1]} : vector<31x128xf32> to vector<1x128xf32>
    %347 = vector.extract_strided_slice %342 {offsets = [20, 0], sizes = [1, 128], strides = [1, 1]} : vector<31x128xf32> to vector<1x128xf32>
    %348 = tpu.concatenate %346, %347 in 0 : vector<1x128xf32>, vector<1x128xf32> -> vector<2x128xf32>
    %349 = vector.extract_strided_slice %342 {offsets = [4, 0], sizes = [1, 128], strides = [1, 1]} : vector<31x128xf32> to vector<1x128xf32>
    %350 = vector.extract_strided_slice %342 {offsets = [22, 0], sizes = [1, 128], strides = [1, 1]} : vector<31x128xf32> to vector<1x128xf32>
    %351 = tpu.concatenate %349, %350 in 0 : vector<1x128xf32>, vector<1x128xf32> -> vector<2x128xf32>
    %352 = vector.extract_strided_slice %342 {offsets = [6, 0], sizes = [1, 128], strides = [1, 1]} : vector<31x128xf32> to vector<1x128xf32>
    %353 = vector.extract_strided_slice %342 {offsets = [24, 0], sizes = [1, 128], strides = [1, 1]} : vector<31x128xf32> to vector<1x128xf32>
    %354 = tpu.concatenate %352, %353 in 0 : vector<1x128xf32>, vector<1x128xf32> -> vector<2x128xf32>
    %355 = vector.extract_strided_slice %342 {offsets = [8, 0], sizes = [1, 128], strides = [1, 1]} : vector<31x128xf32> to vector<1x128xf32>
    %356 = vector.extract_strided_slice %342 {offsets = [26, 0], sizes = [1, 128], strides = [1, 1]} : vector<31x128xf32> to vector<1x128xf32>
    %357 = tpu.concatenate %355, %356 in 0 : vector<1x128xf32>, vector<1x128xf32> -> vector<2x128xf32>
    %358 = vector.extract_strided_slice %342 {offsets = [10, 0], sizes = [1, 128], strides = [1, 1]} : vector<31x128xf32> to vector<1x128xf32>
    %359 = vector.extract_strided_slice %342 {offsets = [28, 0], sizes = [1, 128], strides = [1, 1]} : vector<31x128xf32> to vector<1x128xf32>
    %360 = tpu.concatenate %358, %359 in 0 : vector<1x128xf32>, vector<1x128xf32> -> vector<2x128xf32>
    %361 = vector.extract_strided_slice %342 {offsets = [12, 0], sizes = [1, 128], strides = [1, 1]} : vector<31x128xf32> to vector<1x128xf32>
    %362 = vector.extract_strided_slice %342 {offsets = [30, 0], sizes = [1, 128], strides = [1, 1]} : vector<31x128xf32> to vector<1x128xf32>
    %363 = tpu.concatenate %361, %362 in 0 : vector<1x128xf32>, vector<1x128xf32> -> vector<2x128xf32>
    %364 = tpu.concatenate %345, %348, %351, %354, %357, %360, %363 in 1 : vector<2x128xf32>, vector<2x128xf32>, vector<2x128xf32>, vector<2x128xf32>, vector<2x128xf32>, vector<2x128xf32>, vector<2x128xf32> -> vector<2x896xf32>
    %365 = arith.truncf %364 : vector<2x896xf32> to vector<2x896xbf16>
    %cst_95 = arith.constant dense<0.000000e+00> : vector<2x128xf32>
    %366 = tpu.matmul %365, %2, %cst_95 {dimension_numbers = #tpu.dot_dimension_numbers<[1], [0], [0], [1], [0, 0, 1, 1], [], []>} : vector<2x896xbf16>, vector<896x128xbf16>, vector<2x128xf32> -> vector<2x128xf32>
    %367 = vector.broadcast %5 : vector<1x128xf32> to vector<2x128xf32>
    %368 = arith.addf %366, %367 : vector<2x128xf32>
    %cst_96 = arith.constant 1.000000e+00 : f32
    %369 = vector.broadcast %cst_96 : f32 to vector<2x128xf32>
    %370 = arith.cmpf ogt, %283, %369 : vector<2x128xf32>
    %371 = arith.extui %370 : vector<2x128xi1> to vector<2x128xi32>
    %372 = arith.sitofp %371 : vector<2x128xi32> to vector<2x128xf32>
    %cst_97 = arith.constant 0.699999988 : f32
    %373 = vector.broadcast %cst_97 : f32 to vector<2x128xf32>
    %374 = arith.mulf %373, %283 : vector<2x128xf32>
    %375 = arith.addf %374, %368 : vector<2x128xf32>
    %cst_98 = arith.constant 1.000000e+00 : f32
    %376 = vector.broadcast %cst_98 : f32 to vector<2x128xf32>
    %377 = arith.mulf %372, %376 : vector<2x128xf32>
    %378 = arith.subf %375, %377 : vector<2x128xf32>
    %cst_99 = arith.constant 1.000000e+00 : f32
    %379 = vector.broadcast %cst_99 : f32 to vector<2x128xf32>
    %380 = arith.cmpf ogt, %378, %379 : vector<2x128xf32>
    %381 = arith.extui %380 : vector<2x128xi1> to vector<2x128xi32>
    %382 = arith.sitofp %381 : vector<2x128xi32> to vector<2x128xf32>
    %c3_100 = arith.constant 3 : index
    %c0_101 = arith.constant 0 : index
    %c0_102 = arith.constant 0 : index
    %383 = vector.load %arg7[%c3_100, %c0_101, %c0_102] : memref<4x2x128xf32, #tpu.memory_space<vmem>>, vector<1x2x128xf32>
    %384 = vector.shape_cast %383 : vector<1x2x128xf32> to vector<2x128xf32>
    %385 = vector.shape_cast %382 : vector<2x128xf32> to vector<1x2x128xf32>
    tpu.vector_store %arg7[%c3_100, %c0_101, %c0_102], %385 {strides = array<i32>} : memref<4x2x128xf32, #tpu.memory_space<vmem>>, vector<1x2x128xf32>,
    %c3_103 = arith.constant 3 : index
    %c0_104 = arith.constant 0 : index
    %c0_105 = arith.constant 0 : index
    %386 = vector.load %arg8[%c3_103, %c0_104, %c0_105] : memref<4x2x128xf32, #tpu.memory_space<vmem>>, vector<1x2x128xf32>
    %387 = vector.shape_cast %386 : vector<1x2x128xf32> to vector<2x128xf32>
    %388 = vector.shape_cast %378 : vector<2x128xf32> to vector<1x2x128xf32>
    tpu.vector_store %arg8[%c3_103, %c0_104, %c0_105], %388 {strides = array<i32>} : memref<4x2x128xf32, #tpu.memory_space<vmem>>, vector<1x2x128xf32>,
    return
  }
}

</mosaic_0001>

<llo_original>
// kernel: snn_forward.1
$region0: #{snn_forward.1}
  #allocation0 [shape = 'u32[]', space=smem, size = 0x4, offset = 0x4, fixed_abs, tag = 'smem constant byte address 0x4 - core index']
  #allocation1 [shape = 'u32[144,128]{1,0:T(1,128)}', space=vmem, size = 0x12000, scoped, tag = 'internal scratch']
  %s0 = inlined_call_operand.vmem [shape: bf16[4,72,75], index: 0, kind: input, shape index: {}]
  %s1 = inlined_call_operand.vmem [shape: bf16[75,128], index: 1, kind: input, shape index: {}]
  %s2 = inlined_call_operand.vmem [shape: f32[1,128], index: 2, kind: input, shape index: {}]
  %s3 = inlined_call_operand.vmem [shape: bf16[640,128], index: 3, kind: input, shape index: {}]
  %s4 = inlined_call_operand.vmem [shape: f32[1,128], index: 4, kind: input, shape index: {}]
  %s5 = inlined_call_operand.vmem [shape: bf16[896,128], index: 5, kind: input, shape index: {}]
  %s6 = inlined_call_operand.vmem [shape: f32[1,128], index: 6, kind: input, shape index: {}]
  %s7 = inlined_call_operand.hbm [shape: f32[4,2,128], index: 7, kind: output, shape index: {0}]
  %s8 = inlined_call_operand.hbm [shape: f32[4,2,128], index: 8, kind: output, shape index: {1}]
  %9 = xla_tuple %s7, %s8
  %s10 = sld [smem:[#allocation0]]
  $region46: #{snn_forward.1} parent=0
    _
  %s12 = ssub.s32 1, %s10
  %s13 = scalar_select 0, %s12, %s10
  $region1: #{snn_forward.1} parent=0
    #allocation2 [shape = 'u8[4096]{0}', space=vmem, size = 0x1000, scoped, tag = 'output window, operand 0, single buffered']
    #allocation3 [shape = 's32[1]{0}', space=sflag, size = 0x4, scoped, tag = 'scoped memory for snn_forward.1']
    #allocation4 [shape = 'u8[4096]{0}', space=vmem, size = 0x1000, scoped, tag = 'output window, operand 1, single buffered']
    #allocation5 [shape = 's32[1]{0}', space=sflag, size = 0x4, scoped, tag = 'scoped memory for snn_forward.1']
    %14 = vsyncpa [#allocation3], 0
    %15 = vsyncpa [#allocation5], 0
    // Predicated region
    $region2: #{snn_forward.1} parent=1 // pred_check
      _
    $region3: #{snn_forward.1} parent=1 // pred_check_branch
      %17 = sbr.rel (0) target = $region5
    $region4: #{snn_forward.1} parent=1 // pred_region
      _
    $region5: #{snn_forward.1} parent=1 // pred_fallthru
      _
    // Predicated region
    $region6: #{snn_forward.1} parent=1 // pred_check
      _
    $region7: #{snn_forward.1} parent=1 // pred_check_branch
      %19 = sbr.rel (0) target = $region9
    $region8: #{snn_forward.1} parent=1 // pred_region
      _
    $region9: #{snn_forward.1} parent=1 // pred_fallthru
      _
    // Predicated region
    $region10: #{snn_forward.1} parent=1 // pred_check
      _
    $region11: #{snn_forward.1} parent=1 // pred_check_branch
      %21 = sbr.rel (0) target = $region13
    $region12: #{snn_forward.1} parent=1 // pred_region
      _
    $region13: #{snn_forward.1} parent=1 // pred_fallthru
      _
    // Predicated region
    $region14: #{snn_forward.1} parent=1 // pred_check
      _
    $region15: #{snn_forward.1} parent=1 // pred_check_branch
      %23 = sbr.rel (0) target = $region17
    $region16: #{snn_forward.1} parent=1 // pred_region
      _
    $region17: #{snn_forward.1} parent=1 // pred_fallthru
      _
    // Predicated region
    $region18: #{snn_forward.1} parent=1 // pred_check
      _
    $region19: #{snn_forward.1} parent=1 // pred_check_branch
      %25 = sbr.rel (0) target = $region21
    $region20: #{snn_forward.1} parent=1 // pred_region
      _
    $region21: #{snn_forward.1} parent=1 // pred_fallthru
      _
    // Predicated region
    $region22: #{snn_forward.1} parent=1 // pred_check
      _
    $region23: #{snn_forward.1} parent=1 // pred_check_branch
      %27 = sbr.rel (0) target = $region25
    $region24: #{snn_forward.1} parent=1 // pred_region
      _
    $region25: #{snn_forward.1} parent=1 // pred_fallthru
      _
    // Predicated region
    $region26: #{snn_forward.1} parent=1 // pred_check
      _
    $region27: #{snn_forward.1} parent=1 // pred_check_branch
      %29 = sbr.rel (0) target = $region29
    $region28: #{snn_forward.1} parent=1 // pred_region
      _
    $region29: #{snn_forward.1} parent=1 // pred_fallthru
      _
    %v31 = vld [vmem:[%s1] sm:$0xf]
    %v32 = vld [vmem:[%s1 + $0x4] sm:$0xf]
    %v33 = vld [vmem:[%s1 + $0x8] sm:$0xf]
    %v34 = vld [vmem:[%s1 + $0xc] sm:$0xf]
    %v35 = vld [vmem:[%s1 + $0x10] sm:$0xf]
    %v36 = vld [vmem:[%s1 + $0x14] sm:$0xf]
    %v37 = vld [vmem:[%s1 + $0x18] sm:$0xf]
    %v38 = vld [vmem:[%s1 + $0x1c] sm:$0xf]
    %v39 = vld [vmem:[%s1 + $0x20] sm:$0xf]
    %v40 = vld [vmem:[%s1 + $0x24] sm:$0x3]
    %v41 = vld [vmem:[%s3] sm:$0xf]
    %v42 = vld [vmem:[%s3 + $0x4] sm:$0xf]
    %v43 = vld [vmem:[%s3 + $0x8] sm:$0xf]
    %v44 = vld [vmem:[%s3 + $0xc] sm:$0xf]
    %v45 = vld [vmem:[%s3 + $0x10] sm:$0xf]
    %v46 = vld [vmem:[%s3 + $0x14] sm:$0xf]
    %v47 = vld [vmem:[%s3 + $0x18] sm:$0xf]
    %v48 = vld [vmem:[%s3 + $0x1c] sm:$0xf]
    %v49 = vld [vmem:[%s3 + $0x20] sm:$0xf]
    %v50 = vld [vmem:[%s3 + $0x24] sm:$0xf]
    %v51 = vld [vmem:[%s3 + $0x28] sm:$0xf]
    %v52 = vld [vmem:[%s3 + $0x2c] sm:$0xf]
    %v53 = vld [vmem:[%s3 + $0x30] sm:$0xf]
    %v54 = vld [vmem:[%s3 + $0x34] sm:$0xf]
    %v55 = vld [vmem:[%s3 + $0x38] sm:$0xf]
    %v56 = vld [vmem:[%s3 + $0x3c] sm:$0xf]
    %v57 = vld [vmem:[%s3 + $0x40] sm:$0xf]
    %v58 = vld [vmem:[%s3 + $0x44] sm:$0xf]
    %v59 = vld [vmem:[%s3 + $0x48] sm:$0xf]
    %v60 = vld [vmem:[%s3 + $0x4c] sm:$0xf]
    %v61 = vld [vmem:[%s3 + $0x50] sm:$0xf]
    %v62 = vld [vmem:[%s3 + $0x54] sm:$0xf]
    %v63 = vld [vmem:[%s3 + $0x58] sm:$0xf]
    %v64 = vld [vmem:[%s3 + $0x5c] sm:$0xf]
    %v65 = vld [vmem:[%s3 + $0x60] sm:$0xf]
    %v66 = vld [vmem:[%s3 + $0x64] sm:$0xf]
    %v67 = vld [vmem:[%s3 + $0x68] sm:$0xf]
    %v68 = vld [vmem:[%s3 + $0x6c] sm:$0xf]
    %v69 = vld [vmem:[%s3 + $0x70] sm:$0xf]
    %v70 = vld [vmem:[%s3 + $0x74] sm:$0xf]
    %v71 = vld [vmem:[%s3 + $0x78] sm:$0xf]
    %v72 = vld [vmem:[%s3 + $0x7c] sm:$0xf]
    %v73 = vld [vmem:[%s3 + $0x80] sm:$0xf]
    %v74 = vld [vmem:[%s3 + $0x84] sm:$0xf]
    %v75 = vld [vmem:[%s3 + $0x88] sm:$0xf]
    %v76 = vld [vmem:[%s3 + $0x8c] sm:$0xf]
    %v77 = vld [vmem:[%s3 + $0x90] sm:$0xf]
    %v78 = vld [vmem:[%s3 + $0x94] sm:$0xf]
    %v79 = vld [vmem:[%s3 + $0x98] sm:$0xf]
    %v80 = vld [vmem:[%s3 + $0x9c] sm:$0xf]
    %v81 = vld [vmem:[%s3 + $0xa0] sm:$0xf]
    %v82 = vld [vmem:[%s3 + $0xa4] sm:$0xf]
    %v83 = vld [vmem:[%s3 + $0xa8] sm:$0xf]
    %v84 = vld [vmem:[%s3 + $0xac] sm:$0xf]
    %v85 = vld [vmem:[%s3 + $0xb0] sm:$0xf]
    %v86 = vld [vmem:[%s3 + $0xb4] sm:$0xf]
    %v87 = vld [vmem:[%s3 + $0xb8] sm:$0xf]
    %v88 = vld [vmem:[%s3 + $0xbc] sm:$0xf]
    %v89 = vld [vmem:[%s3 + $0xc0] sm:$0xf]
    %v90 = vld [vmem:[%s3 + $0xc4] sm:$0xf]
    %v91 = vld [vmem:[%s3 + $0xc8] sm:$0xf]
    %v92 = vld [vmem:[%s3 + $0xcc] sm:$0xf]
    %v93 = vld [vmem:[%s3 + $0xd0] sm:$0xf]
    %v94 = vld [vmem:[%s3 + $0xd4] sm:$0xf]
    %v95 = vld [vmem:[%s3 + $0xd8] sm:$0xf]
    %v96 = vld [vmem:[%s3 + $0xdc] sm:$0xf]
    %v97 = vld [vmem:[%s3 + $0xe0] sm:$0xf]
    %v98 = vld [vmem:[%s3 + $0xe4] sm:$0xf]
    %v99 = vld [vmem:[%s3 + $0xe8] sm:$0xf]
    %v100 = vld [vmem:[%s3 + $0xec] sm:$0xf]
    %v101 = vld [vmem:[%s3 + $0xf0] sm:$0xf]
    %v102 = vld [vmem:[%s3 + $0xf4] sm:$0xf]
    %v103 = vld [vmem:[%s3 + $0xf8] sm:$0xf]
    %v104 = vld [vmem:[%s3 + $0xfc] sm:$0xf]
    %v105 = vld [vmem:[%s3 + $0x100] sm:$0xf]
    %v106 = vld [vmem:[%s3 + $0x104] sm:$0xf]
    %v107 = vld [vmem:[%s3 + $0x108] sm:$0xf]
    %v108 = vld [vmem:[%s3 + $0x10c] sm:$0xf]
    %v109 = vld [vmem:[%s3 + $0x110] sm:$0xf]
    %v110 = vld [vmem:[%s3 + $0x114] sm:$0xf]
    %v111 = vld [vmem:[%s3 + $0x118] sm:$0xf]
    %v112 = vld [vmem:[%s3 + $0x11c] sm:$0xf]
    %v113 = vld [vmem:[%s3 + $0x120] sm:$0xf]
    %v114 = vld [vmem:[%s3 + $0x124] sm:$0xf]
    %v115 = vld [vmem:[%s3 + $0x128] sm:$0xf]
    %v116 = vld [vmem:[%s3 + $0x12c] sm:$0xf]
    %v117 = vld [vmem:[%s3 + $0x130] sm:$0xf]
    %v118 = vld [vmem:[%s3 + $0x134] sm:$0xf]
    %v119 = vld [vmem:[%s3 + $0x138] sm:$0xf]
    %v120 = vld [vmem:[%s3 + $0x13c] sm:$0xf]
    %v121 = vld [vmem:[%s5] sm:$0xf]
    %v122 = vld [vmem:[%s5 + $0x4] sm:$0xf]
    %v123 = vld [vmem:[%s5 + $0x8] sm:$0xf]
    %v124 = vld [vmem:[%s5 + $0xc] sm:$0xf]
    %v125 = vld [vmem:[%s5 + $0x10] sm:$0xf]
    %v126 = vld [vmem:[%s5 + $0x14] sm:$0xf]
    %v127 = vld [vmem:[%s5 + $0x18] sm:$0xf]
    %v128 = vld [vmem:[%s5 + $0x1c] sm:$0xf]
    %v129 = vld [vmem:[%s5 + $0x20] sm:$0xf]
    %v130 = vld [vmem:[%s5 + $0x24] sm:$0xf]
    %v131 = vld [vmem:[%s5 + $0x28] sm:$0xf]
    %v132 = vld [vmem:[%s5 + $0x2c] sm:$0xf]
    %v133 = vld [vmem:[%s5 + $0x30] sm:$0xf]
    %v134 = vld [vmem:[%s5 + $0x34] sm:$0xf]
    %v135 = vld [vmem:[%s5 + $0x38] sm:$0xf]
    %v136 = vld [vmem:[%s5 + $0x3c] sm:$0xf]
    %v137 = vld [vmem:[%s5 + $0x40] sm:$0xf]
    %v138 = vld [vmem:[%s5 + $0x44] sm:$0xf]
    %v139 = vld [vmem:[%s5 + $0x48] sm:$0xf]
    %v140 = vld [vmem:[%s5 + $0x4c] sm:$0xf]
    %v141 = vld [vmem:[%s5 + $0x50] sm:$0xf]
    %v142 = vld [vmem:[%s5 + $0x54] sm:$0xf]
    %v143 = vld [vmem:[%s5 + $0x58] sm:$0xf]
    %v144 = vld [vmem:[%s5 + $0x5c] sm:$0xf]
    %v145 = vld [vmem:[%s5 + $0x60] sm:$0xf]
    %v146 = vld [vmem:[%s5 + $0x64] sm:$0xf]
    %v147 = vld [vmem:[%s5 + $0x68] sm:$0xf]
    %v148 = vld [vmem:[%s5 + $0x6c] sm:$0xf]
    %v149 = vld [vmem:[%s5 + $0x70] sm:$0xf]
    %v150 = vld [vmem:[%s5 + $0x74] sm:$0xf]
    %v151 = vld [vmem:[%s5 + $0x78] sm:$0xf]
    %v152 = vld [vmem:[%s5 + $0x7c] sm:$0xf]
    %v153 = vld [vmem:[%s5 + $0x80] sm:$0xf]
    %v154 = vld [vmem:[%s5 + $0x84] sm:$0xf]
    %v155 = vld [vmem:[%s5 + $0x88] sm:$0xf]
    %v156 = vld [vmem:[%s5 + $0x8c] sm:$0xf]
    %v157 = vld [vmem:[%s5 + $0x90] sm:$0xf]
    %v158 = vld [vmem:[%s5 + $0x94] sm:$0xf]
    %v159 = vld [vmem:[%s5 + $0x98] sm:$0xf]
    %v160 = vld [vmem:[%s5 + $0x9c] sm:$0xf]
    %v161 = vld [vmem:[%s5 + $0xa0] sm:$0xf]
    %v162 = vld [vmem:[%s5 + $0xa4] sm:$0xf]
    %v163 = vld [vmem:[%s5 + $0xa8] sm:$0xf]
    %v164 = vld [vmem:[%s5 + $0xac] sm:$0xf]
    %v165 = vld [vmem:[%s5 + $0xb0] sm:$0xf]
    %v166 = vld [vmem:[%s5 + $0xb4] sm:$0xf]
    %v167 = vld [vmem:[%s5 + $0xb8] sm:$0xf]
    %v168 = vld [vmem:[%s5 + $0xbc] sm:$0xf]
    %v169 = vld [vmem:[%s5 + $0xc0] sm:$0xf]
    %v170 = vld [vmem:[%s5 + $0xc4] sm:$0xf]
    %v171 = vld [vmem:[%s5 + $0xc8] sm:$0xf]
    %v172 = vld [vmem:[%s5 + $0xcc] sm:$0xf]
    %v173 = vld [vmem:[%s5 + $0xd0] sm:$0xf]
    %v174 = vld [vmem:[%s5 + $0xd4] sm:$0xf]
    %v175 = vld [vmem:[%s5 + $0xd8] sm:$0xf]
    %v176 = vld [vmem:[%s5 + $0xdc] sm:$0xf]
    %v177 = vld [vmem:[%s5 + $0xe0] sm:$0xf]
    %v178 = vld [vmem:[%s5 + $0xe4] sm:$0xf]
    %v179 = vld [vmem:[%s5 + $0xe8] sm:$0xf]
    %v180 = vld [vmem:[%s5 + $0xec] sm:$0xf]
    %v181 = vld [vmem:[%s5 + $0xf0] sm:$0xf]
    %v182 = vld [vmem:[%s5 + $0xf4] sm:$0xf]
    %v183 = vld [vmem:[%s5 + $0xf8] sm:$0xf]
    %v184 = vld [vmem:[%s5 + $0xfc] sm:$0xf]
    %v185 = vld [vmem:[%s5 + $0x100] sm:$0xf]
    %v186 = vld [vmem:[%s5 + $0x104] sm:$0xf]
    %v187 = vld [vmem:[%s5 + $0x108] sm:$0xf]
    %v188 = vld [vmem:[%s5 + $0x10c] sm:$0xf]
    %v189 = vld [vmem:[%s5 + $0x110] sm:$0xf]
    %v190 = vld [vmem:[%s5 + $0x114] sm:$0xf]
    %v191 = vld [vmem:[%s5 + $0x118] sm:$0xf]
    %v192 = vld [vmem:[%s5 + $0x11c] sm:$0xf]
    %v193 = vld [vmem:[%s5 + $0x120] sm:$0xf]
    %v194 = vld [vmem:[%s5 + $0x124] sm:$0xf]
    %v195 = vld [vmem:[%s5 + $0x128] sm:$0xf]
    %v196 = vld [vmem:[%s5 + $0x12c] sm:$0xf]
    %v197 = vld [vmem:[%s5 + $0x130] sm:$0xf]
    %v198 = vld [vmem:[%s5 + $0x134] sm:$0xf]
    %v199 = vld [vmem:[%s5 + $0x138] sm:$0xf]
    %v200 = vld [vmem:[%s5 + $0x13c] sm:$0xf]
    %v201 = vld [vmem:[%s5 + $0x140] sm:$0xf]
    %v202 = vld [vmem:[%s5 + $0x144] sm:$0xf]
    %v203 = vld [vmem:[%s5 + $0x148] sm:$0xf]
    %v204 = vld [vmem:[%s5 + $0x14c] sm:$0xf]
    %v205 = vld [vmem:[%s5 + $0x150] sm:$0xf]
    %v206 = vld [vmem:[%s5 + $0x154] sm:$0xf]
    %v207 = vld [vmem:[%s5 + $0x158] sm:$0xf]
    %v208 = vld [vmem:[%s5 + $0x15c] sm:$0xf]
    %v209 = vld [vmem:[%s5 + $0x160] sm:$0xf]
    %v210 = vld [vmem:[%s5 + $0x164] sm:$0xf]
    %v211 = vld [vmem:[%s5 + $0x168] sm:$0xf]
    %v212 = vld [vmem:[%s5 + $0x16c] sm:$0xf]
    %v213 = vld [vmem:[%s5 + $0x170] sm:$0xf]
    %v214 = vld [vmem:[%s5 + $0x174] sm:$0xf]
    %v215 = vld [vmem:[%s5 + $0x178] sm:$0xf]
    %v216 = vld [vmem:[%s5 + $0x17c] sm:$0xf]
    %v217 = vld [vmem:[%s5 + $0x180] sm:$0xf]
    %v218 = vld [vmem:[%s5 + $0x184] sm:$0xf]
    %v219 = vld [vmem:[%s5 + $0x188] sm:$0xf]
    %v220 = vld [vmem:[%s5 + $0x18c] sm:$0xf]
    %v221 = vld [vmem:[%s5 + $0x190] sm:$0xf]
    %v222 = vld [vmem:[%s5 + $0x194] sm:$0xf]
    %v223 = vld [vmem:[%s5 + $0x198] sm:$0xf]
    %v224 = vld [vmem:[%s5 + $0x19c] sm:$0xf]
    %v225 = vld [vmem:[%s5 + $0x1a0] sm:$0xf]
    %v226 = vld [vmem:[%s5 + $0x1a4] sm:$0xf]
    %v227 = vld [vmem:[%s5 + $0x1a8] sm:$0xf]
    %v228 = vld [vmem:[%s5 + $0x1ac] sm:$0xf]
    %v229 = vld [vmem:[%s5 + $0x1b0] sm:$0xf]
    %v230 = vld [vmem:[%s5 + $0x1b4] sm:$0xf]
    %v231 = vld [vmem:[%s5 + $0x1b8] sm:$0xf]
    %v232 = vld [vmem:[%s5 + $0x1bc] sm:$0xf]
    %v233 = vld [vmem:[%s2] sm:$0x1]
    %v234 = vld [vmem:[%s4] sm:$0x1]
    %v235 = vld [vmem:[%s6] sm:$0x1]
    %v236 = vld [vmem:[%s0] sm:$0xf]
    %v237 = vld [vmem:[%s0 + $0x4] sm:$0xf]
    %v238 = vld [vmem:[%s0 + $0x8] sm:$0xf]
    %v239 = vld [vmem:[%s0 + $0xc] sm:$0xf]
    %v240 = vld [vmem:[%s0 + $0x10] sm:$0xf]
    %v241 = vld [vmem:[%s0 + $0x14] sm:$0xf]
    %v242 = vld [vmem:[%s0 + $0x18] sm:$0xf]
    %v243 = vld [vmem:[%s0 + $0x1c] sm:$0xf]
    %v244 = vld [vmem:[%s0 + $0x20] sm:$0xf]
    %v246 = vlaneseq
    %v247 = vshrl.u32 %v246, 7
    %v248 = vsub.s32 0, %v247
    %v249 = vrot.slane %v233, %v248
    %v260 = vunpack.c.l.b16 %v236
    %v261 = vunpack.c.l.b16 %v237
    %v262 = vunpack.c.l.b16 %v238
    %v263 = vunpack.c.l.b16 %v239
    %v264 = vunpack.c.l.b16 %v240
    %v265 = vunpack.c.l.b16 %v241
    %v266 = vunpack.c.l.b16 %v242
    %v267 = vunpack.c.l.b16 %v243
    %v268 = vunpack.c.l.b16 %v244
    %v269 = vpack.c.b16 %v261, %v260
    %v270 = vpack.c.b16 %v263, %v262
    %v271 = vpack.c.b16 %v265, %v264
    %v272 = vpack.c.b16 %v267, %v266
    %v273 = vpack.c.b16 %v268, %v268
    %v284 = vunpack.c.l.b16 %v31
    %v285 = vunpack.c.l.b16 %v32
    %v286 = vunpack.c.l.b16 %v33
    %v287 = vunpack.c.l.b16 %v34
    %v288 = vunpack.c.l.b16 %v35
    %v289 = vunpack.c.l.b16 %v36
    %v290 = vunpack.c.l.b16 %v37
    %v291 = vunpack.c.l.b16 %v38
    %v292 = vunpack.c.l.b16 %v39
    %v293 = vunpack.c.l.b16 %v40
    %v294 = vpack.c.b16 %v285, %v284
    %v295 = vpack.c.b16 %v287, %v286
    %v296 = vpack.c.b16 %v289, %v288
    %v297 = vpack.c.b16 %v291, %v290
    %v298 = vpack.c.b16 %v293, %v292
    %vm303 = vcmask 613376
    %v305 = vsel %vm303, %v269, 0
    %v308 = vsel %vm303, %v270, 0
    %v311 = vsel %vm303, %v271, 0
    %v314 = vsel %vm303, %v272, 0
    %v317 = vsel %vm303, %v273, 0
    %vm319 = vcmask 1044480
    %vm320 = vcmask 1045504
    %v321 = vsel %vm319, 4294967295, 65535
    %v322 = vsel %vm320, %v321, 0
    %v324 = vand.u32 %v298, %v322
    %326 = vmatprep.subr.bf16.mxu0 0
    %327 = vmatpush1.bf16.msra.mxu0 %v294
    %328 = vmatprep.subr.bf16.mxu0 0
    %329 = vmatpush1.bf16.msra.mxu0 %v295
    %330 = vmatprep.subr.bf16.mxu0 0
    %331 = vmatpush1.bf16.msra.mxu0 %v296
    %332 = vmatprep.subr.bf16.mxu0 0
    %333 = vmatpush1.bf16.msra.mxu0 %v297
    %334 = vmatprep.subr.bf16.mxu0 0
    %335 = vmatpush1.bf16.msra.mxu0 %v324
    %336 = vmatprep.subr.bf16.mxu0 0
    %337 = vmatpush1.bf16.msra.mxu0 0
    %338 = vmatprep.subr.bf16.mxu0 0
    %339 = vmatpush1.bf16.msra.mxu0 0
    %340 = vmatprep.subr.bf16.mxu0 0
    %341 = vmatpush1.bf16.msra.mxu0 0
    %342 = vmatprep.subr.bf16.mxu0 0
    %343 = vmatpush1.bf16.msra.mxu0 0
    %344 = vmatprep.subr.bf16.mxu0 0
    %345 = vmatpush1.bf16.msra.mxu0 0
    %346 = vmatprep.subr.bf16.mxu0 0
    %347 = vmatpush1.bf16.msra.mxu0 0
    %348 = vmatprep.subr.bf16.mxu0 0
    %349 = vmatpush1.bf16.msra.mxu0 0
    %350 = vmatprep.subr.bf16.mxu0 0
    %351 = vmatpush1.bf16.msra.mxu0 0
    %352 = vmatprep.subr.bf16.mxu0 0
    %353 = vmatpush1.bf16.msra.mxu0 0
    %354 = vmatprep.subr.bf16.mxu0 0
    %355 = vmatpush1.bf16.msra.mxu0 0
    %356 = vmatprep.subr.bf16.mxu0 0
    %357 = vmatpush1.bf16.msra.mxu0 0
    %358 = vmatprep.mubr.bf16.mxu0 0
    %359 = vmatmul.mubr.bf16.gmra.mrb[0].mxu0 %v305
    %v360 = vpop.f32.mrb[0].mxu0
    %v361 = vadd.f32 %v249, %v360
    %v362 = vpop.f32.mrb[0].mxu0
    %v363 = vpop.f32.mrb[0].mxu0
    %v364 = vadd.f32 %v249, %v363
    %v365 = vpop.f32.mrb[0].mxu0
    %366 = vmatprep.mubr.bf16.mxu0 0
    %367 = vmatmul.mubr.bf16.gmra.mrb[0].mxu0 %v308
    %v368 = vpop.f32.mrb[0].mxu0
    %v369 = vadd.f32 %v249, %v368
    %v370 = vpop.f32.mrb[0].mxu0
    %v371 = vpop.f32.mrb[0].mxu0
    %v372 = vadd.f32 %v249, %v371
    %v373 = vpop.f32.mrb[0].mxu0
    %374 = vmatprep.mubr.bf16.mxu0 0
    %375 = vmatmul.mubr.bf16.gmra.mrb[0].mxu0 %v311
    %v376 = vpop.f32.mrb[0].mxu0
    %v377 = vadd.f32 %v249, %v376
    %v378 = vpop.f32.mrb[0].mxu0
    %v379 = vpop.f32.mrb[0].mxu0
    %v380 = vadd.f32 %v249, %v379
    %v381 = vpop.f32.mrb[0].mxu0
    %382 = vmatprep.mubr.bf16.mxu0 0
    %383 = vmatmul.mubr.bf16.gmra.mrb[0].mxu0 %v314
    %v384 = vpop.f32.mrb[0].mxu0
    %v385 = vadd.f32 %v249, %v384
    %v386 = vpop.f32.mrb[0].mxu0
    %v387 = vpop.f32.mrb[0].mxu0
    %v388 = vadd.f32 %v249, %v387
    %v389 = vpop.f32.mrb[0].mxu0
    %390 = vmatprep.mubr.bf16.mxu0 0
    %391 = vmatmul.mubr.bf16.gmra.mrb[0].mxu0 %v317
    %v392 = vpop.f32.mrb[0].mxu0
    %v393 = vadd.f32 %v249, %v392
    %v394 = vpop.f32.mrb[0].mxu0
    %v395 = vpop.f32.mrb[0].mxu0
    %v396 = vpop.f32.mrb[0].mxu0
    %397 = vdwg.mxu0
    %vm403 = vcmask 1043456
    %v404 = vrot.slane %v377, 4
    %v405 = vrot.slane %v380, 4
    %v406 = vsel %vm403, %v404, %v405
    %v407 = vrot.slane %v385, 4
    %v408 = vsel %vm403, %v405, %v407
    %v409 = vrot.slane %v388, 4
    %v410 = vsel %vm403, %v407, %v409
    %v411 = vrot.slane %v393, 4
    %v412 = vsel %vm403, %v409, %v411
    %v418 = vmax.f32 %v361, %v406
    %v419 = vmax.f32 %v364, %v408
    %v420 = vmax.f32 %v369, %v410
    %v421 = vmax.f32 %v372, %v412
    %v422 = vmax.f32 %v377, %v411
    %vm423 = vcmp.gt.f32.partialorder 0.0, 1.0
    %v424 = vsel %vm423, 1, 0
    %v425 = vcvt.s32.f32 %v424
    %v426 = vadd.f32 %v418, 0.0
    %v427 = vadd.f32 %v419, 0.0
    %v428 = vadd.f32 %v420, 0.0
    %v429 = vadd.f32 %v421, 0.0
    %v430 = vadd.f32 %v422, 0.0
    %v431 = vsub.f32 %v426, %v425
    %v432 = vsub.f32 %v427, %v425
    %v433 = vsub.f32 %v428, %v425
    %v434 = vsub.f32 %v429, %v425
    %v435 = vsub.f32 %v430, %v425
    %vm436 = vcmp.gt.f32.partialorder %v431, 1.0
    %vm437 = vcmp.gt.f32.partialorder %v432, 1.0
    %vm438 = vcmp.gt.f32.partialorder %v433, 1.0
    %vm439 = vcmp.gt.f32.partialorder %v434, 1.0
    %vm440 = vcmp.gt.f32.partialorder %v435, 1.0
    %v441 = vsel %vm436, 1, 0
    %v442 = vsel %vm437, 1, 0
    %v443 = vsel %vm438, 1, 0
    %v444 = vsel %vm439, 1, 0
    %v445 = vsel %vm440, 1, 0
    %v446 = vcvt.s32.f32 %v441
    %v447 = vcvt.s32.f32 %v442
    %v448 = vcvt.s32.f32 %v443
    %v449 = vcvt.s32.f32 %v444
    %v450 = vcvt.s32.f32 %v445
    %vm456 = vcmask 1046528
    %v457 = vrot.slane %v446, 1
    %v458 = vrot.slane %v447, 1
    %v459 = vsel %vm456, %v457, %v458
    %v460 = vrot.slane %v448, 1
    %v461 = vsel %vm456, %v458, %v460
    %v462 = vrot.slane %v449, 1
    %v463 = vsel %vm456, %v460, %v462
    %v464 = vrot.slane %v450, 1
    %v465 = vsel %vm456, %v462, %v464
    %v470 = vrot.slane %v446, 2
    %v471 = vrot.slane %v447, 2
    %v472 = vsel %vm320, %v470, %v471
    %v473 = vrot.slane %v448, 2
    %v474 = vsel %vm320, %v471, %v473
    %v475 = vrot.slane %v449, 2
    %v476 = vsel %vm320, %v473, %v475
    %v477 = vrot.slane %v450, 2
    %v478 = vsel %vm320, %v475, %v477
    %v483 = vrot.slane %v446, 3
    %v484 = vrot.slane %v447, 3
    %v485 = vsel %vm319, %v483, %v484
    %v486 = vrot.slane %v448, 3
    %v487 = vsel %vm319, %v484, %v486
    %v488 = vrot.slane %v449, 3
    %v489 = vsel %vm319, %v486, %v488
    %v490 = vrot.slane %v450, 3
    %v491 = vsel %vm319, %v488, %v490
    %v496 = vrot.slane %v446, 4
    %v497 = vrot.slane %v447, 4
    %v498 = vsel %vm403, %v496, %v497
    %v499 = vrot.slane %v448, 4
    %v500 = vsel %vm403, %v497, %v499
    %v501 = vrot.slane %v449, 4
    %v502 = vsel %vm403, %v499, %v501
    %v503 = vrot.slane %v450, 4
    %v504 = vsel %vm403, %v501, %v503
    %v509 = vpack.c.bf16 %v447, %v446
    %v510 = vpack.c.bf16 %v461, %v459
    %v511 = vpack.c.bf16 %v474, %v472
    %v512 = vpack.c.bf16 %v487, %v485
    %v513 = vpack.c.bf16 %v500, %v498
    %v514 = vpack.c.bf16 %v449, %v448
    %v515 = vpack.c.bf16 %v465, %v463
    %v516 = vpack.c.bf16 %v478, %v476
    %v517 = vpack.c.bf16 %v491, %v489
    %v518 = vpack.c.bf16 %v504, %v502
    %v520 = vlaneseq
    %v521 = vshrl.u32 %v520, 7
    %v522 = vsub.s32 0, %v521
    %v523 = vrot.slane %v234, %v522
    %v605 = vunpack.c.l.b16 %v41
    %v606 = vunpack.c.l.b16 %v42
    %v607 = vunpack.c.l.b16 %v43
    %v608 = vunpack.c.l.b16 %v44
    %v609 = vunpack.c.l.b16 %v45
    %v610 = vunpack.c.l.b16 %v46
    %v611 = vunpack.c.l.b16 %v47
    %v612 = vunpack.c.l.b16 %v48
    %v613 = vunpack.c.l.b16 %v49
    %v614 = vunpack.c.l.b16 %v50
    %v615 = vunpack.c.l.b16 %v51
    %v616 = vunpack.c.l.b16 %v52
    %v617 = vunpack.c.l.b16 %v53
    %v618 = vunpack.c.l.b16 %v54
    %v619 = vunpack.c.l.b16 %v55
    %v620 = vunpack.c.l.b16 %v56
    %v621 = vunpack.c.l.b16 %v57
    %v622 = vunpack.c.l.b16 %v58
    %v623 = vunpack.c.l.b16 %v59
    %v624 = vunpack.c.l.b16 %v60
    %v625 = vunpack.c.l.b16 %v61
    %v626 = vunpack.c.l.b16 %v62
    %v627 = vunpack.c.l.b16 %v63
    %v628 = vunpack.c.l.b16 %v64
    %v629 = vunpack.c.l.b16 %v65
    %v630 = vunpack.c.l.b16 %v66
    %v631 = vunpack.c.l.b16 %v67
    %v632 = vunpack.c.l.b16 %v68
    %v633 = vunpack.c.l.b16 %v69
    %v634 = vunpack.c.l.b16 %v70
    %v635 = vunpack.c.l.b16 %v71
    %v636 = vunpack.c.l.b16 %v72
    %v637 = vunpack.c.l.b16 %v73
    %v638 = vunpack.c.l.b16 %v74
    %v639 = vunpack.c.l.b16 %v75
    %v640 = vunpack.c.l.b16 %v76
    %v641 = vunpack.c.l.b16 %v77
    %v642 = vunpack.c.l.b16 %v78
    %v643 = vunpack.c.l.b16 %v79
    %v644 = vunpack.c.l.b16 %v80
    %v645 = vunpack.c.l.b16 %v81
    %v646 = vunpack.c.l.b16 %v82
    %v647 = vunpack.c.l.b16 %v83
    %v648 = vunpack.c.l.b16 %v84
    %v649 = vunpack.c.l.b16 %v85
    %v650 = vunpack.c.l.b16 %v86
    %v651 = vunpack.c.l.b16 %v87
    %v652 = vunpack.c.l.b16 %v88
    %v653 = vunpack.c.l.b16 %v89
    %v654 = vunpack.c.l.b16 %v90
    %v655 = vunpack.c.l.b16 %v91
    %v656 = vunpack.c.l.b16 %v92
    %v657 = vunpack.c.l.b16 %v93
    %v658 = vunpack.c.l.b16 %v94
    %v659 = vunpack.c.l.b16 %v95
    %v660 = vunpack.c.l.b16 %v96
    %v661 = vunpack.c.l.b16 %v97
    %v662 = vunpack.c.l.b16 %v98
    %v663 = vunpack.c.l.b16 %v99
    %v664 = vunpack.c.l.b16 %v100
    %v665 = vunpack.c.l.b16 %v101
    %v666 = vunpack.c.l.b16 %v102
    %v667 = vunpack.c.l.b16 %v103
    %v668 = vunpack.c.l.b16 %v104
    %v669 = vunpack.c.l.b16 %v105
    %v670 = vunpack.c.l.b16 %v106
    %v671 = vunpack.c.l.b16 %v107
    %v672 = vunpack.c.l.b16 %v108
    %v673 = vunpack.c.l.b16 %v109
    %v674 = vunpack.c.l.b16 %v110
    %v675 = vunpack.c.l.b16 %v111
    %v676 = vunpack.c.l.b16 %v112
    %v677 = vunpack.c.l.b16 %v113
    %v678 = vunpack.c.l.b16 %v114
    %v679 = vunpack.c.l.b16 %v115
    %v680 = vunpack.c.l.b16 %v116
    %v681 = vunpack.c.l.b16 %v117
    %v682 = vunpack.c.l.b16 %v118
    %v683 = vunpack.c.l.b16 %v119
    %v684 = vunpack.c.l.b16 %v120
    %v685 = vpack.c.b16 %v606, %v605
    %v686 = vpack.c.b16 %v608, %v607
    %v687 = vpack.c.b16 %v610, %v609
    %v688 = vpack.c.b16 %v612, %v611
    %v689 = vpack.c.b16 %v614, %v613
    %v690 = vpack.c.b16 %v616, %v615
    %v691 = vpack.c.b16 %v618, %v617
    %v692 = vpack.c.b16 %v620, %v619
    %v693 = vpack.c.b16 %v622, %v621
    %v694 = vpack.c.b16 %v624, %v623
    %v695 = vpack.c.b16 %v626, %v625
    %v696 = vpack.c.b16 %v628, %v627
    %v697 = vpack.c.b16 %v630, %v629
    %v698 = vpack.c.b16 %v632, %v631
    %v699 = vpack.c.b16 %v634, %v633
    %v700 = vpack.c.b16 %v636, %v635
    %v701 = vpack.c.b16 %v638, %v637
    %v702 = vpack.c.b16 %v640, %v639
    %v703 = vpack.c.b16 %v642, %v641
    %v704 = vpack.c.b16 %v644, %v643
    %v705 = vpack.c.b16 %v646, %v645
    %v706 = vpack.c.b16 %v648, %v647
    %v707 = vpack.c.b16 %v650, %v649
    %v708 = vpack.c.b16 %v652, %v651
    %v709 = vpack.c.b16 %v654, %v653
    %v710 = vpack.c.b16 %v656, %v655
    %v711 = vpack.c.b16 %v658, %v657
    %v712 = vpack.c.b16 %v660, %v659
    %v713 = vpack.c.b16 %v662, %v661
    %v714 = vpack.c.b16 %v664, %v663
    %v715 = vpack.c.b16 %v666, %v665
    %v716 = vpack.c.b16 %v668, %v667
    %v717 = vpack.c.b16 %v670, %v669
    %v718 = vpack.c.b16 %v672, %v671
    %v719 = vpack.c.b16 %v674, %v673
    %v720 = vpack.c.b16 %v676, %v675
    %v721 = vpack.c.b16 %v678, %v677
    %v722 = vpack.c.b16 %v680, %v679
    %v723 = vpack.c.b16 %v682, %v681
    %v724 = vpack.c.b16 %v684, %v683
    %765 = vmatprep.subr.bf16.mxu0 0
    %766 = vmatpush1.bf16.msra.mxu0 %v685
    %767 = vmatprep.subr.bf16.mxu0 0
    %768 = vmatpush1.bf16.msra.mxu0 %v686
    %769 = vmatprep.subr.bf16.mxu0 0
    %770 = vmatpush1.bf16.msra.mxu0 %v687
    %771 = vmatprep.subr.bf16.mxu0 0
    %772 = vmatpush1.bf16.msra.mxu0 %v688
    %773 = vmatprep.subr.bf16.mxu0 0
    %774 = vmatpush1.bf16.msra.mxu0 %v689
    %775 = vmatprep.subr.bf16.mxu0 0
    %776 = vmatpush1.bf16.msra.mxu0 %v690
    %777 = vmatprep.subr.bf16.mxu0 0
    %778 = vmatpush1.bf16.msra.mxu0 %v691
    %779 = vmatprep.subr.bf16.mxu0 0
    %780 = vmatpush1.bf16.msra.mxu0 %v692
    %781 = vmatprep.subr.bf16.mxu0 0
    %782 = vmatpush1.bf16.msra.mxu0 %v693
    %783 = vmatprep.subr.bf16.mxu0 0
    %784 = vmatpush1.bf16.msra.mxu0 %v694
    %785 = vmatprep.subr.bf16.mxu0 0
    %786 = vmatpush1.bf16.msra.mxu0 %v695
    %787 = vmatprep.subr.bf16.mxu0 0
    %788 = vmatpush1.bf16.msra.mxu0 %v696
    %789 = vmatprep.subr.bf16.mxu0 0
    %790 = vmatpush1.bf16.msra.mxu0 %v697
    %791 = vmatprep.subr.bf16.mxu0 0
    %792 = vmatpush1.bf16.msra.mxu0 %v698
    %793 = vmatprep.subr.bf16.mxu0 0
    %794 = vmatpush1.bf16.msra.mxu0 %v699
    %795 = vmatprep.subr.bf16.mxu0 0
    %796 = vmatpush1.bf16.msra.mxu0 %v700
    %797 = vmatprep.mubr.bf16.mxu0 %v510
    %798 = vmatmul.mubr.bf16.gmra.mrb[0].mxu0 %v509
    %v799 = vpop.f32.mrb[0].mxu0
    %v800 = vadd.f32 %v523, %v799
    %v801 = vpop.f32.mrb[0].mxu0
    %v802 = vpop.f32.mrb[0].mxu0
    %v803 = vadd.f32 %v523, %v802
    %v804 = vpop.f32.mrb[0].mxu0
    %805 = vmatprep.mubr.bf16.mxu0 %v515
    %806 = vmatmul.mubr.bf16.gmra.mrb[0].mxu0 %v514
    %v807 = vpop.f32.mrb[0].mxu0
    %v808 = vadd.f32 %v523, %v807
    %v809 = vpop.f32.mrb[0].mxu0
    %v810 = vpop.f32.mrb[0].mxu0
    %v811 = vadd.f32 %v523, %v810
    %v812 = vpop.f32.mrb[0].mxu0
    %813 = vdwg.mxu0
    %814 = vmatprep.subr.bf16.mxu0 0
    %815 = vmatpush1.bf16.msra.mxu0 %v701
    %816 = vmatprep.subr.bf16.mxu0 0
    %817 = vmatpush1.bf16.msra.mxu0 %v702
    %818 = vmatprep.subr.bf16.mxu0 0
    %819 = vmatpush1.bf16.msra.mxu0 %v703
    %820 = vmatprep.subr.bf16.mxu0 0
    %821 = vmatpush1.bf16.msra.mxu0 %v704
    %822 = vmatprep.subr.bf16.mxu0 0
    %823 = vmatpush1.bf16.msra.mxu0 %v705
    %824 = vmatprep.subr.bf16.mxu0 0
    %825 = vmatpush1.bf16.msra.mxu0 %v706
    %826 = vmatprep.subr.bf16.mxu0 0
    %827 = vmatpush1.bf16.msra.mxu0 %v707
    %828 = vmatprep.subr.bf16.mxu0 0
    %829 = vmatpush1.bf16.msra.mxu0 %v708
    %830 = vmatprep.subr.bf16.mxu0 0
    %831 = vmatpush1.bf16.msra.mxu0 %v709
    %832 = vmatprep.subr.bf16.mxu0 0
    %833 = vmatpush1.bf16.msra.mxu0 %v710
    %834 = vmatprep.subr.bf16.mxu0 0
    %835 = vmatpush1.bf16.msra.mxu0 %v711
    %836 = vmatprep.subr.bf16.mxu0 0
    %837 = vmatpush1.bf16.msra.mxu0 %v712
    %838 = vmatprep.subr.bf16.mxu0 0
    %839 = vmatpush1.bf16.msra.mxu0 %v713
    %840 = vmatprep.subr.bf16.mxu0 0
    %841 = vmatpush1.bf16.msra.mxu0 %v714
    %842 = vmatprep.subr.bf16.mxu0 0
    %843 = vmatpush1.bf16.msra.mxu0 %v715
    %844 = vmatprep.subr.bf16.mxu0 0
    %845 = vmatpush1.bf16.msra.mxu0 %v716
    %846 = vmatprep.mubr.bf16.mxu0 %v512
    %847 = vmatmul.mubr.bf16.gmra.mrb[0].mxu0 %v511
    %v848 = vpop.f32.mrb[0].mxu0
    %v849 = vadd.f32 %v800, %v848
    %v850 = vpop.f32.mrb[0].mxu0
    %v851 = vpop.f32.mrb[0].mxu0
    %v852 = vadd.f32 %v803, %v851
    %v853 = vpop.f32.mrb[0].mxu0
    %854 = vmatprep.mubr.bf16.mxu0 %v517
    %855 = vmatmul.mubr.bf16.gmra.mrb[0].mxu0 %v516
    %v856 = vpop.f32.mrb[0].mxu0
    %v857 = vadd.f32 %v808, %v856
    %v858 = vpop.f32.mrb[0].mxu0
    %v859 = vpop.f32.mrb[0].mxu0
    %v860 = vadd.f32 %v811, %v859
    %v861 = vpop.f32.mrb[0].mxu0
    %862 = vdwg.mxu0
    %863 = vmatprep.subr.bf16.mxu0 0
    %864 = vmatpush1.bf16.msra.mxu0 %v717
    %865 = vmatprep.subr.bf16.mxu0 0
    %866 = vmatpush1.bf16.msra.mxu0 %v718
    %867 = vmatprep.subr.bf16.mxu0 0
    %868 = vmatpush1.bf16.msra.mxu0 %v719
    %869 = vmatprep.subr.bf16.mxu0 0
    %870 = vmatpush1.bf16.msra.mxu0 %v720
    %871 = vmatprep.subr.bf16.mxu0 0
    %872 = vmatpush1.bf16.msra.mxu0 %v721
    %873 = vmatprep.subr.bf16.mxu0 0
    %874 = vmatpush1.bf16.msra.mxu0 %v722
    %875 = vmatprep.subr.bf16.mxu0 0
    %876 = vmatpush1.bf16.msra.mxu0 %v723
    %877 = vmatprep.subr.bf16.mxu0 0
    %878 = vmatpush1.bf16.msra.mxu0 %v724
    %879 = vmatprep.subr.bf16.mxu0 0
    %880 = vmatpush1.bf16.msra.mxu0 0
    %881 = vmatprep.subr.bf16.mxu0 0
    %882 = vmatpush1.bf16.msra.mxu0 0
    %883 = vmatprep.subr.bf16.mxu0 0
    %884 = vmatpush1.bf16.msra.mxu0 0
    %885 = vmatprep.subr.bf16.mxu0 0
    %886 = vmatpush1.bf16.msra.mxu0 0
    %887 = vmatprep.subr.bf16.mxu0 0
    %888 = vmatpush1.bf16.msra.mxu0 0
    %889 = vmatprep.subr.bf16.mxu0 0
    %890 = vmatpush1.bf16.msra.mxu0 0
    %891 = vmatprep.subr.bf16.mxu0 0
    %892 = vmatpush1.bf16.msra.mxu0 0
    %893 = vmatprep.subr.bf16.mxu0 0
    %894 = vmatpush1.bf16.msra.mxu0 0
    %895 = vmatprep.mubr.bf16.mxu0 0
    %896 = vmatmul.mubr.bf16.gmra.mrb[0].mxu0 %v513
    %v897 = vpop.f32.mrb[0].mxu0
    %v898 = vadd.f32 %v849, %v897
    %v899 = vpop.f32.mrb[0].mxu0
    %v900 = vpop.f32.mrb[0].mxu0
    %v901 = vadd.f32 %v852, %v900
    %v902 = vpop.f32.mrb[0].mxu0
    %903 = vmatprep.mubr.bf16.mxu0 0
    %904 = vmatmul.mubr.bf16.gmra.mrb[0].mxu0 %v518
    %v905 = vpop.f32.mrb[0].mxu0
    %v906 = vadd.f32 %v857, %v905
    %v907 = vpop.f32.mrb[0].mxu0
    %v908 = vpop.f32.mrb[0].mxu0
    %v909 = vadd.f32 %v860, %v908
    %v910 = vpop.f32.mrb[0].mxu0
    %911 = vdwg.mxu0
    %v916 = vrot.slane %v898, 1
    %v917 = vrot.slane %v901, 1
    %v918 = vsel %vm456, %v916, %v917
    %v919 = vrot.slane %v906, 1
    %v920 = vsel %vm456, %v917, %v919
    %v921 = vrot.slane %v909, 1
    %v922 = vsel %vm456, %v919, %v921
    %v927 = vmax.f32 %v898, %v918
    %v928 = vmax.f32 %v901, %v920
    %v929 = vmax.f32 %v906, %v922
    %v930 = vmax.f32 %v909, %v921
    %v931 = vadd.f32 %v927, 0.0
    %v932 = vadd.f32 %v928, 0.0
    %v933 = vadd.f32 %v929, 0.0
    %v934 = vadd.f32 %v930, 0.0
    %v935 = vsub.f32 %v931, %v425
    %v936 = vsub.f32 %v932, %v425
    %v937 = vsub.f32 %v933, %v425
    %v938 = vsub.f32 %v934, %v425
    %vm939 = vcmp.gt.f32.partialorder %v935, 1.0
    %vm940 = vcmp.gt.f32.partialorder %v936, 1.0
    %vm941 = vcmp.gt.f32.partialorder %v937, 1.0
    %vm942 = vcmp.gt.f32.partialorder %v938, 1.0
    %v943 = vsel %vm939, 1, 0
    %v944 = vsel %vm940, 1, 0
    %v945 = vsel %vm941, 1, 0
    %v946 = vsel %vm942, 1, 0
    %v947 = vcvt.s32.f32 %v943
    %v948 = vcvt.s32.f32 %v944
    %v949 = vcvt.s32.f32 %v945
    %v950 = vcvt.s32.f32 %v946
    %v952 = vrot.slane %v949, 1
    %vm954 = vcmask 1040384
    %v955 = vsel %vm954, %v947, %v952
    %v957 = vrot.slane %v947, 2
    %v959 = vrot.slane %v949, 3
    %v961 = vsel %vm954, %v957, %v959
    %v962 = vrot.slane %v947, 4
    %v964 = vrot.slane %v949, 5
    %v966 = vsel %vm954, %v962, %v964
    %v967 = vrot.slane %v947, 6
    %v970 = vrot.slane %v950, 7
    %v972 = vsel %vm954, %v967, %v970
    %v973 = vrot.slane %v950, 1
    %v975 = vsel %vm954, %v948, %v973
    %v977 = vrot.slane %v948, 2
    %v979 = vrot.slane %v950, 3
    %v981 = vsel %vm954, %v977, %v979
    %v982 = vrot.slane %v948, 4
    %v984 = vrot.slane %v950, 5
    %v986 = vsel %vm954, %v982, %v984
    %v987 = vpack.c.bf16 %v955, %v955
    %v988 = vpack.c.bf16 %v961, %v961
    %v989 = vpack.c.bf16 %v966, %v966
    %v990 = vpack.c.bf16 %v972, %v972
    %v991 = vpack.c.bf16 %v975, %v975
    %v992 = vpack.c.bf16 %v981, %v981
    %v993 = vpack.c.bf16 %v986, %v986
    %v995 = vlaneseq
    %v996 = vshrl.u32 %v995, 7
    %v997 = vsub.s32 0, %v996
    %v998 = vrot.slane %v235, %v997
    %v1112 = vunpack.c.l.b16 %v121
    %v1113 = vunpack.c.l.b16 %v122
    %v1114 = vunpack.c.l.b16 %v123
    %v1115 = vunpack.c.l.b16 %v124
    %v1116 = vunpack.c.l.b16 %v125
    %v1117 = vunpack.c.l.b16 %v126
    %v1118 = vunpack.c.l.b16 %v127
    %v1119 = vunpack.c.l.b16 %v128
    %v1120 = vunpack.c.l.b16 %v129
    %v1121 = vunpack.c.l.b16 %v130
    %v1122 = vunpack.c.l.b16 %v131
    %v1123 = vunpack.c.l.b16 %v132
    %v1124 = vunpack.c.l.b16 %v133
    %v1125 = vunpack.c.l.b16 %v134
    %v1126 = vunpack.c.l.b16 %v135
    %v1127 = vunpack.c.l.b16 %v136
    %v1128 = vunpack.c.l.b16 %v137
    %v1129 = vunpack.c.l.b16 %v138
    %v1130 = vunpack.c.l.b16 %v139
    %v1131 = vunpack.c.l.b16 %v140
    %v1132 = vunpack.c.l.b16 %v141
    %v1133 = vunpack.c.l.b16 %v142
    %v1134 = vunpack.c.l.b16 %v143
    %v1135 = vunpack.c.l.b16 %v144
    %v1136 = vunpack.c.l.b16 %v145
    %v1137 = vunpack.c.l.b16 %v146
    %v1138 = vunpack.c.l.b16 %v147
    %v1139 = vunpack.c.l.b16 %v148
    %v1140 = vunpack.c.l.b16 %v149
    %v1141 = vunpack.c.l.b16 %v150
    %v1142 = vunpack.c.l.b16 %v151
    %v1143 = vunpack.c.l.b16 %v152
    %v1144 = vunpack.c.l.b16 %v153
    %v1145 = vunpack.c.l.b16 %v154
    %v1146 = vunpack.c.l.b16 %v155
    %v1147 = vunpack.c.l.b16 %v156
    %v1148 = vunpack.c.l.b16 %v157
    %v1149 = vunpack.c.l.b16 %v158
    %v1150 = vunpack.c.l.b16 %v159
    %v1151 = vunpack.c.l.b16 %v160
    %v1152 = vunpack.c.l.b16 %v161
    %v1153 = vunpack.c.l.b16 %v162
    %v1154 = vunpack.c.l.b16 %v163
    %v1155 = vunpack.c.l.b16 %v164
    %v1156 = vunpack.c.l.b16 %v165
    %v1157 = vunpack.c.l.b16 %v166
    %v1158 = vunpack.c.l.b16 %v167
    %v1159 = vunpack.c.l.b16 %v168
    %v1160 = vunpack.c.l.b16 %v169
    %v1161 = vunpack.c.l.b16 %v170
    %v1162 = vunpack.c.l.b16 %v171
    %v1163 = vunpack.c.l.b16 %v172
    %v1164 = vunpack.c.l.b16 %v173
    %v1165 = vunpack.c.l.b16 %v174
    %v1166 = vunpack.c.l.b16 %v175
    %v1167 = vunpack.c.l.b16 %v176
    %v1168 = vunpack.c.l.b16 %v177
    %v1169 = vunpack.c.l.b16 %v178
    %v1170 = vunpack.c.l.b16 %v179
    %v1171 = vunpack.c.l.b16 %v180
    %v1172 = vunpack.c.l.b16 %v181
    %v1173 = vunpack.c.l.b16 %v182
    %v1174 = vunpack.c.l.b16 %v183
    %v1175 = vunpack.c.l.b16 %v184
    %v1176 = vunpack.c.l.b16 %v185
    %v1177 = vunpack.c.l.b16 %v186
    %v1178 = vunpack.c.l.b16 %v187
    %v1179 = vunpack.c.l.b16 %v188
    %v1180 = vunpack.c.l.b16 %v189
    %v1181 = vunpack.c.l.b16 %v190
    %v1182 = vunpack.c.l.b16 %v191
    %v1183 = vunpack.c.l.b16 %v192
    %v1184 = vunpack.c.l.b16 %v193
    %v1185 = vunpack.c.l.b16 %v194
    %v1186 = vunpack.c.l.b16 %v195
    %v1187 = vunpack.c.l.b16 %v196
    %v1188 = vunpack.c.l.b16 %v197
    %v1189 = vunpack.c.l.b16 %v198
    %v1190 = vunpack.c.l.b16 %v199
    %v1191 = vunpack.c.l.b16 %v200
    %v1192 = vunpack.c.l.b16 %v201
    %v1193 = vunpack.c.l.b16 %v202
    %v1194 = vunpack.c.l.b16 %v203
    %v1195 = vunpack.c.l.b16 %v204
    %v1196 = vunpack.c.l.b16 %v205
    %v1197 = vunpack.c.l.b16 %v206
    %v1198 = vunpack.c.l.b16 %v207
    %v1199 = vunpack.c.l.b16 %v208
    %v1200 = vunpack.c.l.b16 %v209
    %v1201 = vunpack.c.l.b16 %v210
    %v1202 = vunpack.c.l.b16 %v211
    %v1203 = vunpack.c.l.b16 %v212
    %v1204 = vunpack.c.l.b16 %v213
    %v1205 = vunpack.c.l.b16 %v214
    %v1206 = vunpack.c.l.b16 %v215
    %v1207 = vunpack.c.l.b16 %v216
    %v1208 = vunpack.c.l.b16 %v217
    %v1209 = vunpack.c.l.b16 %v218
    %v1210 = vunpack.c.l.b16 %v219
    %v1211 = vunpack.c.l.b16 %v220
    %v1212 = vunpack.c.l.b16 %v221
    %v1213 = vunpack.c.l.b16 %v222
    %v1214 = vunpack.c.l.b16 %v223
    %v1215 = vunpack.c.l.b16 %v224
    %v1216 = vunpack.c.l.b16 %v225
    %v1217 = vunpack.c.l.b16 %v226
    %v1218 = vunpack.c.l.b16 %v227
    %v1219 = vunpack.c.l.b16 %v228
    %v1220 = vunpack.c.l.b16 %v229
    %v1221 = vunpack.c.l.b16 %v230
    %v1222 = vunpack.c.l.b16 %v231
    %v1223 = vunpack.c.l.b16 %v232
    %v1224 = vpack.c.b16 %v1113, %v1112
    %v1225 = vpack.c.b16 %v1115, %v1114
    %v1226 = vpack.c.b16 %v1117, %v1116
    %v1227 = vpack.c.b16 %v1119, %v1118
    %v1228 = vpack.c.b16 %v1121, %v1120
    %v1229 = vpack.c.b16 %v1123, %v1122
    %v1230 = vpack.c.b16 %v1125, %v1124
    %v1231 = vpack.c.b16 %v1127, %v1126
    %v1232 = vpack.c.b16 %v1129, %v1128
    %v1233 = vpack.c.b16 %v1131, %v1130
    %v1234 = vpack.c.b16 %v1133, %v1132
    %v1235 = vpack.c.b16 %v1135, %v1134
    %v1236 = vpack.c.b16 %v1137, %v1136
    %v1237 = vpack.c.b16 %v1139, %v1138
    %v1238 = vpack.c.b16 %v1141, %v1140
    %v1239 = vpack.c.b16 %v1143, %v1142
    %v1240 = vpack.c.b16 %v1145, %v1144
    %v1241 = vpack.c.b16 %v1147, %v1146
    %v1242 = vpack.c.b16 %v1149, %v1148
    %v1243 = vpack.c.b16 %v1151, %v1150
    %v1244 = vpack.c.b16 %v1153, %v1152
    %v1245 = vpack.c.b16 %v1155, %v1154
    %v1246 = vpack.c.b16 %v1157, %v1156
    %v1247 = vpack.c.b16 %v1159, %v1158
    %v1248 = vpack.c.b16 %v1161, %v1160
    %v1249 = vpack.c.b16 %v1163, %v1162
    %v1250 = vpack.c.b16 %v1165, %v1164
    %v1251 = vpack.c.b16 %v1167, %v1166
    %v1252 = vpack.c.b16 %v1169, %v1168
    %v1253 = vpack.c.b16 %v1171, %v1170
    %v1254 = vpack.c.b16 %v1173, %v1172
    %v1255 = vpack.c.b16 %v1175, %v1174
    %v1256 = vpack.c.b16 %v1177, %v1176
    %v1257 = vpack.c.b16 %v1179, %v1178
    %v1258 = vpack.c.b16 %v1181, %v1180
    %v1259 = vpack.c.b16 %v1183, %v1182
    %v1260 = vpack.c.b16 %v1185, %v1184
    %v1261 = vpack.c.b16 %v1187, %v1186
    %v1262 = vpack.c.b16 %v1189, %v1188
    %v1263 = vpack.c.b16 %v1191, %v1190
    %v1264 = vpack.c.b16 %v1193, %v1192
    %v1265 = vpack.c.b16 %v1195, %v1194
    %v1266 = vpack.c.b16 %v1197, %v1196
    %v1267 = vpack.c.b16 %v1199, %v1198
    %v1268 = vpack.c.b16 %v1201, %v1200
    %v1269 = vpack.c.b16 %v1203, %v1202
    %v1270 = vpack.c.b16 %v1205, %v1204
    %v1271 = vpack.c.b16 %v1207, %v1206
    %v1272 = vpack.c.b16 %v1209, %v1208
    %v1273 = vpack.c.b16 %v1211, %v1210
    %v1274 = vpack.c.b16 %v1213, %v1212
    %v1275 = vpack.c.b16 %v1215, %v1214
    %v1276 = vpack.c.b16 %v1217, %v1216
    %v1277 = vpack.c.b16 %v1219, %v1218
    %v1278 = vpack.c.b16 %v1221, %v1220
    %v1279 = vpack.c.b16 %v1223, %v1222
    %1336 = vmatprep.subr.bf16.mxu0 0
    %1337 = vmatpush1.bf16.msra.mxu0 %v1224
    %1338 = vmatprep.subr.bf16.mxu0 0
    %1339 = vmatpush1.bf16.msra.mxu0 %v1225
    %1340 = vmatprep.subr.bf16.mxu0 0
    %1341 = vmatpush1.bf16.msra.mxu0 %v1226
    %1342 = vmatprep.subr.bf16.mxu0 0
    %1343 = vmatpush1.bf16.msra.mxu0 %v1227
    %1344 = vmatprep.subr.bf16.mxu0 0
    %1345 = vmatpush1.bf16.msra.mxu0 %v1228
    %1346 = vmatprep.subr.bf16.mxu0 0
    %1347 = vmatpush1.bf16.msra.mxu0 %v1229
    %1348 = vmatprep.subr.bf16.mxu0 0
    %1349 = vmatpush1.bf16.msra.mxu0 %v1230
    %1350 = vmatprep.subr.bf16.mxu0 0
    %1351 = vmatpush1.bf16.msra.mxu0 %v1231
    %1352 = vmatprep.subr.bf16.mxu0 0
    %1353 = vmatpush1.bf16.msra.mxu0 %v1232
    %1354 = vmatprep.subr.bf16.mxu0 0
    %1355 = vmatpush1.bf16.msra.mxu0 %v1233
    %1356 = vmatprep.subr.bf16.mxu0 0
    %1357 = vmatpush1.bf16.msra.mxu0 %v1234
    %1358 = vmatprep.subr.bf16.mxu0 0
    %1359 = vmatpush1.bf16.msra.mxu0 %v1235
    %1360 = vmatprep.subr.bf16.mxu0 0
    %1361 = vmatpush1.bf16.msra.mxu0 %v1236
    %1362 = vmatprep.subr.bf16.mxu0 0
    %1363 = vmatpush1.bf16.msra.mxu0 %v1237
    %1364 = vmatprep.subr.bf16.mxu0 0
    %1365 = vmatpush1.bf16.msra.mxu0 %v1238
    %1366 = vmatprep.subr.bf16.mxu0 0
    %1367 = vmatpush1.bf16.msra.mxu0 %v1239
    %1368 = vmatprep.mubr.bf16.mxu0 %v988
    %1369 = vmatmul.mubr.bf16.gmra.mrb[0].mxu0 %v987
    %v1370 = vpop.f32.mrb[0].mxu0
    %v1371 = vadd.f32 %v998, %v1370
    %v1372 = vpop.f32.mrb[0].mxu0
    %v1373 = vpop.f32.mrb[0].mxu0
    %v1374 = vpop.f32.mrb[0].mxu0
    %1375 = vdwg.mxu0
    %1376 = vmatprep.subr.bf16.mxu0 0
    %1377 = vmatpush1.bf16.msra.mxu0 %v1240
    %1378 = vmatprep.subr.bf16.mxu0 0
    %1379 = vmatpush1.bf16.msra.mxu0 %v1241
    %1380 = vmatprep.subr.bf16.mxu0 0
    %1381 = vmatpush1.bf16.msra.mxu0 %v1242
    %1382 = vmatprep.subr.bf16.mxu0 0
    %1383 = vmatpush1.bf16.msra.mxu0 %v1243
    %1384 = vmatprep.subr.bf16.mxu0 0
    %1385 = vmatpush1.bf16.msra.mxu0 %v1244
    %1386 = vmatprep.subr.bf16.mxu0 0
    %1387 = vmatpush1.bf16.msra.mxu0 %v1245
    %1388 = vmatprep.subr.bf16.mxu0 0
    %1389 = vmatpush1.bf16.msra.mxu0 %v1246
    %1390 = vmatprep.subr.bf16.mxu0 0
    %1391 = vmatpush1.bf16.msra.mxu0 %v1247
    %1392 = vmatprep.subr.bf16.mxu0 0
    %1393 = vmatpush1.bf16.msra.mxu0 %v1248
    %1394 = vmatprep.subr.bf16.mxu0 0
    %1395 = vmatpush1.bf16.msra.mxu0 %v1249
    %1396 = vmatprep.subr.bf16.mxu0 0
    %1397 = vmatpush1.bf16.msra.mxu0 %v1250
    %1398 = vmatprep.subr.bf16.mxu0 0
    %1399 = vmatpush1.bf16.msra.mxu0 %v1251
    %1400 = vmatprep.subr.bf16.mxu0 0
    %1401 = vmatpush1.bf16.msra.mxu0 %v1252
    %1402 = vmatprep.subr.bf16.mxu0 0
    %1403 = vmatpush1.bf16.msra.mxu0 %v1253
    %1404 = vmatprep.subr.bf16.mxu0 0
    %1405 = vmatpush1.bf16.msra.mxu0 %v1254
    %1406 = vmatprep.subr.bf16.mxu0 0
    %1407 = vmatpush1.bf16.msra.mxu0 %v1255
    %1408 = vmatprep.mubr.bf16.mxu0 %v990
    %1409 = vmatmul.mubr.bf16.gmra.mrb[0].mxu0 %v989
    %v1410 = vpop.f32.mrb[0].mxu0
    %v1411 = vadd.f32 %v1371, %v1410
    %v1412 = vpop.f32.mrb[0].mxu0
    %v1413 = vpop.f32.mrb[0].mxu0
    %v1414 = vpop.f32.mrb[0].mxu0
    %1415 = vdwg.mxu0
    %1416 = vmatprep.subr.bf16.mxu0 0
    %1417 = vmatpush1.bf16.msra.mxu0 %v1256
    %1418 = vmatprep.subr.bf16.mxu0 0
    %1419 = vmatpush1.bf16.msra.mxu0 %v1257
    %1420 = vmatprep.subr.bf16.mxu0 0
    %1421 = vmatpush1.bf16.msra.mxu0 %v1258
    %1422 = vmatprep.subr.bf16.mxu0 0
    %1423 = vmatpush1.bf16.msra.mxu0 %v1259
    %1424 = vmatprep.subr.bf16.mxu0 0
    %1425 = vmatpush1.bf16.msra.mxu0 %v1260
    %1426 = vmatprep.subr.bf16.mxu0 0
    %1427 = vmatpush1.bf16.msra.mxu0 %v1261
    %1428 = vmatprep.subr.bf16.mxu0 0
    %1429 = vmatpush1.bf16.msra.mxu0 %v1262
    %1430 = vmatprep.subr.bf16.mxu0 0
    %1431 = vmatpush1.bf16.msra.mxu0 %v1263
    %1432 = vmatprep.subr.bf16.mxu0 0
    %1433 = vmatpush1.bf16.msra.mxu0 %v1264
    %1434 = vmatprep.subr.bf16.mxu0 0
    %1435 = vmatpush1.bf16.msra.mxu0 %v1265
    %1436 = vmatprep.subr.bf16.mxu0 0
    %1437 = vmatpush1.bf16.msra.mxu0 %v1266
    %1438 = vmatprep.subr.bf16.mxu0 0
    %1439 = vmatpush1.bf16.msra.mxu0 %v1267
    %1440 = vmatprep.subr.bf16.mxu0 0
    %1441 = vmatpush1.bf16.msra.mxu0 %v1268
    %1442 = vmatprep.subr.bf16.mxu0 0
    %1443 = vmatpush1.bf16.msra.mxu0 %v1269
    %1444 = vmatprep.subr.bf16.mxu0 0
    %1445 = vmatpush1.bf16.msra.mxu0 %v1270
    %1446 = vmatprep.subr.bf16.mxu0 0
    %1447 = vmatpush1.bf16.msra.mxu0 %v1271
    %1448 = vmatprep.mubr.bf16.mxu0 %v992
    %1449 = vmatmul.mubr.bf16.gmra.mrb[0].mxu0 %v991
    %v1450 = vpop.f32.mrb[0].mxu0
    %v1451 = vadd.f32 %v1411, %v1450
    %v1452 = vpop.f32.mrb[0].mxu0
    %v1453 = vpop.f32.mrb[0].mxu0
    %v1454 = vpop.f32.mrb[0].mxu0
    %1455 = vdwg.mxu0
    %1456 = vmatprep.subr.bf16.mxu0 0
    %1457 = vmatpush1.bf16.msra.mxu0 %v1272
    %1458 = vmatprep.subr.bf16.mxu0 0
    %1459 = vmatpush1.bf16.msra.mxu0 %v1273
    %1460 = vmatprep.subr.bf16.mxu0 0
    %1461 = vmatpush1.bf16.msra.mxu0 %v1274
    %1462 = vmatprep.subr.bf16.mxu0 0
    %1463 = vmatpush1.bf16.msra.mxu0 %v1275
    %1464 = vmatprep.subr.bf16.mxu0 0
    %1465 = vmatpush1.bf16.msra.mxu0 %v1276
    %1466 = vmatprep.subr.bf16.mxu0 0
    %1467 = vmatpush1.bf16.msra.mxu0 %v1277
    %1468 = vmatprep.subr.bf16.mxu0 0
    %1469 = vmatpush1.bf16.msra.mxu0 %v1278
    %1470 = vmatprep.subr.bf16.mxu0 0
    %1471 = vmatpush1.bf16.msra.mxu0 %v1279
    %1472 = vmatprep.subr.bf16.mxu0 0
    %1473 = vmatpush1.bf16.msra.mxu0 0
    %1474 = vmatprep.subr.bf16.mxu0 0
    %1475 = vmatpush1.bf16.msra.mxu0 0
    %1476 = vmatprep.subr.bf16.mxu0 0
    %1477 = vmatpush1.bf16.msra.mxu0 0
    %1478 = vmatprep.subr.bf16.mxu0 0
    %1479 = vmatpush1.bf16.msra.mxu0 0
    %1480 = vmatprep.subr.bf16.mxu0 0
    %1481 = vmatpush1.bf16.msra.mxu0 0
    %1482 = vmatprep.subr.bf16.mxu0 0
    %1483 = vmatpush1.bf16.msra.mxu0 0
    %1484 = vmatprep.subr.bf16.mxu0 0
    %1485 = vmatpush1.bf16.msra.mxu0 0
    %1486 = vmatprep.subr.bf16.mxu0 0
    %1487 = vmatpush1.bf16.msra.mxu0 0
    %1488 = vmatprep.mubr.bf16.mxu0 0
    %1489 = vmatmul.mubr.bf16.gmra.mrb[0].mxu0 %v993
    %v1490 = vpop.f32.mrb[0].mxu0
    %v1491 = vadd.f32 %v1451, %v1490
    %v1492 = vpop.f32.mrb[0].mxu0
    %v1493 = vpop.f32.mrb[0].mxu0
    %v1494 = vpop.f32.mrb[0].mxu0
    %1495 = vdwg.mxu0
    %v1496 = vadd.f32 %v1491, 0.0
    %v1497 = vsub.f32 %v1496, %v425
    %vm1498 = vcmp.gt.f32.partialorder %v1497, 1.0
    %v1499 = vsel %vm1498, 1, 0
    %v1500 = vcvt.s32.f32 %v1499
    %1501 = vst [vmem:[#allocation2] sm:$0x3] %v1500
    %1502 = vst [vmem:[#allocation4] sm:$0x3] %v1497
    %s1503 = scalar_lea.vmem %s0, 36
    %v1504 = vld [vmem:[%s1503] sm:$0xf]
    %v1505 = vld [vmem:[%s1503 + $0x4] sm:$0xf]
    %v1506 = vld [vmem:[%s1503 + $0x8] sm:$0xf]
    %v1507 = vld [vmem:[%s1503 + $0xc] sm:$0xf]
    %v1508 = vld [vmem:[%s1503 + $0x10] sm:$0xf]
    %v1509 = vld [vmem:[%s1503 + $0x14] sm:$0xf]
    %v1510 = vld [vmem:[%s1503 + $0x18] sm:$0xf]
    %v1511 = vld [vmem:[%s1503 + $0x1c] sm:$0xf]
    %v1512 = vld [vmem:[%s1503 + $0x20] sm:$0xf]
    %v1522 = vunpack.c.l.b16 %v1504
    %v1523 = vunpack.c.l.b16 %v1505
    %v1524 = vunpack.c.l.b16 %v1506
    %v1525 = vunpack.c.l.b16 %v1507
    %v1526 = vunpack.c.l.b16 %v1508
    %v1527 = vunpack.c.l.b16 %v1509
    %v1528 = vunpack.c.l.b16 %v1510
    %v1529 = vunpack.c.l.b16 %v1511
    %v1530 = vunpack.c.l.b16 %v1512
    %v1531 = vpack.c.b16 %v1523, %v1522
    %v1532 = vpack.c.b16 %v1525, %v1524
    %v1533 = vpack.c.b16 %v1527, %v1526
    %v1534 = vpack.c.b16 %v1529, %v1528
    %v1535 = vpack.c.b16 %v1530, %v1530
    %v1537 = vsel %vm303, %v1531, 0
    %v1540 = vsel %vm303, %v1532, 0
    %v1543 = vsel %vm303, %v1533, 0
    %v1546 = vsel %vm303, %v1534, 0
    %v1549 = vsel %vm303, %v1535, 0
    %1551 = vmatprep.subr.bf16.mxu0 0
    %1552 = vmatpush1.bf16.msra.mxu0 %v294
    %1553 = vmatprep.subr.bf16.mxu0 0
    %1554 = vmatpush1.bf16.msra.mxu0 %v295
    %1555 = vmatprep.subr.bf16.mxu0 0
    %1556 = vmatpush1.bf16.msra.mxu0 %v296
    %1557 = vmatprep.subr.bf16.mxu0 0
    %1558 = vmatpush1.bf16.msra.mxu0 %v297
    %1559 = vmatprep.subr.bf16.mxu0 0
    %1560 = vmatpush1.bf16.msra.mxu0 %v324
    %1561 = vmatprep.subr.bf16.mxu0 0
    %1562 = vmatpush1.bf16.msra.mxu0 0
    %1563 = vmatprep.subr.bf16.mxu0 0
    %1564 = vmatpush1.bf16.msra.mxu0 0
    %1565 = vmatprep.subr.bf16.mxu0 0
    %1566 = vmatpush1.bf16.msra.mxu0 0
    %1567 = vmatprep.subr.bf16.mxu0 0
    %1568 = vmatpush1.bf16.msra.mxu0 0
    %1569 = vmatprep.subr.bf16.mxu0 0
    %1570 = vmatpush1.bf16.msra.mxu0 0
    %1571 = vmatprep.subr.bf16.mxu0 0
    %1572 = vmatpush1.bf16.msra.mxu0 0
    %1573 = vmatprep.subr.bf16.mxu0 0
    %1574 = vmatpush1.bf16.msra.mxu0 0
    %1575 = vmatprep.subr.bf16.mxu0 0
    %1576 = vmatpush1.bf16.msra.mxu0 0
    %1577 = vmatprep.subr.bf16.mxu0 0
    %1578 = vmatpush1.bf16.msra.mxu0 0
    %1579 = vmatprep.subr.bf16.mxu0 0
    %1580 = vmatpush1.bf16.msra.mxu0 0
    %1581 = vmatprep.subr.bf16.mxu0 0
    %1582 = vmatpush1.bf16.msra.mxu0 0
    %1583 = vmatprep.mubr.bf16.mxu0 0
    %1584 = vmatmul.mubr.bf16.gmra.mrb[0].mxu0 %v1537
    %v1585 = vpop.f32.mrb[0].mxu0
    %v1586 = vadd.f32 %v249, %v1585
    %v1587 = vpop.f32.mrb[0].mxu0
    %v1588 = vpop.f32.mrb[0].mxu0
    %v1589 = vadd.f32 %v249, %v1588
    %v1590 = vpop.f32.mrb[0].mxu0
    %1591 = vmatprep.mubr.bf16.mxu0 0
    %1592 = vmatmul.mubr.bf16.gmra.mrb[0].mxu0 %v1540
    %v1593 = vpop.f32.mrb[0].mxu0
    %v1594 = vadd.f32 %v249, %v1593
    %v1595 = vpop.f32.mrb[0].mxu0
    %v1596 = vpop.f32.mrb[0].mxu0
    %v1597 = vadd.f32 %v249, %v1596
    %v1598 = vpop.f32.mrb[0].mxu0
    %1599 = vmatprep.mubr.bf16.mxu0 0
    %1600 = vmatmul.mubr.bf16.gmra.mrb[0].mxu0 %v1543
    %v1601 = vpop.f32.mrb[0].mxu0
    %v1602 = vadd.f32 %v249, %v1601
    %v1603 = vpop.f32.mrb[0].mxu0
    %v1604 = vpop.f32.mrb[0].mxu0
    %v1605 = vadd.f32 %v249, %v1604
    %v1606 = vpop.f32.mrb[0].mxu0
    %1607 = vmatprep.mubr.bf16.mxu0 0
    %1608 = vmatmul.mubr.bf16.gmra.mrb[0].mxu0 %v1546
    %v1609 = vpop.f32.mrb[0].mxu0
    %v1610 = vadd.f32 %v249, %v1609
    %v1611 = vpop.f32.mrb[0].mxu0
    %v1612 = vpop.f32.mrb[0].mxu0
    %v1613 = vadd.f32 %v249, %v1612
    %v1614 = vpop.f32.mrb[0].mxu0
    %1615 = vmatprep.mubr.bf16.mxu0 0
    %1616 = vmatmul.mubr.bf16.gmra.mrb[0].mxu0 %v1549
    %v1617 = vpop.f32.mrb[0].mxu0
    %v1618 = vadd.f32 %v249, %v1617
    %v1619 = vpop.f32.mrb[0].mxu0
    %v1620 = vpop.f32.mrb[0].mxu0
    %v1621 = vpop.f32.mrb[0].mxu0
    %1622 = vdwg.mxu0
    %v1628 = vrot.slane %v1602, 4
    %v1629 = vrot.slane %v1605, 4
    %v1630 = vsel %vm403, %v1628, %v1629
    %v1631 = vrot.slane %v1610, 4
    %v1632 = vsel %vm403, %v1629, %v1631
    %v1633 = vrot.slane %v1613, 4
    %v1634 = vsel %vm403, %v1631, %v1633
    %v1635 = vrot.slane %v1618, 4
    %v1636 = vsel %vm403, %v1633, %v1635
    %v1642 = vmax.f32 %v1586, %v1630
    %v1643 = vmax.f32 %v1589, %v1632
    %v1644 = vmax.f32 %v1594, %v1634
    %v1645 = vmax.f32 %v1597, %v1636
    %v1646 = vmax.f32 %v1602, %v1635
    %v1647 = vmul.f32 %v431, 0.7
    %v1648 = vmul.f32 %v432, 0.7
    %v1649 = vmul.f32 %v433, 0.7
    %v1650 = vmul.f32 %v434, 0.7
    %v1651 = vmul.f32 %v435, 0.7
    %v1652 = vadd.f32 %v1647, %v1642
    %v1653 = vadd.f32 %v1648, %v1643
    %v1654 = vadd.f32 %v1649, %v1644
    %v1655 = vadd.f32 %v1650, %v1645
    %v1656 = vadd.f32 %v1651, %v1646
    %v1657 = vsub.f32 %v1652, %v446
    %v1658 = vsub.f32 %v1653, %v447
    %v1659 = vsub.f32 %v1654, %v448
    %v1660 = vsub.f32 %v1655, %v449
    %v1661 = vsub.f32 %v1656, %v450
    %vm1662 = vcmp.gt.f32.partialorder %v1657, 1.0
    %vm1663 = vcmp.gt.f32.partialorder %v1658, 1.0
    %vm1664 = vcmp.gt.f32.partialorder %v1659, 1.0
    %vm1665 = vcmp.gt.f32.partialorder %v1660, 1.0
    %vm1666 = vcmp.gt.f32.partialorder %v1661, 1.0
    %v1667 = vsel %vm1662, 1, 0
    %v1668 = vsel %vm1663, 1, 0
    %v1669 = vsel %vm1664, 1, 0
    %v1670 = vsel %vm1665, 1, 0
    %v1671 = vsel %vm1666, 1, 0
    %v1672 = vcvt.s32.f32 %v1667
    %v1673 = vcvt.s32.f32 %v1668
    %v1674 = vcvt.s32.f32 %v1669
    %v1675 = vcvt.s32.f32 %v1670
    %v1676 = vcvt.s32.f32 %v1671
    %v1682 = vrot.slane %v1672, 1
    %v1683 = vrot.slane %v1673, 1
    %v1684 = vsel %vm456, %v1682, %v1683
    %v1685 = vrot.slane %v1674, 1
    %v1686 = vsel %vm456, %v1683, %v1685
    %v1687 = vrot.slane %v1675, 1
    %v1688 = vsel %vm456, %v1685, %v1687
    %v1689 = vrot.slane %v1676, 1
    %v1690 = vsel %vm456, %v1687, %v1689
    %v1695 = vrot.slane %v1672, 2
    %v1696 = vrot.slane %v1673, 2
    %v1697 = vsel %vm320, %v1695, %v1696
    %v1698 = vrot.slane %v1674, 2
    %v1699 = vsel %vm320, %v1696, %v1698
    %v1700 = vrot.slane %v1675, 2
    %v1701 = vsel %vm320, %v1698, %v1700
    %v1702 = vrot.slane %v1676, 2
    %v1703 = vsel %vm320, %v1700, %v1702
    %v1708 = vrot.slane %v1672, 3
    %v1709 = vrot.slane %v1673, 3
    %v1710 = vsel %vm319, %v1708, %v1709
    %v1711 = vrot.slane %v1674, 3
    %v1712 = vsel %vm319, %v1709, %v1711
    %v1713 = vrot.slane %v1675, 3
    %v1714 = vsel %vm319, %v1711, %v1713
    %v1715 = vrot.slane %v1676, 3
    %v1716 = vsel %vm319, %v1713, %v1715
    %v1721 = vrot.slane %v1672, 4
    %v1722 = vrot.slane %v1673, 4
    %v1723 = vsel %vm403, %v1721, %v1722
    %v1724 = vrot.slane %v1674, 4
    %v1725 = vsel %vm403, %v1722, %v1724
    %v1726 = vrot.slane %v1675, 4
    %v1727 = vsel %vm403, %v1724, %v1726
    %v1728 = vrot.slane %v1676, 4
    %v1729 = vsel %vm403, %v1726, %v1728
    %v1734 = vpack.c.bf16 %v1673, %v1672
    %v1735 = vpack.c.bf16 %v1686, %v1684
    %v1736 = vpack.c.bf16 %v1699, %v1697
    %v1737 = vpack.c.bf16 %v1712, %v1710
    %v1738 = vpack.c.bf16 %v1725, %v1723
    %v1739 = vpack.c.bf16 %v1675, %v1674
    %v1740 = vpack.c.bf16 %v1690, %v1688
    %v1741 = vpack.c.bf16 %v1703, %v1701
    %v1742 = vpack.c.bf16 %v1716, %v1714
    %v1743 = vpack.c.bf16 %v1729, %v1727
    %1744 = vmatprep.subr.bf16.mxu0 0
    %1745 = vmatpush1.bf16.msra.mxu0 %v685
    %1746 = vmatprep.subr.bf16.mxu0 0
    %1747 = vmatpush1.bf16.msra.mxu0 %v686
    %1748 = vmatprep.subr.bf16.mxu0 0
    %1749 = vmatpush1.bf16.msra.mxu0 %v687
    %1750 = vmatprep.subr.bf16.mxu0 0
    %1751 = vmatpush1.bf16.msra.mxu0 %v688
    %1752 = vmatprep.subr.bf16.mxu0 0
    %1753 = vmatpush1.bf16.msra.mxu0 %v689
    %1754 = vmatprep.subr.bf16.mxu0 0
    %1755 = vmatpush1.bf16.msra.mxu0 %v690
    %1756 = vmatprep.subr.bf16.mxu0 0
    %1757 = vmatpush1.bf16.msra.mxu0 %v691
    %1758 = vmatprep.subr.bf16.mxu0 0
    %1759 = vmatpush1.bf16.msra.mxu0 %v692
    %1760 = vmatprep.subr.bf16.mxu0 0
    %1761 = vmatpush1.bf16.msra.mxu0 %v693
    %1762 = vmatprep.subr.bf16.mxu0 0
    %1763 = vmatpush1.bf16.msra.mxu0 %v694
    %1764 = vmatprep.subr.bf16.mxu0 0
    %1765 = vmatpush1.bf16.msra.mxu0 %v695
    %1766 = vmatprep.subr.bf16.mxu0 0
    %1767 = vmatpush1.bf16.msra.mxu0 %v696
    %1768 = vmatprep.subr.bf16.mxu0 0
    %1769 = vmatpush1.bf16.msra.mxu0 %v697
    %1770 = vmatprep.subr.bf16.mxu0 0
    %1771 = vmatpush1.bf16.msra.mxu0 %v698
    %1772 = vmatprep.subr.bf16.mxu0 0
    %1773 = vmatpush1.bf16.msra.mxu0 %v699
    %1774 = vmatprep.subr.bf16.mxu0 0
    %1775 = vmatpush1.bf16.msra.mxu0 %v700
    %1776 = vmatprep.mubr.bf16.mxu0 %v1735
    %1777 = vmatmul.mubr.bf16.gmra.mrb[0].mxu0 %v1734
    %v1778 = vpop.f32.mrb[0].mxu0
    %v1779 = vadd.f32 %v523, %v1778
    %v1780 = vpop.f32.mrb[0].mxu0
    %v1781 = vpop.f32.mrb[0].mxu0
    %v1782 = vadd.f32 %v523, %v1781
    %v1783 = vpop.f32.mrb[0].mxu0
    %1784 = vmatprep.mubr.bf16.mxu0 %v1740
    %1785 = vmatmul.mubr.bf16.gmra.mrb[0].mxu0 %v1739
    %v1786 = vpop.f32.mrb[0].mxu0
    %v1787 = vadd.f32 %v523, %v1786
    %v1788 = vpop.f32.mrb[0].mxu0
    %v1789 = vpop.f32.mrb[0].mxu0
    %v1790 = vadd.f32 %v523, %v1789
    %v1791 = vpop.f32.mrb[0].mxu0
    %1792 = vdwg.mxu0
    %1793 = vmatprep.subr.bf16.mxu0 0
    %1794 = vmatpush1.bf16.msra.mxu0 %v701
    %1795 = vmatprep.subr.bf16.mxu0 0
    %1796 = vmatpush1.bf16.msra.mxu0 %v702
    %1797 = vmatprep.subr.bf16.mxu0 0
    %1798 = vmatpush1.bf16.msra.mxu0 %v703
    %1799 = vmatprep.subr.bf16.mxu0 0
    %1800 = vmatpush1.bf16.msra.mxu0 %v704
    %1801 = vmatprep.subr.bf16.mxu0 0
    %1802 = vmatpush1.bf16.msra.mxu0 %v705
    %1803 = vmatprep.subr.bf16.mxu0 0
    %1804 = vmatpush1.bf16.msra.mxu0 %v706
    %1805 = vmatprep.subr.bf16.mxu0 0
    %1806 = vmatpush1.bf16.msra.mxu0 %v707
    %1807 = vmatprep.subr.bf16.mxu0 0
    %1808 = vmatpush1.bf16.msra.mxu0 %v708
    %1809 = vmatprep.subr.bf16.mxu0 0
    %1810 = vmatpush1.bf16.msra.mxu0 %v709
    %1811 = vmatprep.subr.bf16.mxu0 0
    %1812 = vmatpush1.bf16.msra.mxu0 %v710
    %1813 = vmatprep.subr.bf16.mxu0 0
    %1814 = vmatpush1.bf16.msra.mxu0 %v711
    %1815 = vmatprep.subr.bf16.mxu0 0
    %1816 = vmatpush1.bf16.msra.mxu0 %v712
    %1817 = vmatprep.subr.bf16.mxu0 0
    %1818 = vmatpush1.bf16.msra.mxu0 %v713
    %1819 = vmatprep.subr.bf16.mxu0 0
    %1820 = vmatpush1.bf16.msra.mxu0 %v714
    %1821 = vmatprep.subr.bf16.mxu0 0
    %1822 = vmatpush1.bf16.msra.mxu0 %v715
    %1823 = vmatprep.subr.bf16.mxu0 0
    %1824 = vmatpush1.bf16.msra.mxu0 %v716
    %1825 = vmatprep.mubr.bf16.mxu0 %v1737
    %1826 = vmatmul.mubr.bf16.gmra.mrb[0].mxu0 %v1736
    %v1827 = vpop.f32.mrb[0].mxu0
    %v1828 = vadd.f32 %v1779, %v1827
    %v1829 = vpop.f32.mrb[0].mxu0
    %v1830 = vpop.f32.mrb[0].mxu0
    %v1831 = vadd.f32 %v1782, %v1830
    %v1832 = vpop.f32.mrb[0].mxu0
    %1833 = vmatprep.mubr.bf16.mxu0 %v1742
    %1834 = vmatmul.mubr.bf16.gmra.mrb[0].mxu0 %v1741
    %v1835 = vpop.f32.mrb[0].mxu0
    %v1836 = vadd.f32 %v1787, %v1835
    %v1837 = vpop.f32.mrb[0].mxu0
    %v1838 = vpop.f32.mrb[0].mxu0
    %v1839 = vadd.f32 %v1790, %v1838
    %v1840 = vpop.f32.mrb[0].mxu0
    %1841 = vdwg.mxu0
    %1842 = vmatprep.subr.bf16.mxu0 0
    %1843 = vmatpush1.bf16.msra.mxu0 %v717
    %1844 = vmatprep.subr.bf16.mxu0 0
    %1845 = vmatpush1.bf16.msra.mxu0 %v718
    %1846 = vmatprep.subr.bf16.mxu0 0
    %1847 = vmatpush1.bf16.msra.mxu0 %v719
    %1848 = vmatprep.subr.bf16.mxu0 0
    %1849 = vmatpush1.bf16.msra.mxu0 %v720
    %1850 = vmatprep.subr.bf16.mxu0 0
    %1851 = vmatpush1.bf16.msra.mxu0 %v721
    %1852 = vmatprep.subr.bf16.mxu0 0
    %1853 = vmatpush1.bf16.msra.mxu0 %v722
    %1854 = vmatprep.subr.bf16.mxu0 0
    %1855 = vmatpush1.bf16.msra.mxu0 %v723
    %1856 = vmatprep.subr.bf16.mxu0 0
    %1857 = vmatpush1.bf16.msra.mxu0 %v724
    %1858 = vmatprep.subr.bf16.mxu0 0
    %1859 = vmatpush1.bf16.msra.mxu0 0
    %1860 = vmatprep.subr.bf16.mxu0 0
    %1861 = vmatpush1.bf16.msra.mxu0 0
    %1862 = vmatprep.subr.bf16.mxu0 0
    %1863 = vmatpush1.bf16.msra.mxu0 0
    %1864 = vmatprep.subr.bf16.mxu0 0
    %1865 = vmatpush1.bf16.msra.mxu0 0
    %1866 = vmatprep.subr.bf16.mxu0 0
    %1867 = vmatpush1.bf16.msra.mxu0 0
    %1868 = vmatprep.subr.bf16.mxu0 0
    %1869 = vmatpush1.bf16.msra.mxu0 0
    %1870 = vmatprep.subr.bf16.mxu0 0
    %1871 = vmatpush1.bf16.msra.mxu0 0
    %1872 = vmatprep.subr.bf16.mxu0 0
    %1873 = vmatpush1.bf16.msra.mxu0 0
    %1874 = vmatprep.mubr.bf16.mxu0 0
    %1875 = vmatmul.mubr.bf16.gmra.mrb[0].mxu0 %v1738
    %v1876 = vpop.f32.mrb[0].mxu0
    %v1877 = vadd.f32 %v1828, %v1876
    %v1878 = vpop.f32.mrb[0].mxu0
    %v1879 = vpop.f32.mrb[0].mxu0
    %v1880 = vadd.f32 %v1831, %v1879
    %v1881 = vpop.f32.mrb[0].mxu0
    %1882 = vmatprep.mubr.bf16.mxu0 0
    %1883 = vmatmul.mubr.bf16.gmra.mrb[0].mxu0 %v1743
    %v1884 = vpop.f32.mrb[0].mxu0
    %v1885 = vadd.f32 %v1836, %v1884
    %v1886 = vpop.f32.mrb[0].mxu0
    %v1887 = vpop.f32.mrb[0].mxu0
    %v1888 = vadd.f32 %v1839, %v1887
    %v1889 = vpop.f32.mrb[0].mxu0
    %1890 = vdwg.mxu0
    %v1895 = vrot.slane %v1877, 1
    %v1896 = vrot.slane %v1880, 1
    %v1897 = vsel %vm456, %v1895, %v1896
    %v1898 = vrot.slane %v1885, 1
    %v1899 = vsel %vm456, %v1896, %v1898
    %v1900 = vrot.slane %v1888, 1
    %v1901 = vsel %vm456, %v1898, %v1900
    %v1906 = vmax.f32 %v1877, %v1897
    %v1907 = vmax.f32 %v1880, %v1899
    %v1908 = vmax.f32 %v1885, %v1901
    %v1909 = vmax.f32 %v1888, %v1900
    %v1910 = vmul.f32 %v935, 0.7
    %v1911 = vmul.f32 %v936, 0.7
    %v1912 = vmul.f32 %v937, 0.7
    %v1913 = vmul.f32 %v938, 0.7
    %v1914 = vadd.f32 %v1910, %v1906
    %v1915 = vadd.f32 %v1911, %v1907
    %v1916 = vadd.f32 %v1912, %v1908
    %v1917 = vadd.f32 %v1913, %v1909
    %v1918 = vsub.f32 %v1914, %v947
    %v1919 = vsub.f32 %v1915, %v948
    %v1920 = vsub.f32 %v1916, %v949
    %v1921 = vsub.f32 %v1917, %v950
    %vm1922 = vcmp.gt.f32.partialorder %v1918, 1.0
    %vm1923 = vcmp.gt.f32.partialorder %v1919, 1.0
    %vm1924 = vcmp.gt.f32.partialorder %v1920, 1.0
    %vm1925 = vcmp.gt.f32.partialorder %v1921, 1.0
    %v1926 = vsel %vm1922, 1, 0
    %v1927 = vsel %vm1923, 1, 0
    %v1928 = vsel %vm1924, 1, 0
    %v1929 = vsel %vm1925, 1, 0
    %v1930 = vcvt.s32.f32 %v1926
    %v1931 = vcvt.s32.f32 %v1927
    %v1932 = vcvt.s32.f32 %v1928
    %v1933 = vcvt.s32.f32 %v1929
    %v1935 = vrot.slane %v1932, 1
    %v1937 = vsel %vm954, %v1930, %v1935
    %v1939 = vrot.slane %v1930, 2
    %v1941 = vrot.slane %v1932, 3
    %v1943 = vsel %vm954, %v1939, %v1941
    %v1944 = vrot.slane %v1930, 4
    %v1946 = vrot.slane %v1932, 5
    %v1948 = vsel %vm954, %v1944, %v1946
    %v1949 = vrot.slane %v1930, 6
    %v1952 = vrot.slane %v1933, 7
    %v1954 = vsel %vm954, %v1949, %v1952
    %v1955 = vrot.slane %v1933, 1
    %v1957 = vsel %vm954, %v1931, %v1955
    %v1959 = vrot.slane %v1931, 2
    %v1961 = vrot.slane %v1933, 3
    %v1963 = vsel %vm954, %v1959, %v1961
    %v1964 = vrot.slane %v1931, 4
    %v1966 = vrot.slane %v1933, 5
    %v1968 = vsel %vm954, %v1964, %v1966
    %v1969 = vpack.c.bf16 %v1937, %v1937
    %v1970 = vpack.c.bf16 %v1943, %v1943
    %v1971 = vpack.c.bf16 %v1948, %v1948
    %v1972 = vpack.c.bf16 %v1954, %v1954
    %v1973 = vpack.c.bf16 %v1957, %v1957
    %v1974 = vpack.c.bf16 %v1963, %v1963
    %v1975 = vpack.c.bf16 %v1968, %v1968
    %1976 = vmatprep.subr.bf16.mxu0 0
    %1977 = vmatpush1.bf16.msra.mxu0 %v1224
    %1978 = vmatprep.subr.bf16.mxu0 0
    %1979 = vmatpush1.bf16.msra.mxu0 %v1225
    %1980 = vmatprep.subr.bf16.mxu0 0
    %1981 = vmatpush1.bf16.msra.mxu0 %v1226
    %1982 = vmatprep.subr.bf16.mxu0 0
    %1983 = vmatpush1.bf16.msra.mxu0 %v1227
    %1984 = vmatprep.subr.bf16.mxu0 0
    %1985 = vmatpush1.bf16.msra.mxu0 %v1228
    %1986 = vmatprep.subr.bf16.mxu0 0
    %1987 = vmatpush1.bf16.msra.mxu0 %v1229
    %1988 = vmatprep.subr.bf16.mxu0 0
    %1989 = vmatpush1.bf16.msra.mxu0 %v1230
    %1990 = vmatprep.subr.bf16.mxu0 0
    %1991 = vmatpush1.bf16.msra.mxu0 %v1231
    %1992 = vmatprep.subr.bf16.mxu0 0
    %1993 = vmatpush1.bf16.msra.mxu0 %v1232
    %1994 = vmatprep.subr.bf16.mxu0 0
    %1995 = vmatpush1.bf16.msra.mxu0 %v1233
    %1996 = vmatprep.subr.bf16.mxu0 0
    %1997 = vmatpush1.bf16.msra.mxu0 %v1234
    %1998 = vmatprep.subr.bf16.mxu0 0
    %1999 = vmatpush1.bf16.msra.mxu0 %v1235
    %2000 = vmatprep.subr.bf16.mxu0 0
    %2001 = vmatpush1.bf16.msra.mxu0 %v1236
    %2002 = vmatprep.subr.bf16.mxu0 0
    %2003 = vmatpush1.bf16.msra.mxu0 %v1237
    %2004 = vmatprep.subr.bf16.mxu0 0
    %2005 = vmatpush1.bf16.msra.mxu0 %v1238
    %2006 = vmatprep.subr.bf16.mxu0 0
    %2007 = vmatpush1.bf16.msra.mxu0 %v1239
    %2008 = vmatprep.mubr.bf16.mxu0 %v1970
    %2009 = vmatmul.mubr.bf16.gmra.mrb[0].mxu0 %v1969
    %v2010 = vpop.f32.mrb[0].mxu0
    %v2011 = vadd.f32 %v998, %v2010
    %v2012 = vpop.f32.mrb[0].mxu0
    %v2013 = vpop.f32.mrb[0].mxu0
    %v2014 = vpop.f32.mrb[0].mxu0
    %2015 = vdwg.mxu0
    %2016 = vmatprep.subr.bf16.mxu0 0
    %2017 = vmatpush1.bf16.msra.mxu0 %v1240
    %2018 = vmatprep.subr.bf16.mxu0 0
    %2019 = vmatpush1.bf16.msra.mxu0 %v1241
    %2020 = vmatprep.subr.bf16.mxu0 0
    %2021 = vmatpush1.bf16.msra.mxu0 %v1242
    %2022 = vmatprep.subr.bf16.mxu0 0
    %2023 = vmatpush1.bf16.msra.mxu0 %v1243
    %2024 = vmatprep.subr.bf16.mxu0 0
    %2025 = vmatpush1.bf16.msra.mxu0 %v1244
    %2026 = vmatprep.subr.bf16.mxu0 0
    %2027 = vmatpush1.bf16.msra.mxu0 %v1245
    %2028 = vmatprep.subr.bf16.mxu0 0
    %2029 = vmatpush1.bf16.msra.mxu0 %v1246
    %2030 = vmatprep.subr.bf16.mxu0 0
    %2031 = vmatpush1.bf16.msra.mxu0 %v1247
    %2032 = vmatprep.subr.bf16.mxu0 0
    %2033 = vmatpush1.bf16.msra.mxu0 %v1248
    %2034 = vmatprep.subr.bf16.mxu0 0
    %2035 = vmatpush1.bf16.msra.mxu0 %v1249
    %2036 = vmatprep.subr.bf16.mxu0 0
    %2037 = vmatpush1.bf16.msra.mxu0 %v1250
    %2038 = vmatprep.subr.bf16.mxu0 0
    %2039 = vmatpush1.bf16.msra.mxu0 %v1251
    %2040 = vmatprep.subr.bf16.mxu0 0
    %2041 = vmatpush1.bf16.msra.mxu0 %v1252
    %2042 = vmatprep.subr.bf16.mxu0 0
    %2043 = vmatpush1.bf16.msra.mxu0 %v1253
    %2044 = vmatprep.subr.bf16.mxu0 0
    %2045 = vmatpush1.bf16.msra.mxu0 %v1254
    %2046 = vmatprep.subr.bf16.mxu0 0
    %2047 = vmatpush1.bf16.msra.mxu0 %v1255
    %2048 = vmatprep.mubr.bf16.mxu0 %v1972
    %2049 = vmatmul.mubr.bf16.gmra.mrb[0].mxu0 %v1971
    %v2050 = vpop.f32.mrb[0].mxu0
    %v2051 = vadd.f32 %v2011, %v2050
    %v2052 = vpop.f32.mrb[0].mxu0
    %v2053 = vpop.f32.mrb[0].mxu0
    %v2054 = vpop.f32.mrb[0].mxu0
    %2055 = vdwg.mxu0
    %2056 = vmatprep.subr.bf16.mxu0 0
    %2057 = vmatpush1.bf16.msra.mxu0 %v1256
    %2058 = vmatprep.subr.bf16.mxu0 0
    %2059 = vmatpush1.bf16.msra.mxu0 %v1257
    %2060 = vmatprep.subr.bf16.mxu0 0
    %2061 = vmatpush1.bf16.msra.mxu0 %v1258
    %2062 = vmatprep.subr.bf16.mxu0 0
    %2063 = vmatpush1.bf16.msra.mxu0 %v1259
    %2064 = vmatprep.subr.bf16.mxu0 0
    %2065 = vmatpush1.bf16.msra.mxu0 %v1260
    %2066 = vmatprep.subr.bf16.mxu0 0
    %2067 = vmatpush1.bf16.msra.mxu0 %v1261
    %2068 = vmatprep.subr.bf16.mxu0 0
    %2069 = vmatpush1.bf16.msra.mxu0 %v1262
    %2070 = vmatprep.subr.bf16.mxu0 0
    %2071 = vmatpush1.bf16.msra.mxu0 %v1263
    %2072 = vmatprep.subr.bf16.mxu0 0
    %2073 = vmatpush1.bf16.msra.mxu0 %v1264
    %2074 = vmatprep.subr.bf16.mxu0 0
    %2075 = vmatpush1.bf16.msra.mxu0 %v1265
    %2076 = vmatprep.subr.bf16.mxu0 0
    %2077 = vmatpush1.bf16.msra.mxu0 %v1266
    %2078 = vmatprep.subr.bf16.mxu0 0
    %2079 = vmatpush1.bf16.msra.mxu0 %v1267
    %2080 = vmatprep.subr.bf16.mxu0 0
    %2081 = vmatpush1.bf16.msra.mxu0 %v1268
    %2082 = vmatprep.subr.bf16.mxu0 0
    %2083 = vmatpush1.bf16.msra.mxu0 %v1269
    %2084 = vmatprep.subr.bf16.mxu0 0
    %2085 = vmatpush1.bf16.msra.mxu0 %v1270
    %2086 = vmatprep.subr.bf16.mxu0 0
    %2087 = vmatpush1.bf16.msra.mxu0 %v1271
    %2088 = vmatprep.mubr.bf16.mxu0 %v1974
    %2089 = vmatmul.mubr.bf16.gmra.mrb[0].mxu0 %v1973
    %v2090 = vpop.f32.mrb[0].mxu0
    %v2091 = vadd.f32 %v2051, %v2090
    %v2092 = vpop.f32.mrb[0].mxu0
    %v2093 = vpop.f32.mrb[0].mxu0
    %v2094 = vpop.f32.mrb[0].mxu0
    %2095 = vdwg.mxu0
    %2096 = vmatprep.subr.bf16.mxu0 0
    %2097 = vmatpush1.bf16.msra.mxu0 %v1272
    %2098 = vmatprep.subr.bf16.mxu0 0
    %2099 = vmatpush1.bf16.msra.mxu0 %v1273
    %2100 = vmatprep.subr.bf16.mxu0 0
    %2101 = vmatpush1.bf16.msra.mxu0 %v1274
    %2102 = vmatprep.subr.bf16.mxu0 0
    %2103 = vmatpush1.bf16.msra.mxu0 %v1275
    %2104 = vmatprep.subr.bf16.mxu0 0
    %2105 = vmatpush1.bf16.msra.mxu0 %v1276
    %2106 = vmatprep.subr.bf16.mxu0 0
    %2107 = vmatpush1.bf16.msra.mxu0 %v1277
    %2108 = vmatprep.subr.bf16.mxu0 0
    %2109 = vmatpush1.bf16.msra.mxu0 %v1278
    %2110 = vmatprep.subr.bf16.mxu0 0
    %2111 = vmatpush1.bf16.msra.mxu0 %v1279
    %2112 = vmatprep.subr.bf16.mxu0 0
    %2113 = vmatpush1.bf16.msra.mxu0 0
    %2114 = vmatprep.subr.bf16.mxu0 0
    %2115 = vmatpush1.bf16.msra.mxu0 0
    %2116 = vmatprep.subr.bf16.mxu0 0
    %2117 = vmatpush1.bf16.msra.mxu0 0
    %2118 = vmatprep.subr.bf16.mxu0 0
    %2119 = vmatpush1.bf16.msra.mxu0 0
    %2120 = vmatprep.subr.bf16.mxu0 0
    %2121 = vmatpush1.bf16.msra.mxu0 0
    %2122 = vmatprep.subr.bf16.mxu0 0
    %2123 = vmatpush1.bf16.msra.mxu0 0
    %2124 = vmatprep.subr.bf16.mxu0 0
    %2125 = vmatpush1.bf16.msra.mxu0 0
    %2126 = vmatprep.subr.bf16.mxu0 0
    %2127 = vmatpush1.bf16.msra.mxu0 0
    %2128 = vmatprep.mubr.bf16.mxu0 0
    %2129 = vmatmul.mubr.bf16.gmra.mrb[0].mxu0 %v1975
    %v2130 = vpop.f32.mrb[0].mxu0
    %v2131 = vadd.f32 %v2091, %v2130
    %v2132 = vpop.f32.mrb[0].mxu0
    %v2133 = vpop.f32.mrb[0].mxu0
    %v2134 = vpop.f32.mrb[0].mxu0
    %2135 = vdwg.mxu0
    %v2136 = vmul.f32 %v1497, 0.7
    %v2137 = vadd.f32 %v2136, %v2131
    %v2138 = vsub.f32 %v2137, %v1500
    %vm2139 = vcmp.gt.f32.partialorder %v2138, 1.0
    %v2140 = vsel %vm2139, 1, 0
    %v2141 = vcvt.s32.f32 %v2140
    %s2142 = scalar_lea.vmem [#allocation2], 2
    %2143 = vst [vmem:[%s2142] sm:$0x3] %v2141
    %s2144 = scalar_lea.vmem [#allocation4], 2
    %2145 = vst [vmem:[%s2144] sm:$0x3] %v2138
    %s2146 = scalar_lea.vmem %s0, 72
    %v2147 = vld [vmem:[%s2146] sm:$0xf]
    %v2148 = vld [vmem:[%s2146 + $0x4] sm:$0xf]
    %v2149 = vld [vmem:[%s2146 + $0x8] sm:$0xf]
    %v2150 = vld [vmem:[%s2146 + $0xc] sm:$0xf]
    %v2151 = vld [vmem:[%s2146 + $0x10] sm:$0xf]
    %v2152 = vld [vmem:[%s2146 + $0x14] sm:$0xf]
    %v2153 = vld [vmem:[%s2146 + $0x18] sm:$0xf]
    %v2154 = vld [vmem:[%s2146 + $0x1c] sm:$0xf]
    %v2155 = vld [vmem:[%s2146 + $0x20] sm:$0xf]
    %v2165 = vunpack.c.l.b16 %v2147
    %v2166 = vunpack.c.l.b16 %v2148
    %v2167 = vunpack.c.l.b16 %v2149
    %v2168 = vunpack.c.l.b16 %v2150
    %v2169 = vunpack.c.l.b16 %v2151
    %v2170 = vunpack.c.l.b16 %v2152
    %v2171 = vunpack.c.l.b16 %v2153
    %v2172 = vunpack.c.l.b16 %v2154
    %v2173 = vunpack.c.l.b16 %v2155
    %v2174 = vpack.c.b16 %v2166, %v2165
    %v2175 = vpack.c.b16 %v2168, %v2167
    %v2176 = vpack.c.b16 %v2170, %v2169
    %v2177 = vpack.c.b16 %v2172, %v2171
    %v2178 = vpack.c.b16 %v2173, %v2173
    %v2180 = vsel %vm303, %v2174, 0
    %v2183 = vsel %vm303, %v2175, 0
    %v2186 = vsel %vm303, %v2176, 0
    %v2189 = vsel %vm303, %v2177, 0
    %v2192 = vsel %vm303, %v2178, 0
    %2194 = vmatprep.subr.bf16.mxu0 0
    %2195 = vmatpush1.bf16.msra.mxu0 %v294
    %2196 = vmatprep.subr.bf16.mxu0 0
    %2197 = vmatpush1.bf16.msra.mxu0 %v295
    %2198 = vmatprep.subr.bf16.mxu0 0
    %2199 = vmatpush1.bf16.msra.mxu0 %v296
    %2200 = vmatprep.subr.bf16.mxu0 0
    %2201 = vmatpush1.bf16.msra.mxu0 %v297
    %2202 = vmatprep.subr.bf16.mxu0 0
    %2203 = vmatpush1.bf16.msra.mxu0 %v324
    %2204 = vmatprep.subr.bf16.mxu0 0
    %2205 = vmatpush1.bf16.msra.mxu0 0
    %2206 = vmatprep.subr.bf16.mxu0 0
    %2207 = vmatpush1.bf16.msra.mxu0 0
    %2208 = vmatprep.subr.bf16.mxu0 0
    %2209 = vmatpush1.bf16.msra.mxu0 0
    %2210 = vmatprep.subr.bf16.mxu0 0
    %2211 = vmatpush1.bf16.msra.mxu0 0
    %2212 = vmatprep.subr.bf16.mxu0 0
    %2213 = vmatpush1.bf16.msra.mxu0 0
    %2214 = vmatprep.subr.bf16.mxu0 0
    %2215 = vmatpush1.bf16.msra.mxu0 0
    %2216 = vmatprep.subr.bf16.mxu0 0
    %2217 = vmatpush1.bf16.msra.mxu0 0
    %2218 = vmatprep.subr.bf16.mxu0 0
    %2219 = vmatpush1.bf16.msra.mxu0 0
    %2220 = vmatprep.subr.bf16.mxu0 0
    %2221 = vmatpush1.bf16.msra.mxu0 0
    %2222 = vmatprep.subr.bf16.mxu0 0
    %2223 = vmatpush1.bf16.msra.mxu0 0
    %2224 = vmatprep.subr.bf16.mxu0 0
    %2225 = vmatpush1.bf16.msra.mxu0 0
    %2226 = vmatprep.mubr.bf16.mxu0 0
    %2227 = vmatmul.mubr.bf16.gmra.mrb[0].mxu0 %v2180
    %v2228 = vpop.f32.mrb[0].mxu0
    %v2229 = vadd.f32 %v249, %v2228
    %v2230 = vpop.f32.mrb[0].mxu0
    %v2231 = vpop.f32.mrb[0].mxu0
    %v2232 = vadd.f32 %v249, %v2231
    %v2233 = vpop.f32.mrb[0].mxu0
    %2234 = vmatprep.mubr.bf16.mxu0 0
    %2235 = vmatmul.mubr.bf16.gmra.mrb[0].mxu0 %v2183
    %v2236 = vpop.f32.mrb[0].mxu0
    %v2237 = vadd.f32 %v249, %v2236
    %v2238 = vpop.f32.mrb[0].mxu0
    %v2239 = vpop.f32.mrb[0].mxu0
    %v2240 = vadd.f32 %v249, %v2239
    %v2241 = vpop.f32.mrb[0].mxu0
    %2242 = vmatprep.mubr.bf16.mxu0 0
    %2243 = vmatmul.mubr.bf16.gmra.mrb[0].mxu0 %v2186
    %v2244 = vpop.f32.mrb[0].mxu0
    %v2245 = vadd.f32 %v249, %v2244
    %v2246 = vpop.f32.mrb[0].mxu0
    %v2247 = vpop.f32.mrb[0].mxu0
    %v2248 = vadd.f32 %v249, %v2247
    %v2249 = vpop.f32.mrb[0].mxu0
    %2250 = vmatprep.mubr.bf16.mxu0 0
    %2251 = vmatmul.mubr.bf16.gmra.mrb[0].mxu0 %v2189
    %v2252 = vpop.f32.mrb[0].mxu0
    %v2253 = vadd.f32 %v249, %v2252
    %v2254 = vpop.f32.mrb[0].mxu0
    %v2255 = vpop.f32.mrb[0].mxu0
    %v2256 = vadd.f32 %v249, %v2255
    %v2257 = vpop.f32.mrb[0].mxu0
    %2258 = vmatprep.mubr.bf16.mxu0 0
    %2259 = vmatmul.mubr.bf16.gmra.mrb[0].mxu0 %v2192
    %v2260 = vpop.f32.mrb[0].mxu0
    %v2261 = vadd.f32 %v249, %v2260
    %v2262 = vpop.f32.mrb[0].mxu0
    %v2263 = vpop.f32.mrb[0].mxu0
    %v2264 = vpop.f32.mrb[0].mxu0
    %2265 = vdwg.mxu0
    %v2271 = vrot.slane %v2245, 4
    %v2272 = vrot.slane %v2248, 4
    %v2273 = vsel %vm403, %v2271, %v2272
    %v2274 = vrot.slane %v2253, 4
    %v2275 = vsel %vm403, %v2272, %v2274
    %v2276 = vrot.slane %v2256, 4
    %v2277 = vsel %vm403, %v2274, %v2276
    %v2278 = vrot.slane %v2261, 4
    %v2279 = vsel %vm403, %v2276, %v2278
    %v2285 = vmax.f32 %v2229, %v2273
    %v2286 = vmax.f32 %v2232, %v2275
    %v2287 = vmax.f32 %v2237, %v2277
    %v2288 = vmax.f32 %v2240, %v2279
    %v2289 = vmax.f32 %v2245, %v2278
    %v2290 = vmul.f32 %v1657, 0.7
    %v2291 = vmul.f32 %v1658, 0.7
    %v2292 = vmul.f32 %v1659, 0.7
    %v2293 = vmul.f32 %v1660, 0.7
    %v2294 = vmul.f32 %v1661, 0.7
    %v2295 = vadd.f32 %v2290, %v2285
    %v2296 = vadd.f32 %v2291, %v2286
    %v2297 = vadd.f32 %v2292, %v2287
    %v2298 = vadd.f32 %v2293, %v2288
    %v2299 = vadd.f32 %v2294, %v2289
    %v2300 = vsub.f32 %v2295, %v1672
    %v2301 = vsub.f32 %v2296, %v1673
    %v2302 = vsub.f32 %v2297, %v1674
    %v2303 = vsub.f32 %v2298, %v1675
    %v2304 = vsub.f32 %v2299, %v1676
    %vm2305 = vcmp.gt.f32.partialorder %v2300, 1.0
    %vm2306 = vcmp.gt.f32.partialorder %v2301, 1.0
    %vm2307 = vcmp.gt.f32.partialorder %v2302, 1.0
    %vm2308 = vcmp.gt.f32.partialorder %v2303, 1.0
    %vm2309 = vcmp.gt.f32.partialorder %v2304, 1.0
    %v2310 = vsel %vm2305, 1, 0
    %v2311 = vsel %vm2306, 1, 0
    %v2312 = vsel %vm2307, 1, 0
    %v2313 = vsel %vm2308, 1, 0
    %v2314 = vsel %vm2309, 1, 0
    %v2315 = vcvt.s32.f32 %v2310
    %v2316 = vcvt.s32.f32 %v2311
    %v2317 = vcvt.s32.f32 %v2312
    %v2318 = vcvt.s32.f32 %v2313
    %v2319 = vcvt.s32.f32 %v2314
    %v2325 = vrot.slane %v2315, 1
    %v2326 = vrot.slane %v2316, 1
    %v2327 = vsel %vm456, %v2325, %v2326
    %v2328 = vrot.slane %v2317, 1
    %v2329 = vsel %vm456, %v2326, %v2328
    %v2330 = vrot.slane %v2318, 1
    %v2331 = vsel %vm456, %v2328, %v2330
    %v2332 = vrot.slane %v2319, 1
    %v2333 = vsel %vm456, %v2330, %v2332
    %v2338 = vrot.slane %v2315, 2
    %v2339 = vrot.slane %v2316, 2
    %v2340 = vsel %vm320, %v2338, %v2339
    %v2341 = vrot.slane %v2317, 2
    %v2342 = vsel %vm320, %v2339, %v2341
    %v2343 = vrot.slane %v2318, 2
    %v2344 = vsel %vm320, %v2341, %v2343
    %v2345 = vrot.slane %v2319, 2
    %v2346 = vsel %vm320, %v2343, %v2345
    %v2351 = vrot.slane %v2315, 3
    %v2352 = vrot.slane %v2316, 3
    %v2353 = vsel %vm319, %v2351, %v2352
    %v2354 = vrot.slane %v2317, 3
    %v2355 = vsel %vm319, %v2352, %v2354
    %v2356 = vrot.slane %v2318, 3
    %v2357 = vsel %vm319, %v2354, %v2356
    %v2358 = vrot.slane %v2319, 3
    %v2359 = vsel %vm319, %v2356, %v2358
    %v2364 = vrot.slane %v2315, 4
    %v2365 = vrot.slane %v2316, 4
    %v2366 = vsel %vm403, %v2364, %v2365
    %v2367 = vrot.slane %v2317, 4
    %v2368 = vsel %vm403, %v2365, %v2367
    %v2369 = vrot.slane %v2318, 4
    %v2370 = vsel %vm403, %v2367, %v2369
    %v2371 = vrot.slane %v2319, 4
    %v2372 = vsel %vm403, %v2369, %v2371
    %v2377 = vpack.c.bf16 %v2316, %v2315
    %v2378 = vpack.c.bf16 %v2329, %v2327
    %v2379 = vpack.c.bf16 %v2342, %v2340
    %v2380 = vpack.c.bf16 %v2355, %v2353
    %v2381 = vpack.c.bf16 %v2368, %v2366
    %v2382 = vpack.c.bf16 %v2318, %v2317
    %v2383 = vpack.c.bf16 %v2333, %v2331
    %v2384 = vpack.c.bf16 %v2346, %v2344
    %v2385 = vpack.c.bf16 %v2359, %v2357
    %v2386 = vpack.c.bf16 %v2372, %v2370
    %2387 = vmatprep.subr.bf16.mxu0 0
    %2388 = vmatpush1.bf16.msra.mxu0 %v685
    %2389 = vmatprep.subr.bf16.mxu0 0
    %2390 = vmatpush1.bf16.msra.mxu0 %v686
    %2391 = vmatprep.subr.bf16.mxu0 0
    %2392 = vmatpush1.bf16.msra.mxu0 %v687
    %2393 = vmatprep.subr.bf16.mxu0 0
    %2394 = vmatpush1.bf16.msra.mxu0 %v688
    %2395 = vmatprep.subr.bf16.mxu0 0
    %2396 = vmatpush1.bf16.msra.mxu0 %v689
    %2397 = vmatprep.subr.bf16.mxu0 0
    %2398 = vmatpush1.bf16.msra.mxu0 %v690
    %2399 = vmatprep.subr.bf16.mxu0 0
    %2400 = vmatpush1.bf16.msra.mxu0 %v691
    %2401 = vmatprep.subr.bf16.mxu0 0
    %2402 = vmatpush1.bf16.msra.mxu0 %v692
    %2403 = vmatprep.subr.bf16.mxu0 0
    %2404 = vmatpush1.bf16.msra.mxu0 %v693
    %2405 = vmatprep.subr.bf16.mxu0 0
    %2406 = vmatpush1.bf16.msra.mxu0 %v694
    %2407 = vmatprep.subr.bf16.mxu0 0
    %2408 = vmatpush1.bf16.msra.mxu0 %v695
    %2409 = vmatprep.subr.bf16.mxu0 0
    %2410 = vmatpush1.bf16.msra.mxu0 %v696
    %2411 = vmatprep.subr.bf16.mxu0 0
    %2412 = vmatpush1.bf16.msra.mxu0 %v697
    %2413 = vmatprep.subr.bf16.mxu0 0
    %2414 = vmatpush1.bf16.msra.mxu0 %v698
    %2415 = vmatprep.subr.bf16.mxu0 0
    %2416 = vmatpush1.bf16.msra.mxu0 %v699
    %2417 = vmatprep.subr.bf16.mxu0 0
    %2418 = vmatpush1.bf16.msra.mxu0 %v700
    %2419 = vmatprep.mubr.bf16.mxu0 %v2378
    %2420 = vmatmul.mubr.bf16.gmra.mrb[0].mxu0 %v2377
    %v2421 = vpop.f32.mrb[0].mxu0
    %v2422 = vadd.f32 %v523, %v2421
    %v2423 = vpop.f32.mrb[0].mxu0
    %v2424 = vpop.f32.mrb[0].mxu0
    %v2425 = vadd.f32 %v523, %v2424
    %v2426 = vpop.f32.mrb[0].mxu0
    %2427 = vmatprep.mubr.bf16.mxu0 %v2383
    %2428 = vmatmul.mubr.bf16.gmra.mrb[0].mxu0 %v2382
    %v2429 = vpop.f32.mrb[0].mxu0
    %v2430 = vadd.f32 %v523, %v2429
    %v2431 = vpop.f32.mrb[0].mxu0
    %v2432 = vpop.f32.mrb[0].mxu0
    %v2433 = vadd.f32 %v523, %v2432
    %v2434 = vpop.f32.mrb[0].mxu0
    %2435 = vdwg.mxu0
    %2436 = vmatprep.subr.bf16.mxu0 0
    %2437 = vmatpush1.bf16.msra.mxu0 %v701
    %2438 = vmatprep.subr.bf16.mxu0 0
    %2439 = vmatpush1.bf16.msra.mxu0 %v702
    %2440 = vmatprep.subr.bf16.mxu0 0
    %2441 = vmatpush1.bf16.msra.mxu0 %v703
    %2442 = vmatprep.subr.bf16.mxu0 0
    %2443 = vmatpush1.bf16.msra.mxu0 %v704
    %2444 = vmatprep.subr.bf16.mxu0 0
    %2445 = vmatpush1.bf16.msra.mxu0 %v705
    %2446 = vmatprep.subr.bf16.mxu0 0
    %2447 = vmatpush1.bf16.msra.mxu0 %v706
    %2448 = vmatprep.subr.bf16.mxu0 0
    %2449 = vmatpush1.bf16.msra.mxu0 %v707
    %2450 = vmatprep.subr.bf16.mxu0 0
    %2451 = vmatpush1.bf16.msra.mxu0 %v708
    %2452 = vmatprep.subr.bf16.mxu0 0
    %2453 = vmatpush1.bf16.msra.mxu0 %v709
    %2454 = vmatprep.subr.bf16.mxu0 0
    %2455 = vmatpush1.bf16.msra.mxu0 %v710
    %2456 = vmatprep.subr.bf16.mxu0 0
    %2457 = vmatpush1.bf16.msra.mxu0 %v711
    %2458 = vmatprep.subr.bf16.mxu0 0
    %2459 = vmatpush1.bf16.msra.mxu0 %v712
    %2460 = vmatprep.subr.bf16.mxu0 0
    %2461 = vmatpush1.bf16.msra.mxu0 %v713
    %2462 = vmatprep.subr.bf16.mxu0 0
    %2463 = vmatpush1.bf16.msra.mxu0 %v714
    %2464 = vmatprep.subr.bf16.mxu0 0
    %2465 = vmatpush1.bf16.msra.mxu0 %v715
    %2466 = vmatprep.subr.bf16.mxu0 0
    %2467 = vmatpush1.bf16.msra.mxu0 %v716
    %2468 = vmatprep.mubr.bf16.mxu0 %v2380
    %2469 = vmatmul.mubr.bf16.gmra.mrb[0].mxu0 %v2379
    %v2470 = vpop.f32.mrb[0].mxu0
    %v2471 = vadd.f32 %v2422, %v2470
    %v2472 = vpop.f32.mrb[0].mxu0
    %v2473 = vpop.f32.mrb[0].mxu0
    %v2474 = vadd.f32 %v2425, %v2473
    %v2475 = vpop.f32.mrb[0].mxu0
    %2476 = vmatprep.mubr.bf16.mxu0 %v2385
    %2477 = vmatmul.mubr.bf16.gmra.mrb[0].mxu0 %v2384
    %v2478 = vpop.f32.mrb[0].mxu0
    %v2479 = vadd.f32 %v2430, %v2478
    %v2480 = vpop.f32.mrb[0].mxu0
    %v2481 = vpop.f32.mrb[0].mxu0
    %v2482 = vadd.f32 %v2433, %v2481
    %v2483 = vpop.f32.mrb[0].mxu0
    %2484 = vdwg.mxu0
    %2485 = vmatprep.subr.bf16.mxu0 0
    %2486 = vmatpush1.bf16.msra.mxu0 %v717
    %2487 = vmatprep.subr.bf16.mxu0 0
    %2488 = vmatpush1.bf16.msra.mxu0 %v718
    %2489 = vmatprep.subr.bf16.mxu0 0
    %2490 = vmatpush1.bf16.msra.mxu0 %v719
    %2491 = vmatprep.subr.bf16.mxu0 0
    %2492 = vmatpush1.bf16.msra.mxu0 %v720
    %2493 = vmatprep.subr.bf16.mxu0 0
    %2494 = vmatpush1.bf16.msra.mxu0 %v721
    %2495 = vmatprep.subr.bf16.mxu0 0
    %2496 = vmatpush1.bf16.msra.mxu0 %v722
    %2497 = vmatprep.subr.bf16.mxu0 0
    %2498 = vmatpush1.bf16.msra.mxu0 %v723
    %2499 = vmatprep.subr.bf16.mxu0 0
    %2500 = vmatpush1.bf16.msra.mxu0 %v724
    %2501 = vmatprep.subr.bf16.mxu0 0
    %2502 = vmatpush1.bf16.msra.mxu0 0
    %2503 = vmatprep.subr.bf16.mxu0 0
    %2504 = vmatpush1.bf16.msra.mxu0 0
    %2505 = vmatprep.subr.bf16.mxu0 0
    %2506 = vmatpush1.bf16.msra.mxu0 0
    %2507 = vmatprep.subr.bf16.mxu0 0
    %2508 = vmatpush1.bf16.msra.mxu0 0
    %2509 = vmatprep.subr.bf16.mxu0 0
    %2510 = vmatpush1.bf16.msra.mxu0 0
    %2511 = vmatprep.subr.bf16.mxu0 0
    %2512 = vmatpush1.bf16.msra.mxu0 0
    %2513 = vmatprep.subr.bf16.mxu0 0
    %2514 = vmatpush1.bf16.msra.mxu0 0
    %2515 = vmatprep.subr.bf16.mxu0 0
    %2516 = vmatpush1.bf16.msra.mxu0 0
    %2517 = vmatprep.mubr.bf16.mxu0 0
    %2518 = vmatmul.mubr.bf16.gmra.mrb[0].mxu0 %v2381
    %v2519 = vpop.f32.mrb[0].mxu0
    %v2520 = vadd.f32 %v2471, %v2519
    %v2521 = vpop.f32.mrb[0].mxu0
    %v2522 = vpop.f32.mrb[0].mxu0
    %v2523 = vadd.f32 %v2474, %v2522
    %v2524 = vpop.f32.mrb[0].mxu0
    %2525 = vmatprep.mubr.bf16.mxu0 0
    %2526 = vmatmul.mubr.bf16.gmra.mrb[0].mxu0 %v2386
    %v2527 = vpop.f32.mrb[0].mxu0
    %v2528 = vadd.f32 %v2479, %v2527
    %v2529 = vpop.f32.mrb[0].mxu0
    %v2530 = vpop.f32.mrb[0].mxu0
    %v2531 = vadd.f32 %v2482, %v2530
    %v2532 = vpop.f32.mrb[0].mxu0
    %2533 = vdwg.mxu0
    %v2538 = vrot.slane %v2520, 1
    %v2539 = vrot.slane %v2523, 1
    %v2540 = vsel %vm456, %v2538, %v2539
    %v2541 = vrot.slane %v2528, 1
    %v2542 = vsel %vm456, %v2539, %v2541
    %v2543 = vrot.slane %v2531, 1
    %v2544 = vsel %vm456, %v2541, %v2543
    %v2549 = vmax.f32 %v2520, %v2540
    %v2550 = vmax.f32 %v2523, %v2542
    %v2551 = vmax.f32 %v2528, %v2544
    %v2552 = vmax.f32 %v2531, %v2543
    %v2553 = vmul.f32 %v1918, 0.7
    %v2554 = vmul.f32 %v1919, 0.7
    %v2555 = vmul.f32 %v1920, 0.7
    %v2556 = vmul.f32 %v1921, 0.7
    %v2557 = vadd.f32 %v2553, %v2549
    %v2558 = vadd.f32 %v2554, %v2550
    %v2559 = vadd.f32 %v2555, %v2551
    %v2560 = vadd.f32 %v2556, %v2552
    %v2561 = vsub.f32 %v2557, %v1930
    %v2562 = vsub.f32 %v2558, %v1931
    %v2563 = vsub.f32 %v2559, %v1932
    %v2564 = vsub.f32 %v2560, %v1933
    %vm2565 = vcmp.gt.f32.partialorder %v2561, 1.0
    %vm2566 = vcmp.gt.f32.partialorder %v2562, 1.0
    %vm2567 = vcmp.gt.f32.partialorder %v2563, 1.0
    %vm2568 = vcmp.gt.f32.partialorder %v2564, 1.0
    %v2569 = vsel %vm2565, 1, 0
    %v2570 = vsel %vm2566, 1, 0
    %v2571 = vsel %vm2567, 1, 0
    %v2572 = vsel %vm2568, 1, 0
    %v2573 = vcvt.s32.f32 %v2569
    %v2574 = vcvt.s32.f32 %v2570
    %v2575 = vcvt.s32.f32 %v2571
    %v2576 = vcvt.s32.f32 %v2572
    %v2578 = vrot.slane %v2575, 1
    %v2580 = vsel %vm954, %v2573, %v2578
    %v2582 = vrot.slane %v2573, 2
    %v2584 = vrot.slane %v2575, 3
    %v2586 = vsel %vm954, %v2582, %v2584
    %v2587 = vrot.slane %v2573, 4
    %v2589 = vrot.slane %v2575, 5
    %v2591 = vsel %vm954, %v2587, %v2589
    %v2592 = vrot.slane %v2573, 6
    %v2595 = vrot.slane %v2576, 7
    %v2597 = vsel %vm954, %v2592, %v2595
    %v2598 = vrot.slane %v2576, 1
    %v2600 = vsel %vm954, %v2574, %v2598
    %v2602 = vrot.slane %v2574, 2
    %v2604 = vrot.slane %v2576, 3
    %v2606 = vsel %vm954, %v2602, %v2604
    %v2607 = vrot.slane %v2574, 4
    %v2609 = vrot.slane %v2576, 5
    %v2611 = vsel %vm954, %v2607, %v2609
    %v2612 = vpack.c.bf16 %v2580, %v2580
    %v2613 = vpack.c.bf16 %v2586, %v2586
    %v2614 = vpack.c.bf16 %v2591, %v2591
    %v2615 = vpack.c.bf16 %v2597, %v2597
    %v2616 = vpack.c.bf16 %v2600, %v2600
    %v2617 = vpack.c.bf16 %v2606, %v2606
    %v2618 = vpack.c.bf16 %v2611, %v2611
    %2619 = vmatprep.subr.bf16.mxu0 0
    %2620 = vmatpush1.bf16.msra.mxu0 %v1224
    %2621 = vmatprep.subr.bf16.mxu0 0
    %2622 = vmatpush1.bf16.msra.mxu0 %v1225
    %2623 = vmatprep.subr.bf16.mxu0 0
    %2624 = vmatpush1.bf16.msra.mxu0 %v1226
    %2625 = vmatprep.subr.bf16.mxu0 0
    %2626 = vmatpush1.bf16.msra.mxu0 %v1227
    %2627 = vmatprep.subr.bf16.mxu0 0
    %2628 = vmatpush1.bf16.msra.mxu0 %v1228
    %2629 = vmatprep.subr.bf16.mxu0 0
    %2630 = vmatpush1.bf16.msra.mxu0 %v1229
    %2631 = vmatprep.subr.bf16.mxu0 0
    %2632 = vmatpush1.bf16.msra.mxu0 %v1230
    %2633 = vmatprep.subr.bf16.mxu0 0
    %2634 = vmatpush1.bf16.msra.mxu0 %v1231
    %2635 = vmatprep.subr.bf16.mxu0 0
    %2636 = vmatpush1.bf16.msra.mxu0 %v1232
    %2637 = vmatprep.subr.bf16.mxu0 0
    %2638 = vmatpush1.bf16.msra.mxu0 %v1233
    %2639 = vmatprep.subr.bf16.mxu0 0
    %2640 = vmatpush1.bf16.msra.mxu0 %v1234
    %2641 = vmatprep.subr.bf16.mxu0 0
    %2642 = vmatpush1.bf16.msra.mxu0 %v1235
    %2643 = vmatprep.subr.bf16.mxu0 0
    %2644 = vmatpush1.bf16.msra.mxu0 %v1236
    %2645 = vmatprep.subr.bf16.mxu0 0
    %2646 = vmatpush1.bf16.msra.mxu0 %v1237
    %2647 = vmatprep.subr.bf16.mxu0 0
    %2648 = vmatpush1.bf16.msra.mxu0 %v1238
    %2649 = vmatprep.subr.bf16.mxu0 0
    %2650 = vmatpush1.bf16.msra.mxu0 %v1239
    %2651 = vmatprep.mubr.bf16.mxu0 %v2613
    %2652 = vmatmul.mubr.bf16.gmra.mrb[0].mxu0 %v2612
    %v2653 = vpop.f32.mrb[0].mxu0
    %v2654 = vadd.f32 %v998, %v2653
    %v2655 = vpop.f32.mrb[0].mxu0
    %v2656 = vpop.f32.mrb[0].mxu0
    %v2657 = vpop.f32.mrb[0].mxu0
    %2658 = vdwg.mxu0
    %2659 = vmatprep.subr.bf16.mxu0 0
    %2660 = vmatpush1.bf16.msra.mxu0 %v1240
    %2661 = vmatprep.subr.bf16.mxu0 0
    %2662 = vmatpush1.bf16.msra.mxu0 %v1241
    %2663 = vmatprep.subr.bf16.mxu0 0
    %2664 = vmatpush1.bf16.msra.mxu0 %v1242
    %2665 = vmatprep.subr.bf16.mxu0 0
    %2666 = vmatpush1.bf16.msra.mxu0 %v1243
    %2667 = vmatprep.subr.bf16.mxu0 0
    %2668 = vmatpush1.bf16.msra.mxu0 %v1244
    %2669 = vmatprep.subr.bf16.mxu0 0
    %2670 = vmatpush1.bf16.msra.mxu0 %v1245
    %2671 = vmatprep.subr.bf16.mxu0 0
    %2672 = vmatpush1.bf16.msra.mxu0 %v1246
    %2673 = vmatprep.subr.bf16.mxu0 0
    %2674 = vmatpush1.bf16.msra.mxu0 %v1247
    %2675 = vmatprep.subr.bf16.mxu0 0
    %2676 = vmatpush1.bf16.msra.mxu0 %v1248
    %2677 = vmatprep.subr.bf16.mxu0 0
    %2678 = vmatpush1.bf16.msra.mxu0 %v1249
    %2679 = vmatprep.subr.bf16.mxu0 0
    %2680 = vmatpush1.bf16.msra.mxu0 %v1250
    %2681 = vmatprep.subr.bf16.mxu0 0
    %2682 = vmatpush1.bf16.msra.mxu0 %v1251
    %2683 = vmatprep.subr.bf16.mxu0 0
    %2684 = vmatpush1.bf16.msra.mxu0 %v1252
    %2685 = vmatprep.subr.bf16.mxu0 0
    %2686 = vmatpush1.bf16.msra.mxu0 %v1253
    %2687 = vmatprep.subr.bf16.mxu0 0
    %2688 = vmatpush1.bf16.msra.mxu0 %v1254
    %2689 = vmatprep.subr.bf16.mxu0 0
    %2690 = vmatpush1.bf16.msra.mxu0 %v1255
    %2691 = vmatprep.mubr.bf16.mxu0 %v2615
    %2692 = vmatmul.mubr.bf16.gmra.mrb[0].mxu0 %v2614
    %v2693 = vpop.f32.mrb[0].mxu0
    %v2694 = vadd.f32 %v2654, %v2693
    %v2695 = vpop.f32.mrb[0].mxu0
    %v2696 = vpop.f32.mrb[0].mxu0
    %v2697 = vpop.f32.mrb[0].mxu0
    %2698 = vdwg.mxu0
    %2699 = vmatprep.subr.bf16.mxu0 0
    %2700 = vmatpush1.bf16.msra.mxu0 %v1256
    %2701 = vmatprep.subr.bf16.mxu0 0
    %2702 = vmatpush1.bf16.msra.mxu0 %v1257
    %2703 = vmatprep.subr.bf16.mxu0 0
    %2704 = vmatpush1.bf16.msra.mxu0 %v1258
    %2705 = vmatprep.subr.bf16.mxu0 0
    %2706 = vmatpush1.bf16.msra.mxu0 %v1259
    %2707 = vmatprep.subr.bf16.mxu0 0
    %2708 = vmatpush1.bf16.msra.mxu0 %v1260
    %2709 = vmatprep.subr.bf16.mxu0 0
    %2710 = vmatpush1.bf16.msra.mxu0 %v1261
    %2711 = vmatprep.subr.bf16.mxu0 0
    %2712 = vmatpush1.bf16.msra.mxu0 %v1262
    %2713 = vmatprep.subr.bf16.mxu0 0
    %2714 = vmatpush1.bf16.msra.mxu0 %v1263
    %2715 = vmatprep.subr.bf16.mxu0 0
    %2716 = vmatpush1.bf16.msra.mxu0 %v1264
    %2717 = vmatprep.subr.bf16.mxu0 0
    %2718 = vmatpush1.bf16.msra.mxu0 %v1265
    %2719 = vmatprep.subr.bf16.mxu0 0
    %2720 = vmatpush1.bf16.msra.mxu0 %v1266
    %2721 = vmatprep.subr.bf16.mxu0 0
    %2722 = vmatpush1.bf16.msra.mxu0 %v1267
    %2723 = vmatprep.subr.bf16.mxu0 0
    %2724 = vmatpush1.bf16.msra.mxu0 %v1268
    %2725 = vmatprep.subr.bf16.mxu0 0
    %2726 = vmatpush1.bf16.msra.mxu0 %v1269
    %2727 = vmatprep.subr.bf16.mxu0 0
    %2728 = vmatpush1.bf16.msra.mxu0 %v1270
    %2729 = vmatprep.subr.bf16.mxu0 0
    %2730 = vmatpush1.bf16.msra.mxu0 %v1271
    %2731 = vmatprep.mubr.bf16.mxu0 %v2617
    %2732 = vmatmul.mubr.bf16.gmra.mrb[0].mxu0 %v2616
    %v2733 = vpop.f32.mrb[0].mxu0
    %v2734 = vadd.f32 %v2694, %v2733
    %v2735 = vpop.f32.mrb[0].mxu0
    %v2736 = vpop.f32.mrb[0].mxu0
    %v2737 = vpop.f32.mrb[0].mxu0
    %2738 = vdwg.mxu0
    %2739 = vmatprep.subr.bf16.mxu0 0
    %2740 = vmatpush1.bf16.msra.mxu0 %v1272
    %2741 = vmatprep.subr.bf16.mxu0 0
    %2742 = vmatpush1.bf16.msra.mxu0 %v1273
    %2743 = vmatprep.subr.bf16.mxu0 0
    %2744 = vmatpush1.bf16.msra.mxu0 %v1274
    %2745 = vmatprep.subr.bf16.mxu0 0
    %2746 = vmatpush1.bf16.msra.mxu0 %v1275
    %2747 = vmatprep.subr.bf16.mxu0 0
    %2748 = vmatpush1.bf16.msra.mxu0 %v1276
    %2749 = vmatprep.subr.bf16.mxu0 0
    %2750 = vmatpush1.bf16.msra.mxu0 %v1277
    %2751 = vmatprep.subr.bf16.mxu0 0
    %2752 = vmatpush1.bf16.msra.mxu0 %v1278
    %2753 = vmatprep.subr.bf16.mxu0 0
    %2754 = vmatpush1.bf16.msra.mxu0 %v1279
    %2755 = vmatprep.subr.bf16.mxu0 0
    %2756 = vmatpush1.bf16.msra.mxu0 0
    %2757 = vmatprep.subr.bf16.mxu0 0
    %2758 = vmatpush1.bf16.msra.mxu0 0
    %2759 = vmatprep.subr.bf16.mxu0 0
    %2760 = vmatpush1.bf16.msra.mxu0 0
    %2761 = vmatprep.subr.bf16.mxu0 0
    %2762 = vmatpush1.bf16.msra.mxu0 0
    %2763 = vmatprep.subr.bf16.mxu0 0
    %2764 = vmatpush1.bf16.msra.mxu0 0
    %2765 = vmatprep.subr.bf16.mxu0 0
    %2766 = vmatpush1.bf16.msra.mxu0 0
    %2767 = vmatprep.subr.bf16.mxu0 0
    %2768 = vmatpush1.bf16.msra.mxu0 0
    %2769 = vmatprep.subr.bf16.mxu0 0
    %2770 = vmatpush1.bf16.msra.mxu0 0
    %2771 = vmatprep.mubr.bf16.mxu0 0
    %2772 = vmatmul.mubr.bf16.gmra.mrb[0].mxu0 %v2618
    %v2773 = vpop.f32.mrb[0].mxu0
    %v2774 = vadd.f32 %v2734, %v2773
    %v2775 = vpop.f32.mrb[0].mxu0
    %v2776 = vpop.f32.mrb[0].mxu0
    %v2777 = vpop.f32.mrb[0].mxu0
    %2778 = vdwg.mxu0
    %v2779 = vmul.f32 %v2138, 0.7
    %v2780 = vadd.f32 %v2779, %v2774
    %v2781 = vsub.f32 %v2780, %v2141
    %vm2782 = vcmp.gt.f32.partialorder %v2781, 1.0
    %v2783 = vsel %vm2782, 1, 0
    %v2784 = vcvt.s32.f32 %v2783
    %s2785 = scalar_lea.vmem [#allocation2], 4
    %2786 = vst [vmem:[%s2785] sm:$0x3] %v2784
    %s2787 = scalar_lea.vmem [#allocation4], 4
    %2788 = vst [vmem:[%s2787] sm:$0x3] %v2781
    %s2789 = scalar_lea.vmem %s0, 108
    %v2790 = vld [vmem:[%s2789] sm:$0xf]
    %v2791 = vld [vmem:[%s2789 + $0x4] sm:$0xf]
    %v2792 = vld [vmem:[%s2789 + $0x8] sm:$0xf]
    %v2793 = vld [vmem:[%s2789 + $0xc] sm:$0xf]
    %v2794 = vld [vmem:[%s2789 + $0x10] sm:$0xf]
    %v2795 = vld [vmem:[%s2789 + $0x14] sm:$0xf]
    %v2796 = vld [vmem:[%s2789 + $0x18] sm:$0xf]
    %v2797 = vld [vmem:[%s2789 + $0x1c] sm:$0xf]
    %v2798 = vld [vmem:[%s2789 + $0x20] sm:$0xf]
    %v2808 = vunpack.c.l.b16 %v2790
    %v2809 = vunpack.c.l.b16 %v2791
    %v2810 = vunpack.c.l.b16 %v2792
    %v2811 = vunpack.c.l.b16 %v2793
    %v2812 = vunpack.c.l.b16 %v2794
    %v2813 = vunpack.c.l.b16 %v2795
    %v2814 = vunpack.c.l.b16 %v2796
    %v2815 = vunpack.c.l.b16 %v2797
    %v2816 = vunpack.c.l.b16 %v2798
    %v2817 = vpack.c.b16 %v2809, %v2808
    %v2818 = vpack.c.b16 %v2811, %v2810
    %v2819 = vpack.c.b16 %v2813, %v2812
    %v2820 = vpack.c.b16 %v2815, %v2814
    %v2821 = vpack.c.b16 %v2816, %v2816
    %v2823 = vsel %vm303, %v2817, 0
    %v2826 = vsel %vm303, %v2818, 0
    %v2829 = vsel %vm303, %v2819, 0
    %v2832 = vsel %vm303, %v2820, 0
    %v2835 = vsel %vm303, %v2821, 0
    %2837 = vmatprep.subr.bf16.mxu0 0
    %2838 = vmatpush1.bf16.msra.mxu0 %v294
    %2839 = vmatprep.subr.bf16.mxu0 0
    %2840 = vmatpush1.bf16.msra.mxu0 %v295
    %2841 = vmatprep.subr.bf16.mxu0 0
    %2842 = vmatpush1.bf16.msra.mxu0 %v296
    %2843 = vmatprep.subr.bf16.mxu0 0
    %2844 = vmatpush1.bf16.msra.mxu0 %v297
    %2845 = vmatprep.subr.bf16.mxu0 0
    %2846 = vmatpush1.bf16.msra.mxu0 %v324
    %2847 = vmatprep.subr.bf16.mxu0 0
    %2848 = vmatpush1.bf16.msra.mxu0 0
    %2849 = vmatprep.subr.bf16.mxu0 0
    %2850 = vmatpush1.bf16.msra.mxu0 0
    %2851 = vmatprep.subr.bf16.mxu0 0
    %2852 = vmatpush1.bf16.msra.mxu0 0
    %2853 = vmatprep.subr.bf16.mxu0 0
    %2854 = vmatpush1.bf16.msra.mxu0 0
    %2855 = vmatprep.subr.bf16.mxu0 0
    %2856 = vmatpush1.bf16.msra.mxu0 0
    %2857 = vmatprep.subr.bf16.mxu0 0
    %2858 = vmatpush1.bf16.msra.mxu0 0
    %2859 = vmatprep.subr.bf16.mxu0 0
    %2860 = vmatpush1.bf16.msra.mxu0 0
    %2861 = vmatprep.subr.bf16.mxu0 0
    %2862 = vmatpush1.bf16.msra.mxu0 0
    %2863 = vmatprep.subr.bf16.mxu0 0
    %2864 = vmatpush1.bf16.msra.mxu0 0
    %2865 = vmatprep.subr.bf16.mxu0 0
    %2866 = vmatpush1.bf16.msra.mxu0 0
    %2867 = vmatprep.subr.bf16.mxu0 0
    %2868 = vmatpush1.bf16.msra.mxu0 0
    %2869 = vmatprep.mubr.bf16.mxu0 0
    %2870 = vmatmul.mubr.bf16.gmra.mrb[0].mxu0 %v2823
    %v2871 = vpop.f32.mrb[0].mxu0
    %v2872 = vadd.f32 %v249, %v2871
    %v2873 = vpop.f32.mrb[0].mxu0
    %v2874 = vpop.f32.mrb[0].mxu0
    %v2875 = vadd.f32 %v249, %v2874
    %v2876 = vpop.f32.mrb[0].mxu0
    %2877 = vmatprep.mubr.bf16.mxu0 0
    %2878 = vmatmul.mubr.bf16.gmra.mrb[0].mxu0 %v2826
    %v2879 = vpop.f32.mrb[0].mxu0
    %v2880 = vadd.f32 %v249, %v2879
    %v2881 = vpop.f32.mrb[0].mxu0
    %v2882 = vpop.f32.mrb[0].mxu0
    %v2883 = vadd.f32 %v249, %v2882
    %v2884 = vpop.f32.mrb[0].mxu0
    %2885 = vmatprep.mubr.bf16.mxu0 0
    %2886 = vmatmul.mubr.bf16.gmra.mrb[0].mxu0 %v2829
    %v2887 = vpop.f32.mrb[0].mxu0
    %v2888 = vadd.f32 %v249, %v2887
    %v2889 = vpop.f32.mrb[0].mxu0
    %v2890 = vpop.f32.mrb[0].mxu0
    %v2891 = vadd.f32 %v249, %v2890
    %v2892 = vpop.f32.mrb[0].mxu0
    %2893 = vmatprep.mubr.bf16.mxu0 0
    %2894 = vmatmul.mubr.bf16.gmra.mrb[0].mxu0 %v2832
    %v2895 = vpop.f32.mrb[0].mxu0
    %v2896 = vadd.f32 %v249, %v2895
    %v2897 = vpop.f32.mrb[0].mxu0
    %v2898 = vpop.f32.mrb[0].mxu0
    %v2899 = vadd.f32 %v249, %v2898
    %v2900 = vpop.f32.mrb[0].mxu0
    %2901 = vmatprep.mubr.bf16.mxu0 0
    %2902 = vmatmul.mubr.bf16.gmra.mrb[0].mxu0 %v2835
    %v2903 = vpop.f32.mrb[0].mxu0
    %v2904 = vadd.f32 %v249, %v2903
    %v2905 = vpop.f32.mrb[0].mxu0
    %v2906 = vpop.f32.mrb[0].mxu0
    %v2907 = vpop.f32.mrb[0].mxu0
    %2908 = vdwg.mxu0
    %v2914 = vrot.slane %v2888, 4
    %v2915 = vrot.slane %v2891, 4
    %v2916 = vsel %vm403, %v2914, %v2915
    %v2917 = vrot.slane %v2896, 4
    %v2918 = vsel %vm403, %v2915, %v2917
    %v2919 = vrot.slane %v2899, 4
    %v2920 = vsel %vm403, %v2917, %v2919
    %v2921 = vrot.slane %v2904, 4
    %v2922 = vsel %vm403, %v2919, %v2921
    %v2928 = vmax.f32 %v2872, %v2916
    %v2929 = vmax.f32 %v2875, %v2918
    %v2930 = vmax.f32 %v2880, %v2920
    %v2931 = vmax.f32 %v2883, %v2922
    %v2932 = vmax.f32 %v2888, %v2921
    %v2933 = vmul.f32 %v2300, 0.7
    %v2934 = vmul.f32 %v2301, 0.7
    %v2935 = vmul.f32 %v2302, 0.7
    %v2936 = vmul.f32 %v2303, 0.7
    %v2937 = vmul.f32 %v2304, 0.7
    %v2938 = vadd.f32 %v2933, %v2928
    %v2939 = vadd.f32 %v2934, %v2929
    %v2940 = vadd.f32 %v2935, %v2930
    %v2941 = vadd.f32 %v2936, %v2931
    %v2942 = vadd.f32 %v2937, %v2932
    %v2943 = vsub.f32 %v2938, %v2315
    %v2944 = vsub.f32 %v2939, %v2316
    %v2945 = vsub.f32 %v2940, %v2317
    %v2946 = vsub.f32 %v2941, %v2318
    %v2947 = vsub.f32 %v2942, %v2319
    %vm2948 = vcmp.gt.f32.partialorder %v2943, 1.0
    %vm2949 = vcmp.gt.f32.partialorder %v2944, 1.0
    %vm2950 = vcmp.gt.f32.partialorder %v2945, 1.0
    %vm2951 = vcmp.gt.f32.partialorder %v2946, 1.0
    %vm2952 = vcmp.gt.f32.partialorder %v2947, 1.0
    %v2953 = vsel %vm2948, 1, 0
    %v2954 = vsel %vm2949, 1, 0
    %v2955 = vsel %vm2950, 1, 0
    %v2956 = vsel %vm2951, 1, 0
    %v2957 = vsel %vm2952, 1, 0
    %v2958 = vcvt.s32.f32 %v2953
    %v2959 = vcvt.s32.f32 %v2954
    %v2960 = vcvt.s32.f32 %v2955
    %v2961 = vcvt.s32.f32 %v2956
    %v2962 = vcvt.s32.f32 %v2957
    %v2968 = vrot.slane %v2958, 1
    %v2969 = vrot.slane %v2959, 1
    %v2970 = vsel %vm456, %v2968, %v2969
    %v2971 = vrot.slane %v2960, 1
    %v2972 = vsel %vm456, %v2969, %v2971
    %v2973 = vrot.slane %v2961, 1
    %v2974 = vsel %vm456, %v2971, %v2973
    %v2975 = vrot.slane %v2962, 1
    %v2976 = vsel %vm456, %v2973, %v2975
    %v2981 = vrot.slane %v2958, 2
    %v2982 = vrot.slane %v2959, 2
    %v2983 = vsel %vm320, %v2981, %v2982
    %v2984 = vrot.slane %v2960, 2
    %v2985 = vsel %vm320, %v2982, %v2984
    %v2986 = vrot.slane %v2961, 2
    %v2987 = vsel %vm320, %v2984, %v2986
    %v2988 = vrot.slane %v2962, 2
    %v2989 = vsel %vm320, %v2986, %v2988
    %v2994 = vrot.slane %v2958, 3
    %v2995 = vrot.slane %v2959, 3
    %v2996 = vsel %vm319, %v2994, %v2995
    %v2997 = vrot.slane %v2960, 3
    %v2998 = vsel %vm319, %v2995, %v2997
    %v2999 = vrot.slane %v2961, 3
    %v3000 = vsel %vm319, %v2997, %v2999
    %v3001 = vrot.slane %v2962, 3
    %v3002 = vsel %vm319, %v2999, %v3001
    %v3007 = vrot.slane %v2958, 4
    %v3008 = vrot.slane %v2959, 4
    %v3009 = vsel %vm403, %v3007, %v3008
    %v3010 = vrot.slane %v2960, 4
    %v3011 = vsel %vm403, %v3008, %v3010
    %v3012 = vrot.slane %v2961, 4
    %v3013 = vsel %vm403, %v3010, %v3012
    %v3014 = vrot.slane %v2962, 4
    %v3015 = vsel %vm403, %v3012, %v3014
    %v3020 = vpack.c.bf16 %v2959, %v2958
    %v3021 = vpack.c.bf16 %v2972, %v2970
    %v3022 = vpack.c.bf16 %v2985, %v2983
    %v3023 = vpack.c.bf16 %v2998, %v2996
    %v3024 = vpack.c.bf16 %v3011, %v3009
    %v3025 = vpack.c.bf16 %v2961, %v2960
    %v3026 = vpack.c.bf16 %v2976, %v2974
    %v3027 = vpack.c.bf16 %v2989, %v2987
    %v3028 = vpack.c.bf16 %v3002, %v3000
    %v3029 = vpack.c.bf16 %v3015, %v3013
    %3030 = vmatprep.subr.bf16.mxu0 0
    %3031 = vmatpush1.bf16.msra.mxu0 %v685
    %3032 = vmatprep.subr.bf16.mxu0 0
    %3033 = vmatpush1.bf16.msra.mxu0 %v686
    %3034 = vmatprep.subr.bf16.mxu0 0
    %3035 = vmatpush1.bf16.msra.mxu0 %v687
    %3036 = vmatprep.subr.bf16.mxu0 0
    %3037 = vmatpush1.bf16.msra.mxu0 %v688
    %3038 = vmatprep.subr.bf16.mxu0 0
    %3039 = vmatpush1.bf16.msra.mxu0 %v689
    %3040 = vmatprep.subr.bf16.mxu0 0
    %3041 = vmatpush1.bf16.msra.mxu0 %v690
    %3042 = vmatprep.subr.bf16.mxu0 0
    %3043 = vmatpush1.bf16.msra.mxu0 %v691
    %3044 = vmatprep.subr.bf16.mxu0 0
    %3045 = vmatpush1.bf16.msra.mxu0 %v692
    %3046 = vmatprep.subr.bf16.mxu0 0
    %3047 = vmatpush1.bf16.msra.mxu0 %v693
    %3048 = vmatprep.subr.bf16.mxu0 0
    %3049 = vmatpush1.bf16.msra.mxu0 %v694
    %3050 = vmatprep.subr.bf16.mxu0 0
    %3051 = vmatpush1.bf16.msra.mxu0 %v695
    %3052 = vmatprep.subr.bf16.mxu0 0
    %3053 = vmatpush1.bf16.msra.mxu0 %v696
    %3054 = vmatprep.subr.bf16.mxu0 0
    %3055 = vmatpush1.bf16.msra.mxu0 %v697
    %3056 = vmatprep.subr.bf16.mxu0 0
    %3057 = vmatpush1.bf16.msra.mxu0 %v698
    %3058 = vmatprep.subr.bf16.mxu0 0
    %3059 = vmatpush1.bf16.msra.mxu0 %v699
    %3060 = vmatprep.subr.bf16.mxu0 0
    %3061 = vmatpush1.bf16.msra.mxu0 %v700
    %3062 = vmatprep.mubr.bf16.mxu0 %v3021
    %3063 = vmatmul.mubr.bf16.gmra.mrb[0].mxu0 %v3020
    %v3064 = vpop.f32.mrb[0].mxu0
    %v3065 = vadd.f32 %v523, %v3064
    %v3066 = vpop.f32.mrb[0].mxu0
    %v3067 = vpop.f32.mrb[0].mxu0
    %v3068 = vadd.f32 %v523, %v3067
    %v3069 = vpop.f32.mrb[0].mxu0
    %3070 = vmatprep.mubr.bf16.mxu0 %v3026
    %3071 = vmatmul.mubr.bf16.gmra.mrb[0].mxu0 %v3025
    %v3072 = vpop.f32.mrb[0].mxu0
    %v3073 = vadd.f32 %v523, %v3072
    %v3074 = vpop.f32.mrb[0].mxu0
    %v3075 = vpop.f32.mrb[0].mxu0
    %v3076 = vadd.f32 %v523, %v3075
    %v3077 = vpop.f32.mrb[0].mxu0
    %3078 = vdwg.mxu0
    %3079 = vmatprep.subr.bf16.mxu0 0
    %3080 = vmatpush1.bf16.msra.mxu0 %v701
    %3081 = vmatprep.subr.bf16.mxu0 0
    %3082 = vmatpush1.bf16.msra.mxu0 %v702
    %3083 = vmatprep.subr.bf16.mxu0 0
    %3084 = vmatpush1.bf16.msra.mxu0 %v703
    %3085 = vmatprep.subr.bf16.mxu0 0
    %3086 = vmatpush1.bf16.msra.mxu0 %v704
    %3087 = vmatprep.subr.bf16.mxu0 0
    %3088 = vmatpush1.bf16.msra.mxu0 %v705
    %3089 = vmatprep.subr.bf16.mxu0 0
    %3090 = vmatpush1.bf16.msra.mxu0 %v706
    %3091 = vmatprep.subr.bf16.mxu0 0
    %3092 = vmatpush1.bf16.msra.mxu0 %v707
    %3093 = vmatprep.subr.bf16.mxu0 0
    %3094 = vmatpush1.bf16.msra.mxu0 %v708
    %3095 = vmatprep.subr.bf16.mxu0 0
    %3096 = vmatpush1.bf16.msra.mxu0 %v709
    %3097 = vmatprep.subr.bf16.mxu0 0
    %3098 = vmatpush1.bf16.msra.mxu0 %v710
    %3099 = vmatprep.subr.bf16.mxu0 0
    %3100 = vmatpush1.bf16.msra.mxu0 %v711
    %3101 = vmatprep.subr.bf16.mxu0 0
    %3102 = vmatpush1.bf16.msra.mxu0 %v712
    %3103 = vmatprep.subr.bf16.mxu0 0
    %3104 = vmatpush1.bf16.msra.mxu0 %v713
    %3105 = vmatprep.subr.bf16.mxu0 0
    %3106 = vmatpush1.bf16.msra.mxu0 %v714
    %3107 = vmatprep.subr.bf16.mxu0 0
    %3108 = vmatpush1.bf16.msra.mxu0 %v715
    %3109 = vmatprep.subr.bf16.mxu0 0
    %3110 = vmatpush1.bf16.msra.mxu0 %v716
    %3111 = vmatprep.mubr.bf16.mxu0 %v3023
    %3112 = vmatmul.mubr.bf16.gmra.mrb[0].mxu0 %v3022
    %v3113 = vpop.f32.mrb[0].mxu0
    %v3114 = vadd.f32 %v3065, %v3113
    %v3115 = vpop.f32.mrb[0].mxu0
    %v3116 = vpop.f32.mrb[0].mxu0
    %v3117 = vadd.f32 %v3068, %v3116
    %v3118 = vpop.f32.mrb[0].mxu0
    %3119 = vmatprep.mubr.bf16.mxu0 %v3028
    %3120 = vmatmul.mubr.bf16.gmra.mrb[0].mxu0 %v3027
    %v3121 = vpop.f32.mrb[0].mxu0
    %v3122 = vadd.f32 %v3073, %v3121
    %v3123 = vpop.f32.mrb[0].mxu0
    %v3124 = vpop.f32.mrb[0].mxu0
    %v3125 = vadd.f32 %v3076, %v3124
    %v3126 = vpop.f32.mrb[0].mxu0
    %3127 = vdwg.mxu0
    %3128 = vmatprep.subr.bf16.mxu0 0
    %3129 = vmatpush1.bf16.msra.mxu0 %v717
    %3130 = vmatprep.subr.bf16.mxu0 0
    %3131 = vmatpush1.bf16.msra.mxu0 %v718
    %3132 = vmatprep.subr.bf16.mxu0 0
    %3133 = vmatpush1.bf16.msra.mxu0 %v719
    %3134 = vmatprep.subr.bf16.mxu0 0
    %3135 = vmatpush1.bf16.msra.mxu0 %v720
    %3136 = vmatprep.subr.bf16.mxu0 0
    %3137 = vmatpush1.bf16.msra.mxu0 %v721
    %3138 = vmatprep.subr.bf16.mxu0 0
    %3139 = vmatpush1.bf16.msra.mxu0 %v722
    %3140 = vmatprep.subr.bf16.mxu0 0
    %3141 = vmatpush1.bf16.msra.mxu0 %v723
    %3142 = vmatprep.subr.bf16.mxu0 0
    %3143 = vmatpush1.bf16.msra.mxu0 %v724
    %3144 = vmatprep.subr.bf16.mxu0 0
    %3145 = vmatpush1.bf16.msra.mxu0 0
    %3146 = vmatprep.subr.bf16.mxu0 0
    %3147 = vmatpush1.bf16.msra.mxu0 0
    %3148 = vmatprep.subr.bf16.mxu0 0
    %3149 = vmatpush1.bf16.msra.mxu0 0
    %3150 = vmatprep.subr.bf16.mxu0 0
    %3151 = vmatpush1.bf16.msra.mxu0 0
    %3152 = vmatprep.subr.bf16.mxu0 0
    %3153 = vmatpush1.bf16.msra.mxu0 0
    %3154 = vmatprep.subr.bf16.mxu0 0
    %3155 = vmatpush1.bf16.msra.mxu0 0
    %3156 = vmatprep.subr.bf16.mxu0 0
    %3157 = vmatpush1.bf16.msra.mxu0 0
    %3158 = vmatprep.subr.bf16.mxu0 0
    %3159 = vmatpush1.bf16.msra.mxu0 0
    %3160 = vmatprep.mubr.bf16.mxu0 0
    %3161 = vmatmul.mubr.bf16.gmra.mrb[0].mxu0 %v3024
    %v3162 = vpop.f32.mrb[0].mxu0
    %v3163 = vadd.f32 %v3114, %v3162
    %v3164 = vpop.f32.mrb[0].mxu0
    %v3165 = vpop.f32.mrb[0].mxu0
    %v3166 = vadd.f32 %v3117, %v3165
    %v3167 = vpop.f32.mrb[0].mxu0
    %3168 = vmatprep.mubr.bf16.mxu0 0
    %3169 = vmatmul.mubr.bf16.gmra.mrb[0].mxu0 %v3029
    %v3170 = vpop.f32.mrb[0].mxu0
    %v3171 = vadd.f32 %v3122, %v3170
    %v3172 = vpop.f32.mrb[0].mxu0
    %v3173 = vpop.f32.mrb[0].mxu0
    %v3174 = vadd.f32 %v3125, %v3173
    %v3175 = vpop.f32.mrb[0].mxu0
    %3176 = vdwg.mxu0
    %v3181 = vrot.slane %v3163, 1
    %v3182 = vrot.slane %v3166, 1
    %v3183 = vsel %vm456, %v3181, %v3182
    %v3184 = vrot.slane %v3171, 1
    %v3185 = vsel %vm456, %v3182, %v3184
    %v3186 = vrot.slane %v3174, 1
    %v3187 = vsel %vm456, %v3184, %v3186
    %v3192 = vmax.f32 %v3163, %v3183
    %v3193 = vmax.f32 %v3166, %v3185
    %v3194 = vmax.f32 %v3171, %v3187
    %v3195 = vmax.f32 %v3174, %v3186
    %v3196 = vmul.f32 %v2561, 0.7
    %v3197 = vmul.f32 %v2562, 0.7
    %v3198 = vmul.f32 %v2563, 0.7
    %v3199 = vmul.f32 %v2564, 0.7
    %v3200 = vadd.f32 %v3196, %v3192
    %v3201 = vadd.f32 %v3197, %v3193
    %v3202 = vadd.f32 %v3198, %v3194
    %v3203 = vadd.f32 %v3199, %v3195
    %v3204 = vsub.f32 %v3200, %v2573
    %v3205 = vsub.f32 %v3201, %v2574
    %v3206 = vsub.f32 %v3202, %v2575
    %v3207 = vsub.f32 %v3203, %v2576
    %vm3208 = vcmp.gt.f32.partialorder %v3204, 1.0
    %vm3209 = vcmp.gt.f32.partialorder %v3205, 1.0
    %vm3210 = vcmp.gt.f32.partialorder %v3206, 1.0
    %vm3211 = vcmp.gt.f32.partialorder %v3207, 1.0
    %v3212 = vsel %vm3208, 1, 0
    %v3213 = vsel %vm3209, 1, 0
    %v3214 = vsel %vm3210, 1, 0
    %v3215 = vsel %vm3211, 1, 0
    %v3216 = vcvt.s32.f32 %v3212
    %v3217 = vcvt.s32.f32 %v3213
    %v3218 = vcvt.s32.f32 %v3214
    %v3219 = vcvt.s32.f32 %v3215
    %v3221 = vrot.slane %v3218, 1
    %v3223 = vsel %vm954, %v3216, %v3221
    %v3225 = vrot.slane %v3216, 2
    %v3227 = vrot.slane %v3218, 3
    %v3229 = vsel %vm954, %v3225, %v3227
    %v3230 = vrot.slane %v3216, 4
    %v3232 = vrot.slane %v3218, 5
    %v3234 = vsel %vm954, %v3230, %v3232
    %v3235 = vrot.slane %v3216, 6
    %v3238 = vrot.slane %v3219, 7
    %v3240 = vsel %vm954, %v3235, %v3238
    %v3241 = vrot.slane %v3219, 1
    %v3243 = vsel %vm954, %v3217, %v3241
    %v3245 = vrot.slane %v3217, 2
    %v3247 = vrot.slane %v3219, 3
    %v3249 = vsel %vm954, %v3245, %v3247
    %v3250 = vrot.slane %v3217, 4
    %v3252 = vrot.slane %v3219, 5
    %v3254 = vsel %vm954, %v3250, %v3252
    %v3255 = vpack.c.bf16 %v3223, %v3223
    %v3256 = vpack.c.bf16 %v3229, %v3229
    %v3257 = vpack.c.bf16 %v3234, %v3234
    %v3258 = vpack.c.bf16 %v3240, %v3240
    %v3259 = vpack.c.bf16 %v3243, %v3243
    %v3260 = vpack.c.bf16 %v3249, %v3249
    %v3261 = vpack.c.bf16 %v3254, %v3254
    %3262 = vmatprep.subr.bf16.mxu0 0
    %3263 = vmatpush1.bf16.msra.mxu0 %v1224
    %3264 = vmatprep.subr.bf16.mxu0 0
    %3265 = vmatpush1.bf16.msra.mxu0 %v1225
    %3266 = vmatprep.subr.bf16.mxu0 0
    %3267 = vmatpush1.bf16.msra.mxu0 %v1226
    %3268 = vmatprep.subr.bf16.mxu0 0
    %3269 = vmatpush1.bf16.msra.mxu0 %v1227
    %3270 = vmatprep.subr.bf16.mxu0 0
    %3271 = vmatpush1.bf16.msra.mxu0 %v1228
    %3272 = vmatprep.subr.bf16.mxu0 0
    %3273 = vmatpush1.bf16.msra.mxu0 %v1229
    %3274 = vmatprep.subr.bf16.mxu0 0
    %3275 = vmatpush1.bf16.msra.mxu0 %v1230
    %3276 = vmatprep.subr.bf16.mxu0 0
    %3277 = vmatpush1.bf16.msra.mxu0 %v1231
    %3278 = vmatprep.subr.bf16.mxu0 0
    %3279 = vmatpush1.bf16.msra.mxu0 %v1232
    %3280 = vmatprep.subr.bf16.mxu0 0
    %3281 = vmatpush1.bf16.msra.mxu0 %v1233
    %3282 = vmatprep.subr.bf16.mxu0 0
    %3283 = vmatpush1.bf16.msra.mxu0 %v1234
    %3284 = vmatprep.subr.bf16.mxu0 0
    %3285 = vmatpush1.bf16.msra.mxu0 %v1235
    %3286 = vmatprep.subr.bf16.mxu0 0
    %3287 = vmatpush1.bf16.msra.mxu0 %v1236
    %3288 = vmatprep.subr.bf16.mxu0 0
    %3289 = vmatpush1.bf16.msra.mxu0 %v1237
    %3290 = vmatprep.subr.bf16.mxu0 0
    %3291 = vmatpush1.bf16.msra.mxu0 %v1238
    %3292 = vmatprep.subr.bf16.mxu0 0
    %3293 = vmatpush1.bf16.msra.mxu0 %v1239
    %3294 = vmatprep.mubr.bf16.mxu0 %v3256
    %3295 = vmatmul.mubr.bf16.gmra.mrb[0].mxu0 %v3255
    %v3296 = vpop.f32.mrb[0].mxu0
    %v3297 = vadd.f32 %v998, %v3296
    %v3298 = vpop.f32.mrb[0].mxu0
    %v3299 = vpop.f32.mrb[0].mxu0
    %v3300 = vpop.f32.mrb[0].mxu0
    %3301 = vdwg.mxu0
    %3302 = vmatprep.subr.bf16.mxu0 0
    %3303 = vmatpush1.bf16.msra.mxu0 %v1240
    %3304 = vmatprep.subr.bf16.mxu0 0
    %3305 = vmatpush1.bf16.msra.mxu0 %v1241
    %3306 = vmatprep.subr.bf16.mxu0 0
    %3307 = vmatpush1.bf16.msra.mxu0 %v1242
    %3308 = vmatprep.subr.bf16.mxu0 0
    %3309 = vmatpush1.bf16.msra.mxu0 %v1243
    %3310 = vmatprep.subr.bf16.mxu0 0
    %3311 = vmatpush1.bf16.msra.mxu0 %v1244
    %3312 = vmatprep.subr.bf16.mxu0 0
    %3313 = vmatpush1.bf16.msra.mxu0 %v1245
    %3314 = vmatprep.subr.bf16.mxu0 0
    %3315 = vmatpush1.bf16.msra.mxu0 %v1246
    %3316 = vmatprep.subr.bf16.mxu0 0
    %3317 = vmatpush1.bf16.msra.mxu0 %v1247
    %3318 = vmatprep.subr.bf16.mxu0 0
    %3319 = vmatpush1.bf16.msra.mxu0 %v1248
    %3320 = vmatprep.subr.bf16.mxu0 0
    %3321 = vmatpush1.bf16.msra.mxu0 %v1249
    %3322 = vmatprep.subr.bf16.mxu0 0
    %3323 = vmatpush1.bf16.msra.mxu0 %v1250
    %3324 = vmatprep.subr.bf16.mxu0 0
    %3325 = vmatpush1.bf16.msra.mxu0 %v1251
    %3326 = vmatprep.subr.bf16.mxu0 0
    %3327 = vmatpush1.bf16.msra.mxu0 %v1252
    %3328 = vmatprep.subr.bf16.mxu0 0
    %3329 = vmatpush1.bf16.msra.mxu0 %v1253
    %3330 = vmatprep.subr.bf16.mxu0 0
    %3331 = vmatpush1.bf16.msra.mxu0 %v1254
    %3332 = vmatprep.subr.bf16.mxu0 0
    %3333 = vmatpush1.bf16.msra.mxu0 %v1255
    %3334 = vmatprep.mubr.bf16.mxu0 %v3258
    %3335 = vmatmul.mubr.bf16.gmra.mrb[0].mxu0 %v3257
    %v3336 = vpop.f32.mrb[0].mxu0
    %v3337 = vadd.f32 %v3297, %v3336
    %v3338 = vpop.f32.mrb[0].mxu0
    %v3339 = vpop.f32.mrb[0].mxu0
    %v3340 = vpop.f32.mrb[0].mxu0
    %3341 = vdwg.mxu0
    %3342 = vmatprep.subr.bf16.mxu0 0
    %3343 = vmatpush1.bf16.msra.mxu0 %v1256
    %3344 = vmatprep.subr.bf16.mxu0 0
    %3345 = vmatpush1.bf16.msra.mxu0 %v1257
    %3346 = vmatprep.subr.bf16.mxu0 0
    %3347 = vmatpush1.bf16.msra.mxu0 %v1258
    %3348 = vmatprep.subr.bf16.mxu0 0
    %3349 = vmatpush1.bf16.msra.mxu0 %v1259
    %3350 = vmatprep.subr.bf16.mxu0 0
    %3351 = vmatpush1.bf16.msra.mxu0 %v1260
    %3352 = vmatprep.subr.bf16.mxu0 0
    %3353 = vmatpush1.bf16.msra.mxu0 %v1261
    %3354 = vmatprep.subr.bf16.mxu0 0
    %3355 = vmatpush1.bf16.msra.mxu0 %v1262
    %3356 = vmatprep.subr.bf16.mxu0 0
    %3357 = vmatpush1.bf16.msra.mxu0 %v1263
    %3358 = vmatprep.subr.bf16.mxu0 0
    %3359 = vmatpush1.bf16.msra.mxu0 %v1264
    %3360 = vmatprep.subr.bf16.mxu0 0
    %3361 = vmatpush1.bf16.msra.mxu0 %v1265
    %3362 = vmatprep.subr.bf16.mxu0 0
    %3363 = vmatpush1.bf16.msra.mxu0 %v1266
    %3364 = vmatprep.subr.bf16.mxu0 0
    %3365 = vmatpush1.bf16.msra.mxu0 %v1267
    %3366 = vmatprep.subr.bf16.mxu0 0
    %3367 = vmatpush1.bf16.msra.mxu0 %v1268
    %3368 = vmatprep.subr.bf16.mxu0 0
    %3369 = vmatpush1.bf16.msra.mxu0 %v1269
    %3370 = vmatprep.subr.bf16.mxu0 0
    %3371 = vmatpush1.bf16.msra.mxu0 %v1270
    %3372 = vmatprep.subr.bf16.mxu0 0
    %3373 = vmatpush1.bf16.msra.mxu0 %v1271
    %3374 = vmatprep.mubr.bf16.mxu0 %v3260
    %3375 = vmatmul.mubr.bf16.gmra.mrb[0].mxu0 %v3259
    %v3376 = vpop.f32.mrb[0].mxu0
    %v3377 = vadd.f32 %v3337, %v3376
    %v3378 = vpop.f32.mrb[0].mxu0
    %v3379 = vpop.f32.mrb[0].mxu0
    %v3380 = vpop.f32.mrb[0].mxu0
    %3381 = vdwg.mxu0
    %3382 = vmatprep.subr.bf16.mxu0 0
    %3383 = vmatpush1.bf16.msra.mxu0 %v1272
    %3384 = vmatprep.subr.bf16.mxu0 0
    %3385 = vmatpush1.bf16.msra.mxu0 %v1273
    %3386 = vmatprep.subr.bf16.mxu0 0
    %3387 = vmatpush1.bf16.msra.mxu0 %v1274
    %3388 = vmatprep.subr.bf16.mxu0 0
    %3389 = vmatpush1.bf16.msra.mxu0 %v1275
    %3390 = vmatprep.subr.bf16.mxu0 0
    %3391 = vmatpush1.bf16.msra.mxu0 %v1276
    %3392 = vmatprep.subr.bf16.mxu0 0
    %3393 = vmatpush1.bf16.msra.mxu0 %v1277
    %3394 = vmatprep.subr.bf16.mxu0 0
    %3395 = vmatpush1.bf16.msra.mxu0 %v1278
    %3396 = vmatprep.subr.bf16.mxu0 0
    %3397 = vmatpush1.bf16.msra.mxu0 %v1279
    %3398 = vmatprep.subr.bf16.mxu0 0
    %3399 = vmatpush1.bf16.msra.mxu0 0
    %3400 = vmatprep.subr.bf16.mxu0 0
    %3401 = vmatpush1.bf16.msra.mxu0 0
    %3402 = vmatprep.subr.bf16.mxu0 0
    %3403 = vmatpush1.bf16.msra.mxu0 0
    %3404 = vmatprep.subr.bf16.mxu0 0
    %3405 = vmatpush1.bf16.msra.mxu0 0
    %3406 = vmatprep.subr.bf16.mxu0 0
    %3407 = vmatpush1.bf16.msra.mxu0 0
    %3408 = vmatprep.subr.bf16.mxu0 0
    %3409 = vmatpush1.bf16.msra.mxu0 0
    %3410 = vmatprep.subr.bf16.mxu0 0
    %3411 = vmatpush1.bf16.msra.mxu0 0
    %3412 = vmatprep.subr.bf16.mxu0 0
    %3413 = vmatpush1.bf16.msra.mxu0 0
    %3414 = vmatprep.mubr.bf16.mxu0 0
    %3415 = vmatmul.mubr.bf16.gmra.mrb[0].mxu0 %v3261
    %v3416 = vpop.f32.mrb[0].mxu0
    %v3417 = vadd.f32 %v3377, %v3416
    %v3418 = vpop.f32.mrb[0].mxu0
    %v3419 = vpop.f32.mrb[0].mxu0
    %v3420 = vpop.f32.mrb[0].mxu0
    %3421 = vdwg.mxu0
    %v3422 = vmul.f32 %v2781, 0.7
    %v3423 = vadd.f32 %v3422, %v3417
    %v3424 = vsub.f32 %v3423, %v2784
    %vm3425 = vcmp.gt.f32.partialorder %v3424, 1.0
    %v3426 = vsel %vm3425, 1, 0
    %v3427 = vcvt.s32.f32 %v3426
    %s3428 = scalar_lea.vmem [#allocation2], 6
    %3429 = vst [vmem:[%s3428] sm:$0x3] %v3427
    %s3430 = scalar_lea.vmem [#allocation4], 6
    %3431 = vst [vmem:[%s3430] sm:$0x3] %v3424
    // Predicated region
    $region30: #{snn_forward.1} parent=1 // pred_check
      _
    $region31: #{snn_forward.1} parent=1 // pred_check_branch
      %3433 = sbr.rel (0) target = $region33
    $region32: #{snn_forward.1} parent=1 // pred_region
      %s3435 = ssub.s32 128, 128
      %3436 = vsyncadd [#allocation3], %s3435
      %s3437 = sshll.u32 [#allocation2], 4
      %s3438 = int_to_ptr.vmem [resolvable:$true] %s3437
      %3443 = dma.vmem_to_hbm [thread:$0]  %s3438, 128, %s7, [#allocation3], 32, 32, 2
    $region33: #{snn_forward.1} parent=1 // pred_fallthru
      _
    // Predicated region
    $region34: #{snn_forward.1} parent=1 // pred_check
      _
    $region35: #{snn_forward.1} parent=1 // pred_check_branch
      %3445 = sbr.rel (0) target = $region37
    $region36: #{snn_forward.1} parent=1 // pred_region
      %s3447 = ssub.s32 128, 128
      %3448 = vsyncadd [#allocation5], %s3447
      %s3449 = sshll.u32 [#allocation4], 4
      %s3450 = int_to_ptr.vmem [resolvable:$true] %s3449
      %3455 = dma.vmem_to_hbm [thread:$0]  %s3450, 128, %s8, [#allocation5], 32, 32, 2
    $region37: #{snn_forward.1} parent=1 // pred_fallthru
      _
    // Predicated region
    $region38: #{snn_forward.1} parent=1 // pred_check
      _
    $region39: #{snn_forward.1} parent=1 // pred_check_branch
      %3457 = sbr.rel (0) target = $region41
    $region40: #{snn_forward.1} parent=1 // pred_region
      %3458 = dma.done [#allocation3], 128
    $region41: #{snn_forward.1} parent=1 // pred_fallthru
      _
    // Predicated region
    $region42: #{snn_forward.1} parent=1 // pred_check
      _
    $region43: #{snn_forward.1} parent=1 // pred_check_branch
      %3460 = sbr.rel (0) target = $region45
    $region44: #{snn_forward.1} parent=1 // pred_region
      %3461 = dma.done [#allocation5], 128
    $region45: #{snn_forward.1} parent=1 // pred_fallthru
      _
    %3462 = vsyncpa [#allocation3], 1
    %3463 = vsyncpa [#allocation5], 1

</llo_original>
